<compile_context>
chip_gen: v6e
topology: v6e:2x2x1
jax: 0.10.0
libtpu: 0.0.40
codegen_flags: <defaults>
</compile_context>

<pallas_src>
import jax
import jax.numpy as jnp
from jax.experimental import pallas as pl
from jax.experimental.pallas import tpu as pltpu

HIDDEN = 768      # BERT hidden size (pooler in/out, fc1 input)
FC1 = 400         # real fc1 output width
FC1_PAD = 512     # lane-dense padded fc1 width (multiple of 128)
NUM_CLASSES = 2   # real number of classes
OUT_PAD = 128     # lane-dense padded logits width
TB_MAX = 512      # batch tile cap (amortizes per-grid-step overhead)


def _round_up(x, m):
    return (x + m - 1) // m * m


def _cdiv(a, b):
    return (a + b - 1) // b


def _choose_batch_tile(batch):
    """Pick (TB, B_pad): TB multiple of 8, <= TB_MAX, >= 2 grid steps when
    possible (v7x megacore), and padding bounded by ~one sublane group/tile."""
    b8 = _round_up(batch, 8)
    n_tiles = max(_cdiv(b8, TB_MAX), 2 if b8 > 8 else 1)
    tb = _round_up(_cdiv(b8, n_tiles), 8)
    b_pad = _round_up(b8, tb)
    return tb, b_pad


def _fused_head_kernel(pooled_ref, wp_ref, bp_ref, w1_ref, b1_ref,
                       w2_ref, b2_ref, out_ref):
    # Surrogate-BERT pooler: cls_hs = tanh(pooled @ Wp + bp). MXU bf16 inputs,
    # f32 accumulation; tanh in f32 (safe on v5e, which has no bf16 EUP).
    cls = jnp.dot(pooled_ref[...], wp_ref[...],
                  preferred_element_type=jnp.float32) + bp_ref[...]
    cls = jnp.tanh(cls)

    # fc1: (TB, 768) @ (768, 512) + (1, 512); ReLU in f32.
    # Dropout(p=0.1) is the identity in eval mode (inference semantics).
    h = jnp.dot(cls.astype(jnp.bfloat16), w1_ref[...],
                preferred_element_type=jnp.float32) + b1_ref[...]
    h = jnp.maximum(h, 0.0)

    # fc2: (TB, 512) @ (512, 128) + (1, 128); only the first NUM_CLASSES
    # columns are real (padded w2 rows/cols and b2 lanes are zero).
    logits = jnp.dot(h.astype(jnp.bfloat16), w2_ref[...],
                     preferred_element_type=jnp.float32) + b2_ref[...]

    # Mask padded class lanes so they don't leak into the log-softmax.
    lane = jax.lax.broadcasted_iota(jnp.int32, logits.shape, 1)
    logits = jnp.where(lane < NUM_CLASSES, logits, jnp.float32(-1e30))

    # LogSoftmax over dim=1 (class axis), max-subtracted, all in f32.
    m = jnp.max(logits, axis=-1, keepdims=True)
    z = logits - m
    lse = jnp.log(jnp.sum(jnp.exp(z), axis=-1, keepdims=True))
    out_ref[...] = (z - lse).astype(out_ref.dtype)


def prepare_head_params(w_pool, b_pool, w1, b1, w2, b2):
    """Zero-pad fc1 400->512 and the class dim 2->128, cast weights to bf16.

    Padded w2 rows/cols and padded bias lanes are zero, so padded lanes carry
    exactly 0 into the logits (and are additionally masked before softmax).
    Biases stay in f32.
    """
    w1p = jnp.zeros((HIDDEN, FC1_PAD), jnp.float32).at[:, :FC1].set(w1)
    b1p = jnp.zeros((1, FC1_PAD), jnp.float32).at[:, :FC1].set(
        b1.reshape(1, -1))
    w2p = jnp.zeros((FC1_PAD, OUT_PAD), jnp.float32).at[:FC1, :NUM_CLASSES].set(w2)
    b2p = jnp.zeros((1, OUT_PAD), jnp.float32).at[:, :NUM_CLASSES].set(
        b2.reshape(1, -1))
    return dict(
        wp=w_pool.astype(jnp.bfloat16),
        bp=b_pool.reshape(1, -1).astype(jnp.float32),
        w1=w1p.astype(jnp.bfloat16), b1=b1p,
        w2=w2p.astype(jnp.bfloat16), b2=b2p,
    )


def bert_arch_head(pooled_bf16, hp):
    """Fused pooler + classifier head.

    pooled_bf16: (B, 768) bf16 features from the encoder surrogate.
    Returns the padded (B_pad, OUT_PAD) f32 log-prob block; the consumer
    slices [:B, :NUM_CLASSES] (kept out of the kernel path on purpose).
    """
    B = pooled_bf16.shape[0]
    TB, B_pad = _choose_batch_tile(B)
    if B_pad != B:
        # Only pad when the tile doesn't divide B (single fused XLA op).
        pooled_bf16 = jnp.pad(pooled_bf16, ((0, B_pad - B), (0, 0)))

    wp, bp, w1, b1, w2, b2 = (hp[k] for k in ("wp", "bp", "w1", "b1", "w2", "b2"))

    grid = (B_pad // TB,)

    flops = 2 * B_pad * (HIDDEN * HIDDEN + HIDDEN * FC1_PAD + FC1_PAD * OUT_PAD)
    transcendentals = B_pad * (HIDDEN + OUT_PAD + 1)   # tanh + exp + log
    bytes_accessed = (
        B_pad * HIDDEN * 2                               # bf16 activations in
        + (wp.size + w1.size + w2.size) * 2              # bf16 weights
        + (bp.size + b1.size + b2.size) * 4              # f32 biases
        + B_pad * OUT_PAD * 4                            # f32 log-probs out
    )
    cost = pl.CostEstimate(flops=flops, transcendentals=transcendentals,
                           bytes_accessed=bytes_accessed)

    def resident(shape):
        # Constant index_map (loaded once, reused every batch tile) and
        # single-buffered: double-buffering a never-re-DMAed block only
        # wastes VMEM.
        return pl.BlockSpec(shape, lambda i: (0, 0),
                            pipeline_mode=pl.Buffered(1))

    out = pl.pallas_call(
        _fused_head_kernel,
        out_shape=jax.ShapeDtypeStruct((B_pad, OUT_PAD), jnp.float32),
        grid_spec=pltpu.PrefetchScalarGridSpec(
            num_scalar_prefetch=0,
            grid=grid,
            in_specs=[
                # Activations stream over the batch grid axis (double-buffered).
                pl.BlockSpec((TB, HIDDEN), lambda i: (i, 0)),
                # VMEM-resident weights/biases.
                resident((HIDDEN, HIDDEN)),
                resident((1, HIDDEN)),
                resident((HIDDEN, FC1_PAD)),
                resident((1, FC1_PAD)),
                resident((FC1_PAD, OUT_PAD)),
                resident((1, OUT_PAD)),
            ],
            out_specs=pl.BlockSpec((TB, OUT_PAD), lambda i: (i, 0)),
        ),
        compiler_params=pltpu.CompilerParams(
            dimension_semantics=("parallel",)),  # v7x: shard batch tiles on 2 TCs
        cost_estimate=cost,
    )(pooled_bf16, wp, bp, w1, b1, w2, b2)

    return out


def surrogate_bert_pooled(sent_id, mask, emb_table):
    # TODO(synk): the real pretrained BERT encoder is an external module not
    # defined in BERT_Arch; this deterministic surrogate (embedding lookup +
    # masked mean) provides the (B, 768) feature; the pooler dense + tanh is
    # fused into the Pallas kernel. The bf16 cast is emitted here so it fuses
    # into the reduction instead of being a separate HBM pass.
    emb = emb_table[sent_id]                                  # (B, S, 768)
    m = mask.astype(jnp.float32)[..., None]                   # (B, S, 1)
    pooled = jnp.sum(emb * m, axis=1) / jnp.maximum(jnp.sum(m, axis=1), 1.0)
    return pooled.astype(jnp.bfloat16)


def init_params(key):
    ks = jax.random.split(key, 4)
    vocab = 32

    # PyTorch nn.Linear default init: U(-1/sqrt(fan_in), 1/sqrt(fan_in)).
    def lin(k, fan_in, fan_out):
        kw, kb = jax.random.split(k)
        lim = 1.0 / jnp.sqrt(fan_in)
        w = jax.random.uniform(kw, (fan_in, fan_out), jnp.float32, -lim, lim)
        b = jax.random.uniform(kb, (1, fan_out), jnp.float32, -lim, lim)
        return w, b

    emb_table = jax.random.normal(ks[0], (vocab, HIDDEN), jnp.float32) * 0.02
    w_pool, b_pool = lin(ks[1], HIDDEN, HIDDEN)
    w1, b1 = lin(ks[2], HIDDEN, FC1)
    w2, b2 = lin(ks[3], FC1, NUM_CLASSES)

    return dict(
        emb_table=emb_table,
        head=prepare_head_params(w_pool, b_pool, w1, b1, w2, b2),
    )


def bert_arch_forward(params, sent_id, mask):
    B = sent_id.shape[0]
    pooled = surrogate_bert_pooled(sent_id, mask, params["emb_table"])
    out_padded = bert_arch_head(pooled, params["head"])
    # Consumer-side trim of batch padding and padded class lanes.
    return out_padded[:B, :NUM_CLASSES]


if __name__ == "__main__":
    key = jax.random.PRNGKey(0)
    kp, kid, kmask = jax.random.split(key, 3)
    params = init_params(kp)

    B, S = 8, 16
    sent_id = jax.random.randint(kid, (B, S), 0, 32, dtype=jnp.int32)
    mask = (jax.random.uniform(kmask, (B, S)) > 0.2).astype(jnp.int32)

    out = bert_arch_forward(params, sent_id, mask)
    out = jax.block_until_ready(out)

    # sanity: rows of log-probs should exp-sum to 1
    row_sums = jnp.sum(jnp.exp(out), axis=1)
    assert out.shape == (B, NUM_CLASSES)
    assert bool(jnp.all(jnp.abs(row_sums - 1.0) < 1e-4))
    assert bool(jnp.all(jnp.isfinite(out)))
    print("KERNEL_OK")
</pallas_src>

<mosaic_0001>
module attributes {stable_mosaic.version = 11 : i64} {
  func.func @_fused_head_kernel(%arg0: i32, %arg1: memref<8x768xbf16, #tpu.memory_space<vmem>>, %arg2: memref<768x768xbf16, #tpu.memory_space<vmem>>, %arg3: memref<1x768xf32, #tpu.memory_space<vmem>>, %arg4: memref<768x512xbf16, #tpu.memory_space<vmem>>, %arg5: memref<1x512xf32, #tpu.memory_space<vmem>>, %arg6: memref<512x128xbf16, #tpu.memory_space<vmem>>, %arg7: memref<1x128xf32, #tpu.memory_space<vmem>>, %arg8: memref<8x128xf32, #tpu.memory_space<vmem>>) attributes {dimension_semantics = [#tpu.dimension_semantics<parallel>], iteration_bounds = array<i64: 1>, scalar_prefetch = 0 : i64, scratch_operands = 0 : i64, tpu.core_type = #tpu.core_type<tc>, window_params = [{transform_indices = @transform_0, window_bounds = array<i64: 8, 768>}, {pipeline_mode = #tpu.pipeline_mode<synchronous>, transform_indices = @transform_1, window_bounds = array<i64: 768, 768>}, {pipeline_mode = #tpu.pipeline_mode<synchronous>, transform_indices = @transform_2, window_bounds = array<i64: 1, 768>}, {pipeline_mode = #tpu.pipeline_mode<synchronous>, transform_indices = @transform_3, window_bounds = array<i64: 768, 512>}, {pipeline_mode = #tpu.pipeline_mode<synchronous>, transform_indices = @transform_4, window_bounds = array<i64: 1, 512>}, {pipeline_mode = #tpu.pipeline_mode<synchronous>, transform_indices = @transform_5, window_bounds = array<i64: 512, 128>}, {pipeline_mode = #tpu.pipeline_mode<synchronous>, transform_indices = @transform_6, window_bounds = array<i64: 1, 128>}, {transform_indices = @transform_7, window_bounds = array<i64: 8, 128>}]} {
    %c0 = arith.constant 0 : index
    %c0_0 = arith.constant 0 : index
    %0 = vector.load %arg1[%c0, %c0_0] : memref<8x768xbf16, #tpu.memory_space<vmem>>, vector<8x768xbf16>
    %c0_1 = arith.constant 0 : index
    %c0_2 = arith.constant 0 : index
    %1 = vector.load %arg2[%c0_1, %c0_2] : memref<768x768xbf16, #tpu.memory_space<vmem>>, vector<768x768xbf16>
    %cst = arith.constant dense<0.000000e+00> : vector<8x768xf32>
    %2 = tpu.matmul %0, %1, %cst {dimension_numbers = #tpu.dot_dimension_numbers<[1], [0], [0], [1], [0, 0, 1, 1], [], []>} : vector<8x768xbf16>, vector<768x768xbf16>, vector<8x768xf32> -> vector<8x768xf32>
    %c0_3 = arith.constant 0 : index
    %c0_4 = arith.constant 0 : index
    %3 = vector.load %arg3[%c0_3, %c0_4] : memref<1x768xf32, #tpu.memory_space<vmem>>, vector<1x768xf32>
    %4 = vector.broadcast %3 : vector<1x768xf32> to vector<8x768xf32>
    %5 = arith.addf %2, %4 : vector<8x768xf32>
    %6 = math.tanh %5 : vector<8x768xf32>
    %7 = arith.truncf %6 : vector<8x768xf32> to vector<8x768xbf16>
    %c0_5 = arith.constant 0 : index
    %c0_6 = arith.constant 0 : index
    %8 = vector.load %arg4[%c0_5, %c0_6] : memref<768x512xbf16, #tpu.memory_space<vmem>>, vector<768x512xbf16>
    %cst_7 = arith.constant dense<0.000000e+00> : vector<8x512xf32>
    %9 = tpu.matmul %7, %8, %cst_7 {dimension_numbers = #tpu.dot_dimension_numbers<[1], [0], [0], [1], [0, 0, 1, 1], [], []>} : vector<8x768xbf16>, vector<768x512xbf16>, vector<8x512xf32> -> vector<8x512xf32>
    %c0_8 = arith.constant 0 : index
    %c0_9 = arith.constant 0 : index
    %10 = vector.load %arg5[%c0_8, %c0_9] : memref<1x512xf32, #tpu.memory_space<vmem>>, vector<1x512xf32>
    %11 = vector.broadcast %10 : vector<1x512xf32> to vector<8x512xf32>
    %12 = arith.addf %9, %11 : vector<8x512xf32>
    %cst_10 = arith.constant 0.000000e+00 : f32
    %13 = vector.broadcast %cst_10 : f32 to vector<8x512xf32>
    %14 = arith.maximumf %12, %13 : vector<8x512xf32>
    %15 = arith.truncf %14 : vector<8x512xf32> to vector<8x512xbf16>
    %c0_11 = arith.constant 0 : index
    %c0_12 = arith.constant 0 : index
    %16 = vector.load %arg6[%c0_11, %c0_12] : memref<512x128xbf16, #tpu.memory_space<vmem>>, vector<512x128xbf16>
    %cst_13 = arith.constant dense<0.000000e+00> : vector<8x128xf32>
    %17 = tpu.matmul %15, %16, %cst_13 {dimension_numbers = #tpu.dot_dimension_numbers<[1], [0], [0], [1], [0, 0, 1, 1], [], []>} : vector<8x512xbf16>, vector<512x128xbf16>, vector<8x128xf32> -> vector<8x128xf32>
    %c0_14 = arith.constant 0 : index
    %c0_15 = arith.constant 0 : index
    %18 = vector.load %arg7[%c0_14, %c0_15] : memref<1x128xf32, #tpu.memory_space<vmem>>, vector<1x128xf32>
    %19 = vector.broadcast %18 : vector<1x128xf32> to vector<8x128xf32>
    %20 = arith.addf %17, %19 : vector<8x128xf32>
    %21 = tpu.iota {dimensions = array<i32: 1>} : vector<8x128xi32>
    %c2_i32 = arith.constant 2 : i32
    %22 = vector.broadcast %c2_i32 : i32 to vector<8x128xi32>
    %23 = arith.cmpi slt, %21, %22 : vector<8x128xi32>
    %cst_16 = arith.constant -1.000000e+30 : f32
    %24 = vector.broadcast %cst_16 : f32 to vector<8x128xf32>
    %25 = arith.select %23, %20, %24 : vector<8x128xi1>, vector<8x128xf32>
    %cst_17 = arith.constant dense<0xFF800000> : vector<8xf32>
    %26 = vector.multi_reduction <maximumf>, %25, %cst_17 [1] : vector<8x128xf32> to vector<8xf32>
    %27 = vector.shape_cast %26 : vector<8xf32> to vector<8x1xf32>
    %28 = vector.broadcast %27 : vector<8x1xf32> to vector<8x128xf32>
    %29 = arith.subf %25, %28 : vector<8x128xf32>
    %30 = math.exp %29 : vector<8x128xf32>
    %cst_18 = arith.constant dense<0.000000e+00> : vector<8xf32>
    %31 = vector.multi_reduction <add>, %30, %cst_18 [1] : vector<8x128xf32> to vector<8xf32>
    %32 = vector.shape_cast %31 : vector<8xf32> to vector<8x1xf32>
    %33 = math.log %32 : vector<8x1xf32>
    %34 = vector.broadcast %33 : vector<8x1xf32> to vector<8x128xf32>
    %35 = arith.subf %29, %34 : vector<8x128xf32>
    %c0_19 = arith.constant 0 : index
    %c0_20 = arith.constant 0 : index
    %36 = vector.load %arg8[%c0_19, %c0_20] : memref<8x128xf32, #tpu.memory_space<vmem>>, vector<8x128xf32>
    tpu.vector_store %arg8[%c0_19, %c0_20], %35 {strides = array<i32>} : memref<8x128xf32, #tpu.memory_space<vmem>>, vector<8x128xf32>,
    return
  }
  func.func @transform_0(%arg0: i32) -> (i32, i32) {
    %c0_i32 = arith.constant 0 : i32
    %c0_i32_0 = arith.constant 0 : i32
    return %arg0, %c0_i32 : i32, i32
  }
  func.func @transform_1(%arg0: i32) -> (i32, i32) {
    %c0_i32 = arith.constant 0 : i32
    %c0_i32_0 = arith.constant 0 : i32
    %c0_i32_1 = arith.constant 0 : i32
    return %c0_i32, %c0_i32_0 : i32, i32
  }
  func.func @transform_2(%arg0: i32) -> (i32, i32) {
    %c0_i32 = arith.constant 0 : i32
    %c0_i32_0 = arith.constant 0 : i32
    %c0_i32_1 = arith.constant 0 : i32
    return %c0_i32, %c0_i32_0 : i32, i32
  }
  func.func @transform_3(%arg0: i32) -> (i32, i32) {
    %c0_i32 = arith.constant 0 : i32
    %c0_i32_0 = arith.constant 0 : i32
    %c0_i32_1 = arith.constant 0 : i32
    return %c0_i32, %c0_i32_0 : i32, i32
  }
  func.func @transform_4(%arg0: i32) -> (i32, i32) {
    %c0_i32 = arith.constant 0 : i32
    %c0_i32_0 = arith.constant 0 : i32
    %c0_i32_1 = arith.constant 0 : i32
    return %c0_i32, %c0_i32_0 : i32, i32
  }
  func.func @transform_5(%arg0: i32) -> (i32, i32) {
    %c0_i32 = arith.constant 0 : i32
    %c0_i32_0 = arith.constant 0 : i32
    %c0_i32_1 = arith.constant 0 : i32
    return %c0_i32, %c0_i32_0 : i32, i32
  }
  func.func @transform_6(%arg0: i32) -> (i32, i32) {
    %c0_i32 = arith.constant 0 : i32
    %c0_i32_0 = arith.constant 0 : i32
    %c0_i32_1 = arith.constant 0 : i32
    return %c0_i32, %c0_i32_0 : i32, i32
  }
  func.func @transform_7(%arg0: i32) -> (i32, i32) {
    %c0_i32 = arith.constant 0 : i32
    %c0_i32_0 = arith.constant 0 : i32
    return %arg0, %c0_i32 : i32, i32
  }
}

</mosaic_0001>

<llo_original>
// kernel: tpu_custom_call.1
$region0: #{tpu_custom_call.1}
  #allocation0 [shape = 'u32[]', space=smem, size = 0x4, offset = 0x4, fixed_abs, tag = 'smem constant byte address 0x4 - core index']
  #allocation1 [shape = 'u32[144,128]{1,0:T(1,128)}', space=vmem, size = 0x12000, scoped, tag = 'internal scratch']
  %s0 = inlined_call_operand.hbm [shape: bf16[8,768], index: 0, kind: input, shape index: {}]
  %s1 = inlined_call_operand.hbm [shape: bf16[768,768], index: 1, kind: input, shape index: {}]
  %s2 = inlined_call_operand.hbm [shape: f32[1,768], index: 2, kind: input, shape index: {}]
  %s3 = inlined_call_operand.hbm [shape: bf16[768,512], index: 3, kind: input, shape index: {}]
  %s4 = inlined_call_operand.hbm [shape: f32[1,512], index: 4, kind: input, shape index: {}]
  %s5 = inlined_call_operand.hbm [shape: bf16[512,128], index: 5, kind: input, shape index: {}]
  %s6 = inlined_call_operand.hbm [shape: f32[1,128], index: 6, kind: input, shape index: {}]
  %s7 = inlined_call_operand.hbm [shape: f32[8,128], index: 7, kind: output, shape index: {}]
  %s8 = sld [smem:[#allocation0]]
  $region66: #{tpu_custom_call.1} parent=0
    _
  %s10 = ssub.s32 1, %s8
  %s11 = scalar_select 0, %s10, %s8
  $region1: #{tpu_custom_call.1} parent=0
    #allocation2 [shape = 'u8[12288]{0}', space=vmem, size = 0x3000, scoped, tag = 'input window, operand 0, single buffered']
    #allocation3 [shape = 's32[1]{0}', space=sflag, size = 0x4, scoped, tag = 'scoped memory for tpu_custom_call.1']
    #allocation4 [shape = 's32[1]{0}', space=sflag, size = 0x4, scoped, tag = 'scoped memory for tpu_custom_call.1']
    #allocation5 [shape = 'u8[1179648]{0}', space=vmem, size = 0x120000, scoped, tag = 'input window, operand 1, single buffered']
    #allocation6 [shape = 's32[1]{0}', space=sflag, size = 0x4, scoped, tag = 'scoped memory for tpu_custom_call.1']
    #allocation7 [shape = 'u8[3072]{0}', space=vmem, size = 0xc00, scoped, tag = 'input window, operand 2, single buffered']
    #allocation8 [shape = 'u8[786432]{0}', space=vmem, size = 0xc0000, scoped, tag = 'input window, operand 3, single buffered']
    #allocation9 [shape = 's32[1]{0}', space=sflag, size = 0x4, scoped, tag = 'scoped memory for tpu_custom_call.1']
    #allocation10 [shape = 'u8[2048]{0}', space=vmem, size = 0x800, scoped, tag = 'input window, operand 4, single buffered']
    #allocation11 [shape = 'u8[131072]{0}', space=vmem, size = 0x20000, scoped, tag = 'input window, operand 5, single buffered']
    #allocation12 [shape = 's32[1]{0}', space=sflag, size = 0x4, scoped, tag = 'scoped memory for tpu_custom_call.1']
    #allocation13 [shape = 'u8[512]{0}', space=vmem, size = 0x400, scoped, tag = 'input window, operand 6, single buffered']
    #allocation14 [shape = 'u8[4096]{0}', space=vmem, size = 0x1000, scoped, tag = 'output window, operand 0, single buffered']
    %12 = vsyncpa [#allocation3], 0
    %13 = vsyncpa [#allocation6], 0
    %14 = vsyncpa [#allocation9], 0
    %15 = vsyncpa [#allocation12], 0
    %16 = vsyncpa [#allocation4], 0
    // Predicated region
    $region2: #{tpu_custom_call.1} parent=1 // pred_check
      _
    $region3: #{tpu_custom_call.1} parent=1 // pred_check_branch
      %18 = sbr.rel (0) target = $region5
    $region4: #{tpu_custom_call.1} parent=1 // pred_region
      %s20 = ssub.s32 384, 384
      %21 = vsyncadd [#allocation3], %s20
      %s23 = sshll.u32 [#allocation2], 4
      %s24 = int_to_ptr.vmem [resolvable:$true] %s23
      %26 = dma.hbm_to_vmem [thread:$0]  %s0, 384, %s24, [#allocation3]
    $region5: #{tpu_custom_call.1} parent=1 // pred_fallthru
      _
    // Predicated region
    $region6: #{tpu_custom_call.1} parent=1 // pred_check
      _
    $region7: #{tpu_custom_call.1} parent=1 // pred_check_branch
      %28 = sbr.rel (0) target = $region9
    $region8: #{tpu_custom_call.1} parent=1 // pred_region
      %s30 = ssub.s32 36864, 36864
      %31 = vsyncadd [#allocation6], %s30
      %s32 = sshll.u32 [#allocation5], 4
      %s33 = int_to_ptr.vmem [resolvable:$true] %s32
      %38 = dma.hbm_to_vmem [thread:$0]  %s1, 36864, %s33, [#allocation6], 384, 384, 24
    $region9: #{tpu_custom_call.1} parent=1 // pred_fallthru
      _
    // Predicated region
    $region10: #{tpu_custom_call.1} parent=1 // pred_check
      _
    $region11: #{tpu_custom_call.1} parent=1 // pred_check_branch
      %40 = sbr.rel (0) target = $region13
    $region12: #{tpu_custom_call.1} parent=1 // pred_region
      %s42 = ssub.s32 96, 96
      %43 = vsyncadd [#allocation6], %s42
      %s45 = sshll.u32 [#allocation7], 4
      %s46 = int_to_ptr.vmem [resolvable:$true] %s45
      %48 = dma.hbm_to_vmem [thread:$0]  %s2, 96, %s46, [#allocation6]
    $region13: #{tpu_custom_call.1} parent=1 // pred_fallthru
      _
    // Predicated region
    $region14: #{tpu_custom_call.1} parent=1 // pred_check
      _
    $region15: #{tpu_custom_call.1} parent=1 // pred_check_branch
      %50 = sbr.rel (0) target = $region17
    $region16: #{tpu_custom_call.1} parent=1 // pred_region
      %s52 = ssub.s32 24576, 24576
      %53 = vsyncadd [#allocation9], %s52
      %s54 = sshll.u32 [#allocation8], 4
      %s55 = int_to_ptr.vmem [resolvable:$true] %s54
      %60 = dma.hbm_to_vmem [thread:$0]  %s3, 24576, %s55, [#allocation9], 256, 256, 16
    $region17: #{tpu_custom_call.1} parent=1 // pred_fallthru
      _
    // Predicated region
    $region18: #{tpu_custom_call.1} parent=1 // pred_check
      _
    $region19: #{tpu_custom_call.1} parent=1 // pred_check_branch
      %62 = sbr.rel (0) target = $region21
    $region20: #{tpu_custom_call.1} parent=1 // pred_region
      %s64 = ssub.s32 64, 64
      %65 = vsyncadd [#allocation9], %s64
      %s67 = sshll.u32 [#allocation10], 4
      %s68 = int_to_ptr.vmem [resolvable:$true] %s67
      %70 = dma.hbm_to_vmem [thread:$0]  %s4, 64, %s68, [#allocation9]
    $region21: #{tpu_custom_call.1} parent=1 // pred_fallthru
      _
    // Predicated region
    $region22: #{tpu_custom_call.1} parent=1 // pred_check
      _
    $region23: #{tpu_custom_call.1} parent=1 // pred_check_branch
      %72 = sbr.rel (0) target = $region25
    $region24: #{tpu_custom_call.1} parent=1 // pred_region
      %s74 = ssub.s32 4096, 4096
      %75 = vsyncadd [#allocation12], %s74
      %s76 = sshll.u32 [#allocation11], 4
      %s77 = int_to_ptr.vmem [resolvable:$true] %s76
      %82 = dma.hbm_to_vmem [thread:$0]  %s5, 4096, %s77, [#allocation12], 64, 64, 4
    $region25: #{tpu_custom_call.1} parent=1 // pred_fallthru
      _
    // Predicated region
    $region26: #{tpu_custom_call.1} parent=1 // pred_check
      _
    $region27: #{tpu_custom_call.1} parent=1 // pred_check_branch
      %84 = sbr.rel (0) target = $region29
    $region28: #{tpu_custom_call.1} parent=1 // pred_region
      %s86 = ssub.s32 16, 16
      %87 = vsyncadd [#allocation12], %s86
      %s89 = sshll.u32 [#allocation13], 4
      %s90 = int_to_ptr.vmem [resolvable:$true] %s89
      %92 = dma.hbm_to_vmem [thread:$0]  %s6, 16, %s90, [#allocation12]
    $region29: #{tpu_custom_call.1} parent=1 // pred_fallthru
      _
    // Predicated region
    $region30: #{tpu_custom_call.1} parent=1 // pred_check
      _
    $region31: #{tpu_custom_call.1} parent=1 // pred_check_branch
      %94 = sbr.rel (0) target = $region33
    $region32: #{tpu_custom_call.1} parent=1 // pred_region
      %95 = dma.done [#allocation3], 384
    $region33: #{tpu_custom_call.1} parent=1 // pred_fallthru
      _
    // Predicated region
    $region34: #{tpu_custom_call.1} parent=1 // pred_check
      _
    $region35: #{tpu_custom_call.1} parent=1 // pred_check_branch
      %97 = sbr.rel (0) target = $region37
    $region36: #{tpu_custom_call.1} parent=1 // pred_region
      %98 = dma.done [#allocation6], 36864
    $region37: #{tpu_custom_call.1} parent=1 // pred_fallthru
      _
    // Predicated region
    $region38: #{tpu_custom_call.1} parent=1 // pred_check
      _
    $region39: #{tpu_custom_call.1} parent=1 // pred_check_branch
      %100 = sbr.rel (0) target = $region41
    $region40: #{tpu_custom_call.1} parent=1 // pred_region
      %101 = dma.done [#allocation6], 96
    $region41: #{tpu_custom_call.1} parent=1 // pred_fallthru
      _
    // Predicated region
    $region42: #{tpu_custom_call.1} parent=1 // pred_check
      _
    $region43: #{tpu_custom_call.1} parent=1 // pred_check_branch
      %103 = sbr.rel (0) target = $region45
    $region44: #{tpu_custom_call.1} parent=1 // pred_region
      %104 = dma.done [#allocation9], 24576
    $region45: #{tpu_custom_call.1} parent=1 // pred_fallthru
      _
    // Predicated region
    $region46: #{tpu_custom_call.1} parent=1 // pred_check
      _
    $region47: #{tpu_custom_call.1} parent=1 // pred_check_branch
      %106 = sbr.rel (0) target = $region49
    $region48: #{tpu_custom_call.1} parent=1 // pred_region
      %107 = dma.done [#allocation9], 64
    $region49: #{tpu_custom_call.1} parent=1 // pred_fallthru
      _
    // Predicated region
    $region50: #{tpu_custom_call.1} parent=1 // pred_check
      _
    $region51: #{tpu_custom_call.1} parent=1 // pred_check_branch
      %109 = sbr.rel (0) target = $region53
    $region52: #{tpu_custom_call.1} parent=1 // pred_region
      %110 = dma.done [#allocation12], 4096
    $region53: #{tpu_custom_call.1} parent=1 // pred_fallthru
      _
    // Predicated region
    $region54: #{tpu_custom_call.1} parent=1 // pred_check
      _
    $region55: #{tpu_custom_call.1} parent=1 // pred_check_branch
      %112 = sbr.rel (0) target = $region57
    $region56: #{tpu_custom_call.1} parent=1 // pred_region
      %113 = dma.done [#allocation12], 16
    $region57: #{tpu_custom_call.1} parent=1 // pred_fallthru
      _
    %v115 = vld [vmem:[#allocation2] sm:$0xff]
    %v116 = vld [vmem:[#allocation2 + $0x8] sm:$0xff]
    %v117 = vld [vmem:[#allocation2 + $0x10] sm:$0xff]
    %v118 = vld [vmem:[#allocation5] sm:$0xff]
    %v119 = vld [vmem:[#allocation5 + $0x8] sm:$0xff]
    %v120 = vld [vmem:[#allocation5 + $0x10] sm:$0xff]
    %v121 = vld [vmem:[#allocation5 + $0x18] sm:$0xff]
    %v122 = vld [vmem:[#allocation5 + $0x20] sm:$0xff]
    %v123 = vld [vmem:[#allocation5 + $0x28] sm:$0xff]
    %v124 = vld [vmem:[#allocation5 + $0x30] sm:$0xff]
    %v125 = vld [vmem:[#allocation5 + $0x38] sm:$0xff]
    %v126 = vld [vmem:[#allocation5 + $0x40] sm:$0xff]
    %v127 = vld [vmem:[#allocation5 + $0x48] sm:$0xff]
    %v128 = vld [vmem:[#allocation5 + $0x50] sm:$0xff]
    %v129 = vld [vmem:[#allocation5 + $0x58] sm:$0xff]
    %v130 = vld [vmem:[#allocation5 + $0x60] sm:$0xff]
    %v131 = vld [vmem:[#allocation5 + $0x68] sm:$0xff]
    %v132 = vld [vmem:[#allocation5 + $0x70] sm:$0xff]
    %v133 = vld [vmem:[#allocation5 + $0x78] sm:$0xff]
    %v134 = vld [vmem:[#allocation5 + $0x80] sm:$0xff]
    %v135 = vld [vmem:[#allocation5 + $0x88] sm:$0xff]
    %v136 = vld [vmem:[#allocation5 + $0x90] sm:$0xff]
    %v137 = vld [vmem:[#allocation5 + $0x98] sm:$0xff]
    %v138 = vld [vmem:[#allocation5 + $0xa0] sm:$0xff]
    %v139 = vld [vmem:[#allocation5 + $0xa8] sm:$0xff]
    %v140 = vld [vmem:[#allocation5 + $0xb0] sm:$0xff]
    %v141 = vld [vmem:[#allocation5 + $0xb8] sm:$0xff]
    %v142 = vld [vmem:[#allocation5 + $0xc0] sm:$0xff]
    %v143 = vld [vmem:[#allocation5 + $0xc8] sm:$0xff]
    %v144 = vld [vmem:[#allocation5 + $0xd0] sm:$0xff]
    %v145 = vld [vmem:[#allocation5 + $0xd8] sm:$0xff]
    %v146 = vld [vmem:[#allocation5 + $0xe0] sm:$0xff]
    %v147 = vld [vmem:[#allocation5 + $0xe8] sm:$0xff]
    %v148 = vld [vmem:[#allocation5 + $0xf0] sm:$0xff]
    %v149 = vld [vmem:[#allocation5 + $0xf8] sm:$0xff]
    %v150 = vld [vmem:[#allocation5 + $0x100] sm:$0xff]
    %v151 = vld [vmem:[#allocation5 + $0x108] sm:$0xff]
    %v152 = vld [vmem:[#allocation5 + $0x110] sm:$0xff]
    %v153 = vld [vmem:[#allocation5 + $0x118] sm:$0xff]
    %v154 = vld [vmem:[#allocation5 + $0x120] sm:$0xff]
    %v155 = vld [vmem:[#allocation5 + $0x128] sm:$0xff]
    %v156 = vld [vmem:[#allocation5 + $0x130] sm:$0xff]
    %v157 = vld [vmem:[#allocation5 + $0x138] sm:$0xff]
    %v158 = vld [vmem:[#allocation5 + $0x140] sm:$0xff]
    %v159 = vld [vmem:[#allocation5 + $0x148] sm:$0xff]
    %v160 = vld [vmem:[#allocation5 + $0x150] sm:$0xff]
    %v161 = vld [vmem:[#allocation5 + $0x158] sm:$0xff]
    %v162 = vld [vmem:[#allocation5 + $0x160] sm:$0xff]
    %v163 = vld [vmem:[#allocation5 + $0x168] sm:$0xff]
    %v164 = vld [vmem:[#allocation5 + $0x170] sm:$0xff]
    %v165 = vld [vmem:[#allocation5 + $0x178] sm:$0xff]
    %v166 = vld [vmem:[#allocation5 + $0x180] sm:$0xff]
    %v167 = vld [vmem:[#allocation5 + $0x188] sm:$0xff]
    %v168 = vld [vmem:[#allocation5 + $0x190] sm:$0xff]
    %v169 = vld [vmem:[#allocation5 + $0x198] sm:$0xff]
    %v170 = vld [vmem:[#allocation5 + $0x1a0] sm:$0xff]
    %v171 = vld [vmem:[#allocation5 + $0x1a8] sm:$0xff]
    %v172 = vld [vmem:[#allocation5 + $0x1b0] sm:$0xff]
    %v173 = vld [vmem:[#allocation5 + $0x1b8] sm:$0xff]
    %v174 = vld [vmem:[#allocation5 + $0x1c0] sm:$0xff]
    %v175 = vld [vmem:[#allocation5 + $0x1c8] sm:$0xff]
    %v176 = vld [vmem:[#allocation5 + $0x1d0] sm:$0xff]
    %v177 = vld [vmem:[#allocation5 + $0x1d8] sm:$0xff]
    %v178 = vld [vmem:[#allocation5 + $0x1e0] sm:$0xff]
    %v179 = vld [vmem:[#allocation5 + $0x1e8] sm:$0xff]
    %v180 = vld [vmem:[#allocation5 + $0x1f0] sm:$0xff]
    %v181 = vld [vmem:[#allocation5 + $0x1f8] sm:$0xff]
    %v182 = vld [vmem:[#allocation5 + $0x200] sm:$0xff]
    %v183 = vld [vmem:[#allocation5 + $0x208] sm:$0xff]
    %v184 = vld [vmem:[#allocation5 + $0x210] sm:$0xff]
    %v185 = vld [vmem:[#allocation5 + $0x218] sm:$0xff]
    %v186 = vld [vmem:[#allocation5 + $0x220] sm:$0xff]
    %v187 = vld [vmem:[#allocation5 + $0x228] sm:$0xff]
    %v188 = vld [vmem:[#allocation5 + $0x230] sm:$0xff]
    %v189 = vld [vmem:[#allocation5 + $0x238] sm:$0xff]
    %v190 = vld [vmem:[#allocation5 + $0x240] sm:$0xff]
    %v191 = vld [vmem:[#allocation5 + $0x248] sm:$0xff]
    %v192 = vld [vmem:[#allocation5 + $0x250] sm:$0xff]
    %v193 = vld [vmem:[#allocation5 + $0x258] sm:$0xff]
    %v194 = vld [vmem:[#allocation5 + $0x260] sm:$0xff]
    %v195 = vld [vmem:[#allocation5 + $0x268] sm:$0xff]
    %v196 = vld [vmem:[#allocation5 + $0x270] sm:$0xff]
    %v197 = vld [vmem:[#allocation5 + $0x278] sm:$0xff]
    %v198 = vld [vmem:[#allocation5 + $0x280] sm:$0xff]
    %v199 = vld [vmem:[#allocation5 + $0x288] sm:$0xff]
    %v200 = vld [vmem:[#allocation5 + $0x290] sm:$0xff]
    %v201 = vld [vmem:[#allocation5 + $0x298] sm:$0xff]
    %v202 = vld [vmem:[#allocation5 + $0x2a0] sm:$0xff]
    %v203 = vld [vmem:[#allocation5 + $0x2a8] sm:$0xff]
    %v204 = vld [vmem:[#allocation5 + $0x2b0] sm:$0xff]
    %v205 = vld [vmem:[#allocation5 + $0x2b8] sm:$0xff]
    %v206 = vld [vmem:[#allocation5 + $0x2c0] sm:$0xff]
    %v207 = vld [vmem:[#allocation5 + $0x2c8] sm:$0xff]
    %v208 = vld [vmem:[#allocation5 + $0x2d0] sm:$0xff]
    %v209 = vld [vmem:[#allocation5 + $0x2d8] sm:$0xff]
    %v210 = vld [vmem:[#allocation5 + $0x2e0] sm:$0xff]
    %v211 = vld [vmem:[#allocation5 + $0x2e8] sm:$0xff]
    %v212 = vld [vmem:[#allocation5 + $0x2f0] sm:$0xff]
    %v213 = vld [vmem:[#allocation5 + $0x2f8] sm:$0xff]
    %v214 = vld [vmem:[#allocation5 + $0x300] sm:$0xff]
    %v215 = vld [vmem:[#allocation5 + $0x308] sm:$0xff]
    %v216 = vld [vmem:[#allocation5 + $0x310] sm:$0xff]
    %v217 = vld [vmem:[#allocation5 + $0x318] sm:$0xff]
    %v218 = vld [vmem:[#allocation5 + $0x320] sm:$0xff]
    %v219 = vld [vmem:[#allocation5 + $0x328] sm:$0xff]
    %v220 = vld [vmem:[#allocation5 + $0x330] sm:$0xff]
    %v221 = vld [vmem:[#allocation5 + $0x338] sm:$0xff]
    %v222 = vld [vmem:[#allocation5 + $0x340] sm:$0xff]
    %v223 = vld [vmem:[#allocation5 + $0x348] sm:$0xff]
    %v224 = vld [vmem:[#allocation5 + $0x350] sm:$0xff]
    %v225 = vld [vmem:[#allocation5 + $0x358] sm:$0xff]
    %v226 = vld [vmem:[#allocation5 + $0x360] sm:$0xff]
    %v227 = vld [vmem:[#allocation5 + $0x368] sm:$0xff]
    %v228 = vld [vmem:[#allocation5 + $0x370] sm:$0xff]
    %v229 = vld [vmem:[#allocation5 + $0x378] sm:$0xff]
    %v230 = vld [vmem:[#allocation5 + $0x380] sm:$0xff]
    %v231 = vld [vmem:[#allocation5 + $0x388] sm:$0xff]
    %v232 = vld [vmem:[#allocation5 + $0x390] sm:$0xff]
    %v233 = vld [vmem:[#allocation5 + $0x398] sm:$0xff]
    %v234 = vld [vmem:[#allocation5 + $0x3a0] sm:$0xff]
    %v235 = vld [vmem:[#allocation5 + $0x3a8] sm:$0xff]
    %v236 = vld [vmem:[#allocation5 + $0x3b0] sm:$0xff]
    %v237 = vld [vmem:[#allocation5 + $0x3b8] sm:$0xff]
    %v238 = vld [vmem:[#allocation5 + $0x3c0] sm:$0xff]
    %v239 = vld [vmem:[#allocation5 + $0x3c8] sm:$0xff]
    %v240 = vld [vmem:[#allocation5 + $0x3d0] sm:$0xff]
    %v241 = vld [vmem:[#allocation5 + $0x3d8] sm:$0xff]
    %v242 = vld [vmem:[#allocation5 + $0x3e0] sm:$0xff]
    %v243 = vld [vmem:[#allocation5 + $0x3e8] sm:$0xff]
    %v244 = vld [vmem:[#allocation5 + $0x3f0] sm:$0xff]
    %v245 = vld [vmem:[#allocation5 + $0x3f8] sm:$0xff]
    %v246 = vld [vmem:[#allocation5 + $0x400] sm:$0xff]
    %v247 = vld [vmem:[#allocation5 + $0x408] sm:$0xff]
    %v248 = vld [vmem:[#allocation5 + $0x410] sm:$0xff]
    %v249 = vld [vmem:[#allocation5 + $0x418] sm:$0xff]
    %v250 = vld [vmem:[#allocation5 + $0x420] sm:$0xff]
    %v251 = vld [vmem:[#allocation5 + $0x428] sm:$0xff]
    %v252 = vld [vmem:[#allocation5 + $0x430] sm:$0xff]
    %v253 = vld [vmem:[#allocation5 + $0x438] sm:$0xff]
    %v254 = vld [vmem:[#allocation5 + $0x440] sm:$0xff]
    %v255 = vld [vmem:[#allocation5 + $0x448] sm:$0xff]
    %v256 = vld [vmem:[#allocation5 + $0x450] sm:$0xff]
    %v257 = vld [vmem:[#allocation5 + $0x458] sm:$0xff]
    %v258 = vld [vmem:[#allocation5 + $0x460] sm:$0xff]
    %v259 = vld [vmem:[#allocation5 + $0x468] sm:$0xff]
    %v260 = vld [vmem:[#allocation5 + $0x470] sm:$0xff]
    %v261 = vld [vmem:[#allocation5 + $0x478] sm:$0xff]
    %v262 = vld [vmem:[#allocation5 + $0x480] sm:$0xff]
    %v263 = vld [vmem:[#allocation5 + $0x488] sm:$0xff]
    %v264 = vld [vmem:[#allocation5 + $0x490] sm:$0xff]
    %v265 = vld [vmem:[#allocation5 + $0x498] sm:$0xff]
    %v266 = vld [vmem:[#allocation5 + $0x4a0] sm:$0xff]
    %v267 = vld [vmem:[#allocation5 + $0x4a8] sm:$0xff]
    %v268 = vld [vmem:[#allocation5 + $0x4b0] sm:$0xff]
    %v269 = vld [vmem:[#allocation5 + $0x4b8] sm:$0xff]
    %v270 = vld [vmem:[#allocation5 + $0x4c0] sm:$0xff]
    %v271 = vld [vmem:[#allocation5 + $0x4c8] sm:$0xff]
    %v272 = vld [vmem:[#allocation5 + $0x4d0] sm:$0xff]
    %v273 = vld [vmem:[#allocation5 + $0x4d8] sm:$0xff]
    %v274 = vld [vmem:[#allocation5 + $0x4e0] sm:$0xff]
    %v275 = vld [vmem:[#allocation5 + $0x4e8] sm:$0xff]
    %v276 = vld [vmem:[#allocation5 + $0x4f0] sm:$0xff]
    %v277 = vld [vmem:[#allocation5 + $0x4f8] sm:$0xff]
    %v278 = vld [vmem:[#allocation5 + $0x500] sm:$0xff]
    %v279 = vld [vmem:[#allocation5 + $0x508] sm:$0xff]
    %v280 = vld [vmem:[#allocation5 + $0x510] sm:$0xff]
    %v281 = vld [vmem:[#allocation5 + $0x518] sm:$0xff]
    %v282 = vld [vmem:[#allocation5 + $0x520] sm:$0xff]
    %v283 = vld [vmem:[#allocation5 + $0x528] sm:$0xff]
    %v284 = vld [vmem:[#allocation5 + $0x530] sm:$0xff]
    %v285 = vld [vmem:[#allocation5 + $0x538] sm:$0xff]
    %v286 = vld [vmem:[#allocation5 + $0x540] sm:$0xff]
    %v287 = vld [vmem:[#allocation5 + $0x548] sm:$0xff]
    %v288 = vld [vmem:[#allocation5 + $0x550] sm:$0xff]
    %v289 = vld [vmem:[#allocation5 + $0x558] sm:$0xff]
    %v290 = vld [vmem:[#allocation5 + $0x560] sm:$0xff]
    %v291 = vld [vmem:[#allocation5 + $0x568] sm:$0xff]
    %v292 = vld [vmem:[#allocation5 + $0x570] sm:$0xff]
    %v293 = vld [vmem:[#allocation5 + $0x578] sm:$0xff]
    %v294 = vld [vmem:[#allocation5 + $0x580] sm:$0xff]
    %v295 = vld [vmem:[#allocation5 + $0x588] sm:$0xff]
    %v296 = vld [vmem:[#allocation5 + $0x590] sm:$0xff]
    %v297 = vld [vmem:[#allocation5 + $0x598] sm:$0xff]
    %v298 = vld [vmem:[#allocation5 + $0x5a0] sm:$0xff]
    %v299 = vld [vmem:[#allocation5 + $0x5a8] sm:$0xff]
    %v300 = vld [vmem:[#allocation5 + $0x5b0] sm:$0xff]
    %v301 = vld [vmem:[#allocation5 + $0x5b8] sm:$0xff]
    %v302 = vld [vmem:[#allocation5 + $0x5c0] sm:$0xff]
    %v303 = vld [vmem:[#allocation5 + $0x5c8] sm:$0xff]
    %v304 = vld [vmem:[#allocation5 + $0x5d0] sm:$0xff]
    %v305 = vld [vmem:[#allocation5 + $0x5d8] sm:$0xff]
    %v306 = vld [vmem:[#allocation5 + $0x5e0] sm:$0xff]
    %v307 = vld [vmem:[#allocation5 + $0x5e8] sm:$0xff]
    %v308 = vld [vmem:[#allocation5 + $0x5f0] sm:$0xff]
    %v309 = vld [vmem:[#allocation5 + $0x5f8] sm:$0xff]
    %v310 = vld [vmem:[#allocation5 + $0x600] sm:$0xff]
    %v311 = vld [vmem:[#allocation5 + $0x608] sm:$0xff]
    %v312 = vld [vmem:[#allocation5 + $0x610] sm:$0xff]
    %v313 = vld [vmem:[#allocation5 + $0x618] sm:$0xff]
    %v314 = vld [vmem:[#allocation5 + $0x620] sm:$0xff]
    %v315 = vld [vmem:[#allocation5 + $0x628] sm:$0xff]
    %v316 = vld [vmem:[#allocation5 + $0x630] sm:$0xff]
    %v317 = vld [vmem:[#allocation5 + $0x638] sm:$0xff]
    %v318 = vld [vmem:[#allocation5 + $0x640] sm:$0xff]
    %v319 = vld [vmem:[#allocation5 + $0x648] sm:$0xff]
    %v320 = vld [vmem:[#allocation5 + $0x650] sm:$0xff]
    %v321 = vld [vmem:[#allocation5 + $0x658] sm:$0xff]
    %v322 = vld [vmem:[#allocation5 + $0x660] sm:$0xff]
    %v323 = vld [vmem:[#allocation5 + $0x668] sm:$0xff]
    %v324 = vld [vmem:[#allocation5 + $0x670] sm:$0xff]
    %v325 = vld [vmem:[#allocation5 + $0x678] sm:$0xff]
    %v326 = vld [vmem:[#allocation5 + $0x680] sm:$0xff]
    %v327 = vld [vmem:[#allocation5 + $0x688] sm:$0xff]
    %v328 = vld [vmem:[#allocation5 + $0x690] sm:$0xff]
    %v329 = vld [vmem:[#allocation5 + $0x698] sm:$0xff]
    %v330 = vld [vmem:[#allocation5 + $0x6a0] sm:$0xff]
    %v331 = vld [vmem:[#allocation5 + $0x6a8] sm:$0xff]
    %v332 = vld [vmem:[#allocation5 + $0x6b0] sm:$0xff]
    %v333 = vld [vmem:[#allocation5 + $0x6b8] sm:$0xff]
    %v334 = vld [vmem:[#allocation5 + $0x6c0] sm:$0xff]
    %v335 = vld [vmem:[#allocation5 + $0x6c8] sm:$0xff]
    %v336 = vld [vmem:[#allocation5 + $0x6d0] sm:$0xff]
    %v337 = vld [vmem:[#allocation5 + $0x6d8] sm:$0xff]
    %v338 = vld [vmem:[#allocation5 + $0x6e0] sm:$0xff]
    %v339 = vld [vmem:[#allocation5 + $0x6e8] sm:$0xff]
    %v340 = vld [vmem:[#allocation5 + $0x6f0] sm:$0xff]
    %v341 = vld [vmem:[#allocation5 + $0x6f8] sm:$0xff]
    %v342 = vld [vmem:[#allocation5 + $0x700] sm:$0xff]
    %v343 = vld [vmem:[#allocation5 + $0x708] sm:$0xff]
    %v344 = vld [vmem:[#allocation5 + $0x710] sm:$0xff]
    %v345 = vld [vmem:[#allocation5 + $0x718] sm:$0xff]
    %v346 = vld [vmem:[#allocation5 + $0x720] sm:$0xff]
    %v347 = vld [vmem:[#allocation5 + $0x728] sm:$0xff]
    %v348 = vld [vmem:[#allocation5 + $0x730] sm:$0xff]
    %v349 = vld [vmem:[#allocation5 + $0x738] sm:$0xff]
    %v350 = vld [vmem:[#allocation5 + $0x740] sm:$0xff]
    %v351 = vld [vmem:[#allocation5 + $0x748] sm:$0xff]
    %v352 = vld [vmem:[#allocation5 + $0x750] sm:$0xff]
    %v353 = vld [vmem:[#allocation5 + $0x758] sm:$0xff]
    %v354 = vld [vmem:[#allocation5 + $0x760] sm:$0xff]
    %v355 = vld [vmem:[#allocation5 + $0x768] sm:$0xff]
    %v356 = vld [vmem:[#allocation5 + $0x770] sm:$0xff]
    %v357 = vld [vmem:[#allocation5 + $0x778] sm:$0xff]
    %v358 = vld [vmem:[#allocation5 + $0x780] sm:$0xff]
    %v359 = vld [vmem:[#allocation5 + $0x788] sm:$0xff]
    %v360 = vld [vmem:[#allocation5 + $0x790] sm:$0xff]
    %v361 = vld [vmem:[#allocation5 + $0x798] sm:$0xff]
    %v362 = vld [vmem:[#allocation5 + $0x7a0] sm:$0xff]
    %v363 = vld [vmem:[#allocation5 + $0x7a8] sm:$0xff]
    %v364 = vld [vmem:[#allocation5 + $0x7b0] sm:$0xff]
    %v365 = vld [vmem:[#allocation5 + $0x7b8] sm:$0xff]
    %v366 = vld [vmem:[#allocation5 + $0x7c0] sm:$0xff]
    %v367 = vld [vmem:[#allocation5 + $0x7c8] sm:$0xff]
    %v368 = vld [vmem:[#allocation5 + $0x7d0] sm:$0xff]
    %v369 = vld [vmem:[#allocation5 + $0x7d8] sm:$0xff]
    %v370 = vld [vmem:[#allocation5 + $0x7e0] sm:$0xff]
    %v371 = vld [vmem:[#allocation5 + $0x7e8] sm:$0xff]
    %v372 = vld [vmem:[#allocation5 + $0x7f0] sm:$0xff]
    %v373 = vld [vmem:[#allocation5 + $0x7f8] sm:$0xff]
    %v374 = vld [vmem:[#allocation5 + $0x800] sm:$0xff]
    %v375 = vld [vmem:[#allocation5 + $0x808] sm:$0xff]
    %v376 = vld [vmem:[#allocation5 + $0x810] sm:$0xff]
    %v377 = vld [vmem:[#allocation5 + $0x818] sm:$0xff]
    %v378 = vld [vmem:[#allocation5 + $0x820] sm:$0xff]
    %v379 = vld [vmem:[#allocation5 + $0x828] sm:$0xff]
    %v380 = vld [vmem:[#allocation5 + $0x830] sm:$0xff]
    %v381 = vld [vmem:[#allocation5 + $0x838] sm:$0xff]
    %v382 = vld [vmem:[#allocation5 + $0x840] sm:$0xff]
    %v383 = vld [vmem:[#allocation5 + $0x848] sm:$0xff]
    %v384 = vld [vmem:[#allocation5 + $0x850] sm:$0xff]
    %v385 = vld [vmem:[#allocation5 + $0x858] sm:$0xff]
    %v386 = vld [vmem:[#allocation5 + $0x860] sm:$0xff]
    %v387 = vld [vmem:[#allocation5 + $0x868] sm:$0xff]
    %v388 = vld [vmem:[#allocation5 + $0x870] sm:$0xff]
    %v389 = vld [vmem:[#allocation5 + $0x878] sm:$0xff]
    %v390 = vld [vmem:[#allocation5 + $0x880] sm:$0xff]
    %v391 = vld [vmem:[#allocation5 + $0x888] sm:$0xff]
    %v392 = vld [vmem:[#allocation5 + $0x890] sm:$0xff]
    %v393 = vld [vmem:[#allocation5 + $0x898] sm:$0xff]
    %v394 = vld [vmem:[#allocation5 + $0x8a0] sm:$0xff]
    %v395 = vld [vmem:[#allocation5 + $0x8a8] sm:$0xff]
    %v396 = vld [vmem:[#allocation5 + $0x8b0] sm:$0xff]
    %v397 = vld [vmem:[#allocation5 + $0x8b8] sm:$0xff]
    %v398 = vld [vmem:[#allocation5 + $0x8c0] sm:$0xff]
    %v399 = vld [vmem:[#allocation5 + $0x8c8] sm:$0xff]
    %v400 = vld [vmem:[#allocation5 + $0x8d0] sm:$0xff]
    %v401 = vld [vmem:[#allocation5 + $0x8d8] sm:$0xff]
    %v402 = vld [vmem:[#allocation5 + $0x8e0] sm:$0xff]
    %v403 = vld [vmem:[#allocation5 + $0x8e8] sm:$0xff]
    %v404 = vld [vmem:[#allocation5 + $0x8f0] sm:$0xff]
    %v405 = vld [vmem:[#allocation5 + $0x8f8] sm:$0xff]
    %v406 = vld [vmem:[#allocation7] sm:$0x3f]
    %v408 = vlaneseq
    %v409 = vshrl.u32 %v408, 7
    %v410 = vsub.s32 0, %v409
    %v411 = vrot.slane %v406, %v410
    %v412 = vlaneseq
    %v413 = vshrl.u32 %v412, 7
    %v414 = vsub.s32 1, %v413
    %v415 = vrot.slane %v406, %v414
    %v416 = vlaneseq
    %v417 = vshrl.u32 %v416, 7
    %v418 = vsub.s32 2, %v417
    %v419 = vrot.slane %v406, %v418
    %v420 = vlaneseq
    %v421 = vshrl.u32 %v420, 7
    %v422 = vsub.s32 3, %v421
    %v423 = vrot.slane %v406, %v422
    %v424 = vlaneseq
    %v425 = vshrl.u32 %v424, 7
    %v426 = vsub.s32 4, %v425
    %v427 = vrot.slane %v406, %v426
    %v428 = vlaneseq
    %v429 = vshrl.u32 %v428, 7
    %v430 = vsub.s32 5, %v429
    %v431 = vrot.slane %v406, %v430
    %v441 = vunpack.c.l.b16 %v115
    %v442 = vunpack.c.h.b16 %v115
    %v443 = vunpack.c.l.b16 %v116
    %v444 = vunpack.c.h.b16 %v116
    %v445 = vunpack.c.l.b16 %v117
    %v446 = vunpack.c.h.b16 %v117
    %v447 = vpack.c.b16 %v441, %v441
    %v448 = vpack.c.b16 %v442, %v442
    %v449 = vpack.c.b16 %v443, %v443
    %v450 = vpack.c.b16 %v444, %v444
    %v451 = vpack.c.b16 %v445, %v445
    %v452 = vpack.c.b16 %v446, %v446
    %v747 = vunpack.c.l.b16 %v118
    %v748 = vunpack.c.h.b16 %v118
    %v749 = vunpack.c.l.b16 %v119
    %v750 = vunpack.c.h.b16 %v119
    %v751 = vunpack.c.l.b16 %v120
    %v752 = vunpack.c.h.b16 %v120
    %v753 = vunpack.c.l.b16 %v121
    %v754 = vunpack.c.h.b16 %v121
    %v755 = vunpack.c.l.b16 %v122
    %v756 = vunpack.c.h.b16 %v122
    %v757 = vunpack.c.l.b16 %v123
    %v758 = vunpack.c.h.b16 %v123
    %v759 = vunpack.c.l.b16 %v124
    %v760 = vunpack.c.h.b16 %v124
    %v761 = vunpack.c.l.b16 %v125
    %v762 = vunpack.c.h.b16 %v125
    %v763 = vunpack.c.l.b16 %v126
    %v764 = vunpack.c.h.b16 %v126
    %v765 = vunpack.c.l.b16 %v127
    %v766 = vunpack.c.h.b16 %v127
    %v767 = vunpack.c.l.b16 %v128
    %v768 = vunpack.c.h.b16 %v128
    %v769 = vunpack.c.l.b16 %v129
    %v770 = vunpack.c.h.b16 %v129
    %v771 = vunpack.c.l.b16 %v130
    %v772 = vunpack.c.h.b16 %v130
    %v773 = vunpack.c.l.b16 %v131
    %v774 = vunpack.c.h.b16 %v131
    %v775 = vunpack.c.l.b16 %v132
    %v776 = vunpack.c.h.b16 %v132
    %v777 = vunpack.c.l.b16 %v133
    %v778 = vunpack.c.h.b16 %v133
    %v779 = vunpack.c.l.b16 %v134
    %v780 = vunpack.c.h.b16 %v134
    %v781 = vunpack.c.l.b16 %v135
    %v782 = vunpack.c.h.b16 %v135
    %v783 = vunpack.c.l.b16 %v136
    %v784 = vunpack.c.h.b16 %v136
    %v785 = vunpack.c.l.b16 %v137
    %v786 = vunpack.c.h.b16 %v137
    %v787 = vunpack.c.l.b16 %v138
    %v788 = vunpack.c.h.b16 %v138
    %v789 = vunpack.c.l.b16 %v139
    %v790 = vunpack.c.h.b16 %v139
    %v791 = vunpack.c.l.b16 %v140
    %v792 = vunpack.c.h.b16 %v140
    %v793 = vunpack.c.l.b16 %v141
    %v794 = vunpack.c.h.b16 %v141
    %v795 = vunpack.c.l.b16 %v142
    %v796 = vunpack.c.h.b16 %v142
    %v797 = vunpack.c.l.b16 %v143
    %v798 = vunpack.c.h.b16 %v143
    %v799 = vunpack.c.l.b16 %v144
    %v800 = vunpack.c.h.b16 %v144
    %v801 = vunpack.c.l.b16 %v145
    %v802 = vunpack.c.h.b16 %v145
    %v803 = vunpack.c.l.b16 %v146
    %v804 = vunpack.c.h.b16 %v146
    %v805 = vunpack.c.l.b16 %v147
    %v806 = vunpack.c.h.b16 %v147
    %v807 = vunpack.c.l.b16 %v148
    %v808 = vunpack.c.h.b16 %v148
    %v809 = vunpack.c.l.b16 %v149
    %v810 = vunpack.c.h.b16 %v149
    %v811 = vunpack.c.l.b16 %v150
    %v812 = vunpack.c.h.b16 %v150
    %v813 = vunpack.c.l.b16 %v151
    %v814 = vunpack.c.h.b16 %v151
    %v815 = vunpack.c.l.b16 %v152
    %v816 = vunpack.c.h.b16 %v152
    %v817 = vunpack.c.l.b16 %v153
    %v818 = vunpack.c.h.b16 %v153
    %v819 = vunpack.c.l.b16 %v154
    %v820 = vunpack.c.h.b16 %v154
    %v821 = vunpack.c.l.b16 %v155
    %v822 = vunpack.c.h.b16 %v155
    %v823 = vunpack.c.l.b16 %v156
    %v824 = vunpack.c.h.b16 %v156
    %v825 = vunpack.c.l.b16 %v157
    %v826 = vunpack.c.h.b16 %v157
    %v827 = vunpack.c.l.b16 %v158
    %v828 = vunpack.c.h.b16 %v158
    %v829 = vunpack.c.l.b16 %v159
    %v830 = vunpack.c.h.b16 %v159
    %v831 = vunpack.c.l.b16 %v160
    %v832 = vunpack.c.h.b16 %v160
    %v833 = vunpack.c.l.b16 %v161
    %v834 = vunpack.c.h.b16 %v161
    %v835 = vunpack.c.l.b16 %v162
    %v836 = vunpack.c.h.b16 %v162
    %v837 = vunpack.c.l.b16 %v163
    %v838 = vunpack.c.h.b16 %v163
    %v839 = vunpack.c.l.b16 %v164
    %v840 = vunpack.c.h.b16 %v164
    %v841 = vunpack.c.l.b16 %v165
    %v842 = vunpack.c.h.b16 %v165
    %v843 = vunpack.c.l.b16 %v166
    %v844 = vunpack.c.h.b16 %v166
    %v845 = vunpack.c.l.b16 %v167
    %v846 = vunpack.c.h.b16 %v167
    %v847 = vunpack.c.l.b16 %v168
    %v848 = vunpack.c.h.b16 %v168
    %v849 = vunpack.c.l.b16 %v169
    %v850 = vunpack.c.h.b16 %v169
    %v851 = vunpack.c.l.b16 %v170
    %v852 = vunpack.c.h.b16 %v170
    %v853 = vunpack.c.l.b16 %v171
    %v854 = vunpack.c.h.b16 %v171
    %v855 = vunpack.c.l.b16 %v172
    %v856 = vunpack.c.h.b16 %v172
    %v857 = vunpack.c.l.b16 %v173
    %v858 = vunpack.c.h.b16 %v173
    %v859 = vunpack.c.l.b16 %v174
    %v860 = vunpack.c.h.b16 %v174
    %v861 = vunpack.c.l.b16 %v175
    %v862 = vunpack.c.h.b16 %v175
    %v863 = vunpack.c.l.b16 %v176
    %v864 = vunpack.c.h.b16 %v176
    %v865 = vunpack.c.l.b16 %v177
    %v866 = vunpack.c.h.b16 %v177
    %v867 = vunpack.c.l.b16 %v178
    %v868 = vunpack.c.h.b16 %v178
    %v869 = vunpack.c.l.b16 %v179
    %v870 = vunpack.c.h.b16 %v179
    %v871 = vunpack.c.l.b16 %v180
    %v872 = vunpack.c.h.b16 %v180
    %v873 = vunpack.c.l.b16 %v181
    %v874 = vunpack.c.h.b16 %v181
    %v875 = vunpack.c.l.b16 %v182
    %v876 = vunpack.c.h.b16 %v182
    %v877 = vunpack.c.l.b16 %v183
    %v878 = vunpack.c.h.b16 %v183
    %v879 = vunpack.c.l.b16 %v184
    %v880 = vunpack.c.h.b16 %v184
    %v881 = vunpack.c.l.b16 %v185
    %v882 = vunpack.c.h.b16 %v185
    %v883 = vunpack.c.l.b16 %v186
    %v884 = vunpack.c.h.b16 %v186
    %v885 = vunpack.c.l.b16 %v187
    %v886 = vunpack.c.h.b16 %v187
    %v887 = vunpack.c.l.b16 %v188
    %v888 = vunpack.c.h.b16 %v188
    %v889 = vunpack.c.l.b16 %v189
    %v890 = vunpack.c.h.b16 %v189
    %v891 = vunpack.c.l.b16 %v190
    %v892 = vunpack.c.h.b16 %v190
    %v893 = vunpack.c.l.b16 %v191
    %v894 = vunpack.c.h.b16 %v191
    %v895 = vunpack.c.l.b16 %v192
    %v896 = vunpack.c.h.b16 %v192
    %v897 = vunpack.c.l.b16 %v193
    %v898 = vunpack.c.h.b16 %v193
    %v899 = vunpack.c.l.b16 %v194
    %v900 = vunpack.c.h.b16 %v194
    %v901 = vunpack.c.l.b16 %v195
    %v902 = vunpack.c.h.b16 %v195
    %v903 = vunpack.c.l.b16 %v196
    %v904 = vunpack.c.h.b16 %v196
    %v905 = vunpack.c.l.b16 %v197
    %v906 = vunpack.c.h.b16 %v197
    %v907 = vunpack.c.l.b16 %v198
    %v908 = vunpack.c.h.b16 %v198
    %v909 = vunpack.c.l.b16 %v199
    %v910 = vunpack.c.h.b16 %v199
    %v911 = vunpack.c.l.b16 %v200
    %v912 = vunpack.c.h.b16 %v200
    %v913 = vunpack.c.l.b16 %v201
    %v914 = vunpack.c.h.b16 %v201
    %v915 = vunpack.c.l.b16 %v202
    %v916 = vunpack.c.h.b16 %v202
    %v917 = vunpack.c.l.b16 %v203
    %v918 = vunpack.c.h.b16 %v203
    %v919 = vunpack.c.l.b16 %v204
    %v920 = vunpack.c.h.b16 %v204
    %v921 = vunpack.c.l.b16 %v205
    %v922 = vunpack.c.h.b16 %v205
    %v923 = vunpack.c.l.b16 %v206
    %v924 = vunpack.c.h.b16 %v206
    %v925 = vunpack.c.l.b16 %v207
    %v926 = vunpack.c.h.b16 %v207
    %v927 = vunpack.c.l.b16 %v208
    %v928 = vunpack.c.h.b16 %v208
    %v929 = vunpack.c.l.b16 %v209
    %v930 = vunpack.c.h.b16 %v209
    %v931 = vunpack.c.l.b16 %v210
    %v932 = vunpack.c.h.b16 %v210
    %v933 = vunpack.c.l.b16 %v211
    %v934 = vunpack.c.h.b16 %v211
    %v935 = vunpack.c.l.b16 %v212
    %v936 = vunpack.c.h.b16 %v212
    %v937 = vunpack.c.l.b16 %v213
    %v938 = vunpack.c.h.b16 %v213
    %v939 = vunpack.c.l.b16 %v214
    %v940 = vunpack.c.h.b16 %v214
    %v941 = vunpack.c.l.b16 %v215
    %v942 = vunpack.c.h.b16 %v215
    %v943 = vunpack.c.l.b16 %v216
    %v944 = vunpack.c.h.b16 %v216
    %v945 = vunpack.c.l.b16 %v217
    %v946 = vunpack.c.h.b16 %v217
    %v947 = vunpack.c.l.b16 %v218
    %v948 = vunpack.c.h.b16 %v218
    %v949 = vunpack.c.l.b16 %v219
    %v950 = vunpack.c.h.b16 %v219
    %v951 = vunpack.c.l.b16 %v220
    %v952 = vunpack.c.h.b16 %v220
    %v953 = vunpack.c.l.b16 %v221
    %v954 = vunpack.c.h.b16 %v221
    %v955 = vunpack.c.l.b16 %v222
    %v956 = vunpack.c.h.b16 %v222
    %v957 = vunpack.c.l.b16 %v223
    %v958 = vunpack.c.h.b16 %v223
    %v959 = vunpack.c.l.b16 %v224
    %v960 = vunpack.c.h.b16 %v224
    %v961 = vunpack.c.l.b16 %v225
    %v962 = vunpack.c.h.b16 %v225
    %v963 = vunpack.c.l.b16 %v226
    %v964 = vunpack.c.h.b16 %v226
    %v965 = vunpack.c.l.b16 %v227
    %v966 = vunpack.c.h.b16 %v227
    %v967 = vunpack.c.l.b16 %v228
    %v968 = vunpack.c.h.b16 %v228
    %v969 = vunpack.c.l.b16 %v229
    %v970 = vunpack.c.h.b16 %v229
    %v971 = vunpack.c.l.b16 %v230
    %v972 = vunpack.c.h.b16 %v230
    %v973 = vunpack.c.l.b16 %v231
    %v974 = vunpack.c.h.b16 %v231
    %v975 = vunpack.c.l.b16 %v232
    %v976 = vunpack.c.h.b16 %v232
    %v977 = vunpack.c.l.b16 %v233
    %v978 = vunpack.c.h.b16 %v233
    %v979 = vunpack.c.l.b16 %v234
    %v980 = vunpack.c.h.b16 %v234
    %v981 = vunpack.c.l.b16 %v235
    %v982 = vunpack.c.h.b16 %v235
    %v983 = vunpack.c.l.b16 %v236
    %v984 = vunpack.c.h.b16 %v236
    %v985 = vunpack.c.l.b16 %v237
    %v986 = vunpack.c.h.b16 %v237
    %v987 = vunpack.c.l.b16 %v238
    %v988 = vunpack.c.h.b16 %v238
    %v989 = vunpack.c.l.b16 %v239
    %v990 = vunpack.c.h.b16 %v239
    %v991 = vunpack.c.l.b16 %v240
    %v992 = vunpack.c.h.b16 %v240
    %v993 = vunpack.c.l.b16 %v241
    %v994 = vunpack.c.h.b16 %v241
    %v995 = vunpack.c.l.b16 %v242
    %v996 = vunpack.c.h.b16 %v242
    %v997 = vunpack.c.l.b16 %v243
    %v998 = vunpack.c.h.b16 %v243
    %v999 = vunpack.c.l.b16 %v244
    %v1000 = vunpack.c.h.b16 %v244
    %v1001 = vunpack.c.l.b16 %v245
    %v1002 = vunpack.c.h.b16 %v245
    %v1003 = vunpack.c.l.b16 %v246
    %v1004 = vunpack.c.h.b16 %v246
    %v1005 = vunpack.c.l.b16 %v247
    %v1006 = vunpack.c.h.b16 %v247
    %v1007 = vunpack.c.l.b16 %v248
    %v1008 = vunpack.c.h.b16 %v248
    %v1009 = vunpack.c.l.b16 %v249
    %v1010 = vunpack.c.h.b16 %v249
    %v1011 = vunpack.c.l.b16 %v250
    %v1012 = vunpack.c.h.b16 %v250
    %v1013 = vunpack.c.l.b16 %v251
    %v1014 = vunpack.c.h.b16 %v251
    %v1015 = vunpack.c.l.b16 %v252
    %v1016 = vunpack.c.h.b16 %v252
    %v1017 = vunpack.c.l.b16 %v253
    %v1018 = vunpack.c.h.b16 %v253
    %v1019 = vunpack.c.l.b16 %v254
    %v1020 = vunpack.c.h.b16 %v254
    %v1021 = vunpack.c.l.b16 %v255
    %v1022 = vunpack.c.h.b16 %v255
    %v1023 = vunpack.c.l.b16 %v256
    %v1024 = vunpack.c.h.b16 %v256
    %v1025 = vunpack.c.l.b16 %v257
    %v1026 = vunpack.c.h.b16 %v257
    %v1027 = vunpack.c.l.b16 %v258
    %v1028 = vunpack.c.h.b16 %v258
    %v1029 = vunpack.c.l.b16 %v259
    %v1030 = vunpack.c.h.b16 %v259
    %v1031 = vunpack.c.l.b16 %v260
    %v1032 = vunpack.c.h.b16 %v260
    %v1033 = vunpack.c.l.b16 %v261
    %v1034 = vunpack.c.h.b16 %v261
    %v1035 = vunpack.c.l.b16 %v262
    %v1036 = vunpack.c.h.b16 %v262
    %v1037 = vunpack.c.l.b16 %v263
    %v1038 = vunpack.c.h.b16 %v263
    %v1039 = vunpack.c.l.b16 %v264
    %v1040 = vunpack.c.h.b16 %v264
    %v1041 = vunpack.c.l.b16 %v265
    %v1042 = vunpack.c.h.b16 %v265
    %v1043 = vunpack.c.l.b16 %v266
    %v1044 = vunpack.c.h.b16 %v266
    %v1045 = vunpack.c.l.b16 %v267
    %v1046 = vunpack.c.h.b16 %v267
    %v1047 = vunpack.c.l.b16 %v268
    %v1048 = vunpack.c.h.b16 %v268
    %v1049 = vunpack.c.l.b16 %v269
    %v1050 = vunpack.c.h.b16 %v269
    %v1051 = vunpack.c.l.b16 %v270
    %v1052 = vunpack.c.h.b16 %v270
    %v1053 = vunpack.c.l.b16 %v271
    %v1054 = vunpack.c.h.b16 %v271
    %v1055 = vunpack.c.l.b16 %v272
    %v1056 = vunpack.c.h.b16 %v272
    %v1057 = vunpack.c.l.b16 %v273
    %v1058 = vunpack.c.h.b16 %v273
    %v1059 = vunpack.c.l.b16 %v274
    %v1060 = vunpack.c.h.b16 %v274
    %v1061 = vunpack.c.l.b16 %v275
    %v1062 = vunpack.c.h.b16 %v275
    %v1063 = vunpack.c.l.b16 %v276
    %v1064 = vunpack.c.h.b16 %v276
    %v1065 = vunpack.c.l.b16 %v277
    %v1066 = vunpack.c.h.b16 %v277
    %v1067 = vunpack.c.l.b16 %v278
    %v1068 = vunpack.c.h.b16 %v278
    %v1069 = vunpack.c.l.b16 %v279
    %v1070 = vunpack.c.h.b16 %v279
    %v1071 = vunpack.c.l.b16 %v280
    %v1072 = vunpack.c.h.b16 %v280
    %v1073 = vunpack.c.l.b16 %v281
    %v1074 = vunpack.c.h.b16 %v281
    %v1075 = vunpack.c.l.b16 %v282
    %v1076 = vunpack.c.h.b16 %v282
    %v1077 = vunpack.c.l.b16 %v283
    %v1078 = vunpack.c.h.b16 %v283
    %v1079 = vunpack.c.l.b16 %v284
    %v1080 = vunpack.c.h.b16 %v284
    %v1081 = vunpack.c.l.b16 %v285
    %v1082 = vunpack.c.h.b16 %v285
    %v1083 = vunpack.c.l.b16 %v286
    %v1084 = vunpack.c.h.b16 %v286
    %v1085 = vunpack.c.l.b16 %v287
    %v1086 = vunpack.c.h.b16 %v287
    %v1087 = vunpack.c.l.b16 %v288
    %v1088 = vunpack.c.h.b16 %v288
    %v1089 = vunpack.c.l.b16 %v289
    %v1090 = vunpack.c.h.b16 %v289
    %v1091 = vunpack.c.l.b16 %v290
    %v1092 = vunpack.c.h.b16 %v290
    %v1093 = vunpack.c.l.b16 %v291
    %v1094 = vunpack.c.h.b16 %v291
    %v1095 = vunpack.c.l.b16 %v292
    %v1096 = vunpack.c.h.b16 %v292
    %v1097 = vunpack.c.l.b16 %v293
    %v1098 = vunpack.c.h.b16 %v293
    %v1099 = vunpack.c.l.b16 %v294
    %v1100 = vunpack.c.h.b16 %v294
    %v1101 = vunpack.c.l.b16 %v295
    %v1102 = vunpack.c.h.b16 %v295
    %v1103 = vunpack.c.l.b16 %v296
    %v1104 = vunpack.c.h.b16 %v296
    %v1105 = vunpack.c.l.b16 %v297
    %v1106 = vunpack.c.h.b16 %v297
    %v1107 = vunpack.c.l.b16 %v298
    %v1108 = vunpack.c.h.b16 %v298
    %v1109 = vunpack.c.l.b16 %v299
    %v1110 = vunpack.c.h.b16 %v299
    %v1111 = vunpack.c.l.b16 %v300
    %v1112 = vunpack.c.h.b16 %v300
    %v1113 = vunpack.c.l.b16 %v301
    %v1114 = vunpack.c.h.b16 %v301
    %v1115 = vunpack.c.l.b16 %v302
    %v1116 = vunpack.c.h.b16 %v302
    %v1117 = vunpack.c.l.b16 %v303
    %v1118 = vunpack.c.h.b16 %v303
    %v1119 = vunpack.c.l.b16 %v304
    %v1120 = vunpack.c.h.b16 %v304
    %v1121 = vunpack.c.l.b16 %v305
    %v1122 = vunpack.c.h.b16 %v305
    %v1123 = vunpack.c.l.b16 %v306
    %v1124 = vunpack.c.h.b16 %v306
    %v1125 = vunpack.c.l.b16 %v307
    %v1126 = vunpack.c.h.b16 %v307
    %v1127 = vunpack.c.l.b16 %v308
    %v1128 = vunpack.c.h.b16 %v308
    %v1129 = vunpack.c.l.b16 %v309
    %v1130 = vunpack.c.h.b16 %v309
    %v1131 = vunpack.c.l.b16 %v310
    %v1132 = vunpack.c.h.b16 %v310
    %v1133 = vunpack.c.l.b16 %v311
    %v1134 = vunpack.c.h.b16 %v311
    %v1135 = vunpack.c.l.b16 %v312
    %v1136 = vunpack.c.h.b16 %v312
    %v1137 = vunpack.c.l.b16 %v313
    %v1138 = vunpack.c.h.b16 %v313
    %v1139 = vunpack.c.l.b16 %v314
    %v1140 = vunpack.c.h.b16 %v314
    %v1141 = vunpack.c.l.b16 %v315
    %v1142 = vunpack.c.h.b16 %v315
    %v1143 = vunpack.c.l.b16 %v316
    %v1144 = vunpack.c.h.b16 %v316
    %v1145 = vunpack.c.l.b16 %v317
    %v1146 = vunpack.c.h.b16 %v317
    %v1147 = vunpack.c.l.b16 %v318
    %v1148 = vunpack.c.h.b16 %v318
    %v1149 = vunpack.c.l.b16 %v319
    %v1150 = vunpack.c.h.b16 %v319
    %v1151 = vunpack.c.l.b16 %v320
    %v1152 = vunpack.c.h.b16 %v320
    %v1153 = vunpack.c.l.b16 %v321
    %v1154 = vunpack.c.h.b16 %v321
    %v1155 = vunpack.c.l.b16 %v322
    %v1156 = vunpack.c.h.b16 %v322
    %v1157 = vunpack.c.l.b16 %v323
    %v1158 = vunpack.c.h.b16 %v323
    %v1159 = vunpack.c.l.b16 %v324
    %v1160 = vunpack.c.h.b16 %v324
    %v1161 = vunpack.c.l.b16 %v325
    %v1162 = vunpack.c.h.b16 %v325
    %v1163 = vunpack.c.l.b16 %v326
    %v1164 = vunpack.c.h.b16 %v326
    %v1165 = vunpack.c.l.b16 %v327
    %v1166 = vunpack.c.h.b16 %v327
    %v1167 = vunpack.c.l.b16 %v328
    %v1168 = vunpack.c.h.b16 %v328
    %v1169 = vunpack.c.l.b16 %v329
    %v1170 = vunpack.c.h.b16 %v329
    %v1171 = vunpack.c.l.b16 %v330
    %v1172 = vunpack.c.h.b16 %v330
    %v1173 = vunpack.c.l.b16 %v331
    %v1174 = vunpack.c.h.b16 %v331
    %v1175 = vunpack.c.l.b16 %v332
    %v1176 = vunpack.c.h.b16 %v332
    %v1177 = vunpack.c.l.b16 %v333
    %v1178 = vunpack.c.h.b16 %v333
    %v1179 = vunpack.c.l.b16 %v334
    %v1180 = vunpack.c.h.b16 %v334
    %v1181 = vunpack.c.l.b16 %v335
    %v1182 = vunpack.c.h.b16 %v335
    %v1183 = vunpack.c.l.b16 %v336
    %v1184 = vunpack.c.h.b16 %v336
    %v1185 = vunpack.c.l.b16 %v337
    %v1186 = vunpack.c.h.b16 %v337
    %v1187 = vunpack.c.l.b16 %v338
    %v1188 = vunpack.c.h.b16 %v338
    %v1189 = vunpack.c.l.b16 %v339
    %v1190 = vunpack.c.h.b16 %v339
    %v1191 = vunpack.c.l.b16 %v340
    %v1192 = vunpack.c.h.b16 %v340
    %v1193 = vunpack.c.l.b16 %v341
    %v1194 = vunpack.c.h.b16 %v341
    %v1195 = vunpack.c.l.b16 %v342
    %v1196 = vunpack.c.h.b16 %v342
    %v1197 = vunpack.c.l.b16 %v343
    %v1198 = vunpack.c.h.b16 %v343
    %v1199 = vunpack.c.l.b16 %v344
    %v1200 = vunpack.c.h.b16 %v344
    %v1201 = vunpack.c.l.b16 %v345
    %v1202 = vunpack.c.h.b16 %v345
    %v1203 = vunpack.c.l.b16 %v346
    %v1204 = vunpack.c.h.b16 %v346
    %v1205 = vunpack.c.l.b16 %v347
    %v1206 = vunpack.c.h.b16 %v347
    %v1207 = vunpack.c.l.b16 %v348
    %v1208 = vunpack.c.h.b16 %v348
    %v1209 = vunpack.c.l.b16 %v349
    %v1210 = vunpack.c.h.b16 %v349
    %v1211 = vunpack.c.l.b16 %v350
    %v1212 = vunpack.c.h.b16 %v350
    %v1213 = vunpack.c.l.b16 %v351
    %v1214 = vunpack.c.h.b16 %v351
    %v1215 = vunpack.c.l.b16 %v352
    %v1216 = vunpack.c.h.b16 %v352
    %v1217 = vunpack.c.l.b16 %v353
    %v1218 = vunpack.c.h.b16 %v353
    %v1219 = vunpack.c.l.b16 %v354
    %v1220 = vunpack.c.h.b16 %v354
    %v1221 = vunpack.c.l.b16 %v355
    %v1222 = vunpack.c.h.b16 %v355
    %v1223 = vunpack.c.l.b16 %v356
    %v1224 = vunpack.c.h.b16 %v356
    %v1225 = vunpack.c.l.b16 %v357
    %v1226 = vunpack.c.h.b16 %v357
    %v1227 = vunpack.c.l.b16 %v358
    %v1228 = vunpack.c.h.b16 %v358
    %v1229 = vunpack.c.l.b16 %v359
    %v1230 = vunpack.c.h.b16 %v359
    %v1231 = vunpack.c.l.b16 %v360
    %v1232 = vunpack.c.h.b16 %v360
    %v1233 = vunpack.c.l.b16 %v361
    %v1234 = vunpack.c.h.b16 %v361
    %v1235 = vunpack.c.l.b16 %v362
    %v1236 = vunpack.c.h.b16 %v362
    %v1237 = vunpack.c.l.b16 %v363
    %v1238 = vunpack.c.h.b16 %v363
    %v1239 = vunpack.c.l.b16 %v364
    %v1240 = vunpack.c.h.b16 %v364
    %v1241 = vunpack.c.l.b16 %v365
    %v1242 = vunpack.c.h.b16 %v365
    %v1243 = vunpack.c.l.b16 %v366
    %v1244 = vunpack.c.h.b16 %v366
    %v1245 = vunpack.c.l.b16 %v367
    %v1246 = vunpack.c.h.b16 %v367
    %v1247 = vunpack.c.l.b16 %v368
    %v1248 = vunpack.c.h.b16 %v368
    %v1249 = vunpack.c.l.b16 %v369
    %v1250 = vunpack.c.h.b16 %v369
    %v1251 = vunpack.c.l.b16 %v370
    %v1252 = vunpack.c.h.b16 %v370
    %v1253 = vunpack.c.l.b16 %v371
    %v1254 = vunpack.c.h.b16 %v371
    %v1255 = vunpack.c.l.b16 %v372
    %v1256 = vunpack.c.h.b16 %v372
    %v1257 = vunpack.c.l.b16 %v373
    %v1258 = vunpack.c.h.b16 %v373
    %v1259 = vunpack.c.l.b16 %v374
    %v1260 = vunpack.c.h.b16 %v374
    %v1261 = vunpack.c.l.b16 %v375
    %v1262 = vunpack.c.h.b16 %v375
    %v1263 = vunpack.c.l.b16 %v376
    %v1264 = vunpack.c.h.b16 %v376
    %v1265 = vunpack.c.l.b16 %v377
    %v1266 = vunpack.c.h.b16 %v377
    %v1267 = vunpack.c.l.b16 %v378
    %v1268 = vunpack.c.h.b16 %v378
    %v1269 = vunpack.c.l.b16 %v379
    %v1270 = vunpack.c.h.b16 %v379
    %v1271 = vunpack.c.l.b16 %v380
    %v1272 = vunpack.c.h.b16 %v380
    %v1273 = vunpack.c.l.b16 %v381
    %v1274 = vunpack.c.h.b16 %v381
    %v1275 = vunpack.c.l.b16 %v382
    %v1276 = vunpack.c.h.b16 %v382
    %v1277 = vunpack.c.l.b16 %v383
    %v1278 = vunpack.c.h.b16 %v383
    %v1279 = vunpack.c.l.b16 %v384
    %v1280 = vunpack.c.h.b16 %v384
    %v1281 = vunpack.c.l.b16 %v385
    %v1282 = vunpack.c.h.b16 %v385
    %v1283 = vunpack.c.l.b16 %v386
    %v1284 = vunpack.c.h.b16 %v386
    %v1285 = vunpack.c.l.b16 %v387
    %v1286 = vunpack.c.h.b16 %v387
    %v1287 = vunpack.c.l.b16 %v388
    %v1288 = vunpack.c.h.b16 %v388
    %v1289 = vunpack.c.l.b16 %v389
    %v1290 = vunpack.c.h.b16 %v389
    %v1291 = vunpack.c.l.b16 %v390
    %v1292 = vunpack.c.h.b16 %v390
    %v1293 = vunpack.c.l.b16 %v391
    %v1294 = vunpack.c.h.b16 %v391
    %v1295 = vunpack.c.l.b16 %v392
    %v1296 = vunpack.c.h.b16 %v392
    %v1297 = vunpack.c.l.b16 %v393
    %v1298 = vunpack.c.h.b16 %v393
    %v1299 = vunpack.c.l.b16 %v394
    %v1300 = vunpack.c.h.b16 %v394
    %v1301 = vunpack.c.l.b16 %v395
    %v1302 = vunpack.c.h.b16 %v395
    %v1303 = vunpack.c.l.b16 %v396
    %v1304 = vunpack.c.h.b16 %v396
    %v1305 = vunpack.c.l.b16 %v397
    %v1306 = vunpack.c.h.b16 %v397
    %v1307 = vunpack.c.l.b16 %v398
    %v1308 = vunpack.c.h.b16 %v398
    %v1309 = vunpack.c.l.b16 %v399
    %v1310 = vunpack.c.h.b16 %v399
    %v1311 = vunpack.c.l.b16 %v400
    %v1312 = vunpack.c.h.b16 %v400
    %v1313 = vunpack.c.l.b16 %v401
    %v1314 = vunpack.c.h.b16 %v401
    %v1315 = vunpack.c.l.b16 %v402
    %v1316 = vunpack.c.h.b16 %v402
    %v1317 = vunpack.c.l.b16 %v403
    %v1318 = vunpack.c.h.b16 %v403
    %v1319 = vunpack.c.l.b16 %v404
    %v1320 = vunpack.c.h.b16 %v404
    %v1321 = vunpack.c.l.b16 %v405
    %v1322 = vunpack.c.h.b16 %v405
    %v1323 = vpack.c.b16 %v753, %v747
    %v1324 = vpack.c.b16 %v754, %v748
    %v1325 = vpack.c.b16 %v755, %v749
    %v1326 = vpack.c.b16 %v756, %v750
    %v1327 = vpack.c.b16 %v757, %v751
    %v1328 = vpack.c.b16 %v758, %v752
    %v1329 = vpack.c.b16 %v765, %v759
    %v1330 = vpack.c.b16 %v766, %v760
    %v1331 = vpack.c.b16 %v767, %v761
    %v1332 = vpack.c.b16 %v768, %v762
    %v1333 = vpack.c.b16 %v769, %v763
    %v1334 = vpack.c.b16 %v770, %v764
    %v1335 = vpack.c.b16 %v777, %v771
    %v1336 = vpack.c.b16 %v778, %v772
    %v1337 = vpack.c.b16 %v779, %v773
    %v1338 = vpack.c.b16 %v780, %v774
    %v1339 = vpack.c.b16 %v781, %v775
    %v1340 = vpack.c.b16 %v782, %v776
    %v1341 = vpack.c.b16 %v789, %v783
    %v1342 = vpack.c.b16 %v790, %v784
    %v1343 = vpack.c.b16 %v791, %v785
    %v1344 = vpack.c.b16 %v792, %v786
    %v1345 = vpack.c.b16 %v793, %v787
    %v1346 = vpack.c.b16 %v794, %v788
    %v1347 = vpack.c.b16 %v801, %v795
    %v1348 = vpack.c.b16 %v802, %v796
    %v1349 = vpack.c.b16 %v803, %v797
    %v1350 = vpack.c.b16 %v804, %v798
    %v1351 = vpack.c.b16 %v805, %v799
    %v1352 = vpack.c.b16 %v806, %v800
    %v1353 = vpack.c.b16 %v813, %v807
    %v1354 = vpack.c.b16 %v814, %v808
    %v1355 = vpack.c.b16 %v815, %v809
    %v1356 = vpack.c.b16 %v816, %v810
    %v1357 = vpack.c.b16 %v817, %v811
    %v1358 = vpack.c.b16 %v818, %v812
    %v1359 = vpack.c.b16 %v825, %v819
    %v1360 = vpack.c.b16 %v826, %v820
    %v1361 = vpack.c.b16 %v827, %v821
    %v1362 = vpack.c.b16 %v828, %v822
    %v1363 = vpack.c.b16 %v829, %v823
    %v1364 = vpack.c.b16 %v830, %v824
    %v1365 = vpack.c.b16 %v837, %v831
    %v1366 = vpack.c.b16 %v838, %v832
    %v1367 = vpack.c.b16 %v839, %v833
    %v1368 = vpack.c.b16 %v840, %v834
    %v1369 = vpack.c.b16 %v841, %v835
    %v1370 = vpack.c.b16 %v842, %v836
    %v1371 = vpack.c.b16 %v849, %v843
    %v1372 = vpack.c.b16 %v850, %v844
    %v1373 = vpack.c.b16 %v851, %v845
    %v1374 = vpack.c.b16 %v852, %v846
    %v1375 = vpack.c.b16 %v853, %v847
    %v1376 = vpack.c.b16 %v854, %v848
    %v1377 = vpack.c.b16 %v861, %v855
    %v1378 = vpack.c.b16 %v862, %v856
    %v1379 = vpack.c.b16 %v863, %v857
    %v1380 = vpack.c.b16 %v864, %v858
    %v1381 = vpack.c.b16 %v865, %v859
    %v1382 = vpack.c.b16 %v866, %v860
    %v1383 = vpack.c.b16 %v873, %v867
    %v1384 = vpack.c.b16 %v874, %v868
    %v1385 = vpack.c.b16 %v875, %v869
    %v1386 = vpack.c.b16 %v876, %v870
    %v1387 = vpack.c.b16 %v877, %v871
    %v1388 = vpack.c.b16 %v878, %v872
    %v1389 = vpack.c.b16 %v885, %v879
    %v1390 = vpack.c.b16 %v886, %v880
    %v1391 = vpack.c.b16 %v887, %v881
    %v1392 = vpack.c.b16 %v888, %v882
    %v1393 = vpack.c.b16 %v889, %v883
    %v1394 = vpack.c.b16 %v890, %v884
    %v1395 = vpack.c.b16 %v897, %v891
    %v1396 = vpack.c.b16 %v898, %v892
    %v1397 = vpack.c.b16 %v899, %v893
    %v1398 = vpack.c.b16 %v900, %v894
    %v1399 = vpack.c.b16 %v901, %v895
    %v1400 = vpack.c.b16 %v902, %v896
    %v1401 = vpack.c.b16 %v909, %v903
    %v1402 = vpack.c.b16 %v910, %v904
    %v1403 = vpack.c.b16 %v911, %v905
    %v1404 = vpack.c.b16 %v912, %v906
    %v1405 = vpack.c.b16 %v913, %v907
    %v1406 = vpack.c.b16 %v914, %v908
    %v1407 = vpack.c.b16 %v921, %v915
    %v1408 = vpack.c.b16 %v922, %v916
    %v1409 = vpack.c.b16 %v923, %v917
    %v1410 = vpack.c.b16 %v924, %v918
    %v1411 = vpack.c.b16 %v925, %v919
    %v1412 = vpack.c.b16 %v926, %v920
    %v1413 = vpack.c.b16 %v933, %v927
    %v1414 = vpack.c.b16 %v934, %v928
    %v1415 = vpack.c.b16 %v935, %v929
    %v1416 = vpack.c.b16 %v936, %v930
    %v1417 = vpack.c.b16 %v937, %v931
    %v1418 = vpack.c.b16 %v938, %v932
    %v1419 = vpack.c.b16 %v945, %v939
    %v1420 = vpack.c.b16 %v946, %v940
    %v1421 = vpack.c.b16 %v947, %v941
    %v1422 = vpack.c.b16 %v948, %v942
    %v1423 = vpack.c.b16 %v949, %v943
    %v1424 = vpack.c.b16 %v950, %v944
    %v1425 = vpack.c.b16 %v957, %v951
    %v1426 = vpack.c.b16 %v958, %v952
    %v1427 = vpack.c.b16 %v959, %v953
    %v1428 = vpack.c.b16 %v960, %v954
    %v1429 = vpack.c.b16 %v961, %v955
    %v1430 = vpack.c.b16 %v962, %v956
    %v1431 = vpack.c.b16 %v969, %v963
    %v1432 = vpack.c.b16 %v970, %v964
    %v1433 = vpack.c.b16 %v971, %v965
    %v1434 = vpack.c.b16 %v972, %v966
    %v1435 = vpack.c.b16 %v973, %v967
    %v1436 = vpack.c.b16 %v974, %v968
    %v1437 = vpack.c.b16 %v981, %v975
    %v1438 = vpack.c.b16 %v982, %v976
    %v1439 = vpack.c.b16 %v983, %v977
    %v1440 = vpack.c.b16 %v984, %v978
    %v1441 = vpack.c.b16 %v985, %v979
    %v1442 = vpack.c.b16 %v986, %v980
    %v1443 = vpack.c.b16 %v993, %v987
    %v1444 = vpack.c.b16 %v994, %v988
    %v1445 = vpack.c.b16 %v995, %v989
    %v1446 = vpack.c.b16 %v996, %v990
    %v1447 = vpack.c.b16 %v997, %v991
    %v1448 = vpack.c.b16 %v998, %v992
    %v1449 = vpack.c.b16 %v1005, %v999
    %v1450 = vpack.c.b16 %v1006, %v1000
    %v1451 = vpack.c.b16 %v1007, %v1001
    %v1452 = vpack.c.b16 %v1008, %v1002
    %v1453 = vpack.c.b16 %v1009, %v1003
    %v1454 = vpack.c.b16 %v1010, %v1004
    %v1455 = vpack.c.b16 %v1017, %v1011
    %v1456 = vpack.c.b16 %v1018, %v1012
    %v1457 = vpack.c.b16 %v1019, %v1013
    %v1458 = vpack.c.b16 %v1020, %v1014
    %v1459 = vpack.c.b16 %v1021, %v1015
    %v1460 = vpack.c.b16 %v1022, %v1016
    %v1461 = vpack.c.b16 %v1029, %v1023
    %v1462 = vpack.c.b16 %v1030, %v1024
    %v1463 = vpack.c.b16 %v1031, %v1025
    %v1464 = vpack.c.b16 %v1032, %v1026
    %v1465 = vpack.c.b16 %v1033, %v1027
    %v1466 = vpack.c.b16 %v1034, %v1028
    %v1467 = vpack.c.b16 %v1041, %v1035
    %v1468 = vpack.c.b16 %v1042, %v1036
    %v1469 = vpack.c.b16 %v1043, %v1037
    %v1470 = vpack.c.b16 %v1044, %v1038
    %v1471 = vpack.c.b16 %v1045, %v1039
    %v1472 = vpack.c.b16 %v1046, %v1040
    %v1473 = vpack.c.b16 %v1053, %v1047
    %v1474 = vpack.c.b16 %v1054, %v1048
    %v1475 = vpack.c.b16 %v1055, %v1049
    %v1476 = vpack.c.b16 %v1056, %v1050
    %v1477 = vpack.c.b16 %v1057, %v1051
    %v1478 = vpack.c.b16 %v1058, %v1052
    %v1479 = vpack.c.b16 %v1065, %v1059
    %v1480 = vpack.c.b16 %v1066, %v1060
    %v1481 = vpack.c.b16 %v1067, %v1061
    %v1482 = vpack.c.b16 %v1068, %v1062
    %v1483 = vpack.c.b16 %v1069, %v1063
    %v1484 = vpack.c.b16 %v1070, %v1064
    %v1485 = vpack.c.b16 %v1077, %v1071
    %v1486 = vpack.c.b16 %v1078, %v1072
    %v1487 = vpack.c.b16 %v1079, %v1073
    %v1488 = vpack.c.b16 %v1080, %v1074
    %v1489 = vpack.c.b16 %v1081, %v1075
    %v1490 = vpack.c.b16 %v1082, %v1076
    %v1491 = vpack.c.b16 %v1089, %v1083
    %v1492 = vpack.c.b16 %v1090, %v1084
    %v1493 = vpack.c.b16 %v1091, %v1085
    %v1494 = vpack.c.b16 %v1092, %v1086
    %v1495 = vpack.c.b16 %v1093, %v1087
    %v1496 = vpack.c.b16 %v1094, %v1088
    %v1497 = vpack.c.b16 %v1101, %v1095
    %v1498 = vpack.c.b16 %v1102, %v1096
    %v1499 = vpack.c.b16 %v1103, %v1097
    %v1500 = vpack.c.b16 %v1104, %v1098
    %v1501 = vpack.c.b16 %v1105, %v1099
    %v1502 = vpack.c.b16 %v1106, %v1100
    %v1503 = vpack.c.b16 %v1113, %v1107
    %v1504 = vpack.c.b16 %v1114, %v1108
    %v1505 = vpack.c.b16 %v1115, %v1109
    %v1506 = vpack.c.b16 %v1116, %v1110
    %v1507 = vpack.c.b16 %v1117, %v1111
    %v1508 = vpack.c.b16 %v1118, %v1112
    %v1509 = vpack.c.b16 %v1125, %v1119
    %v1510 = vpack.c.b16 %v1126, %v1120
    %v1511 = vpack.c.b16 %v1127, %v1121
    %v1512 = vpack.c.b16 %v1128, %v1122
    %v1513 = vpack.c.b16 %v1129, %v1123
    %v1514 = vpack.c.b16 %v1130, %v1124
    %v1515 = vpack.c.b16 %v1137, %v1131
    %v1516 = vpack.c.b16 %v1138, %v1132
    %v1517 = vpack.c.b16 %v1139, %v1133
    %v1518 = vpack.c.b16 %v1140, %v1134
    %v1519 = vpack.c.b16 %v1141, %v1135
    %v1520 = vpack.c.b16 %v1142, %v1136
    %v1521 = vpack.c.b16 %v1149, %v1143
    %v1522 = vpack.c.b16 %v1150, %v1144
    %v1523 = vpack.c.b16 %v1151, %v1145
    %v1524 = vpack.c.b16 %v1152, %v1146
    %v1525 = vpack.c.b16 %v1153, %v1147
    %v1526 = vpack.c.b16 %v1154, %v1148
    %v1527 = vpack.c.b16 %v1161, %v1155
    %v1528 = vpack.c.b16 %v1162, %v1156
    %v1529 = vpack.c.b16 %v1163, %v1157
    %v1530 = vpack.c.b16 %v1164, %v1158
    %v1531 = vpack.c.b16 %v1165, %v1159
    %v1532 = vpack.c.b16 %v1166, %v1160
    %v1533 = vpack.c.b16 %v1173, %v1167
    %v1534 = vpack.c.b16 %v1174, %v1168
    %v1535 = vpack.c.b16 %v1175, %v1169
    %v1536 = vpack.c.b16 %v1176, %v1170
    %v1537 = vpack.c.b16 %v1177, %v1171
    %v1538 = vpack.c.b16 %v1178, %v1172
    %v1539 = vpack.c.b16 %v1185, %v1179
    %v1540 = vpack.c.b16 %v1186, %v1180
    %v1541 = vpack.c.b16 %v1187, %v1181
    %v1542 = vpack.c.b16 %v1188, %v1182
    %v1543 = vpack.c.b16 %v1189, %v1183
    %v1544 = vpack.c.b16 %v1190, %v1184
    %v1545 = vpack.c.b16 %v1197, %v1191
    %v1546 = vpack.c.b16 %v1198, %v1192
    %v1547 = vpack.c.b16 %v1199, %v1193
    %v1548 = vpack.c.b16 %v1200, %v1194
    %v1549 = vpack.c.b16 %v1201, %v1195
    %v1550 = vpack.c.b16 %v1202, %v1196
    %v1551 = vpack.c.b16 %v1209, %v1203
    %v1552 = vpack.c.b16 %v1210, %v1204
    %v1553 = vpack.c.b16 %v1211, %v1205
    %v1554 = vpack.c.b16 %v1212, %v1206
    %v1555 = vpack.c.b16 %v1213, %v1207
    %v1556 = vpack.c.b16 %v1214, %v1208
    %v1557 = vpack.c.b16 %v1221, %v1215
    %v1558 = vpack.c.b16 %v1222, %v1216
    %v1559 = vpack.c.b16 %v1223, %v1217
    %v1560 = vpack.c.b16 %v1224, %v1218
    %v1561 = vpack.c.b16 %v1225, %v1219
    %v1562 = vpack.c.b16 %v1226, %v1220
    %v1563 = vpack.c.b16 %v1233, %v1227
    %v1564 = vpack.c.b16 %v1234, %v1228
    %v1565 = vpack.c.b16 %v1235, %v1229
    %v1566 = vpack.c.b16 %v1236, %v1230
    %v1567 = vpack.c.b16 %v1237, %v1231
    %v1568 = vpack.c.b16 %v1238, %v1232
    %v1569 = vpack.c.b16 %v1245, %v1239
    %v1570 = vpack.c.b16 %v1246, %v1240
    %v1571 = vpack.c.b16 %v1247, %v1241
    %v1572 = vpack.c.b16 %v1248, %v1242
    %v1573 = vpack.c.b16 %v1249, %v1243
    %v1574 = vpack.c.b16 %v1250, %v1244
    %v1575 = vpack.c.b16 %v1257, %v1251
    %v1576 = vpack.c.b16 %v1258, %v1252
    %v1577 = vpack.c.b16 %v1259, %v1253
    %v1578 = vpack.c.b16 %v1260, %v1254
    %v1579 = vpack.c.b16 %v1261, %v1255
    %v1580 = vpack.c.b16 %v1262, %v1256
    %v1581 = vpack.c.b16 %v1269, %v1263
    %v1582 = vpack.c.b16 %v1270, %v1264
    %v1583 = vpack.c.b16 %v1271, %v1265
    %v1584 = vpack.c.b16 %v1272, %v1266
    %v1585 = vpack.c.b16 %v1273, %v1267
    %v1586 = vpack.c.b16 %v1274, %v1268
    %v1587 = vpack.c.b16 %v1281, %v1275
    %v1588 = vpack.c.b16 %v1282, %v1276
    %v1589 = vpack.c.b16 %v1283, %v1277
    %v1590 = vpack.c.b16 %v1284, %v1278
    %v1591 = vpack.c.b16 %v1285, %v1279
    %v1592 = vpack.c.b16 %v1286, %v1280
    %v1593 = vpack.c.b16 %v1293, %v1287
    %v1594 = vpack.c.b16 %v1294, %v1288
    %v1595 = vpack.c.b16 %v1295, %v1289
    %v1596 = vpack.c.b16 %v1296, %v1290
    %v1597 = vpack.c.b16 %v1297, %v1291
    %v1598 = vpack.c.b16 %v1298, %v1292
    %v1599 = vpack.c.b16 %v1305, %v1299
    %v1600 = vpack.c.b16 %v1306, %v1300
    %v1601 = vpack.c.b16 %v1307, %v1301
    %v1602 = vpack.c.b16 %v1308, %v1302
    %v1603 = vpack.c.b16 %v1309, %v1303
    %v1604 = vpack.c.b16 %v1310, %v1304
    %v1605 = vpack.c.b16 %v1317, %v1311
    %v1606 = vpack.c.b16 %v1318, %v1312
    %v1607 = vpack.c.b16 %v1319, %v1313
    %v1608 = vpack.c.b16 %v1320, %v1314
    %v1609 = vpack.c.b16 %v1321, %v1315
    %v1610 = vpack.c.b16 %v1322, %v1316
    %1899 = vmatprep.subr.bf16.mxu0 %v1366
    %1900 = vmatpush1.bf16.msra.mxu0 %v1365
    %1901 = vmatprep.subr.bf16.mxu0 %v1360
    %1902 = vmatpush1.bf16.msra.mxu0 %v1359
    %1903 = vmatprep.subr.bf16.mxu0 %v1354
    %1904 = vmatpush1.bf16.msra.mxu0 %v1353
    %1905 = vmatprep.subr.bf16.mxu0 %v1348
    %1906 = vmatpush1.bf16.msra.mxu0 %v1347
    %1907 = vmatprep.subr.bf16.mxu0 %v1342
    %1908 = vmatpush1.bf16.msra.mxu0 %v1341
    %1909 = vmatprep.subr.bf16.mxu0 %v1336
    %1910 = vmatpush1.bf16.msra.mxu0 %v1335
    %1911 = vmatprep.subr.bf16.mxu0 %v1330
    %1912 = vmatpush1.bf16.msra.mxu0 %v1329
    %1913 = vmatprep.subr.bf16.mxu0 %v1324
    %1914 = vmatpush1.bf16.msra.mxu0 %v1323
    %1915 = vmatprep.subr.bf16.mxu0 %v1414
    %1916 = vmatpush2.bf16.msra.mxu0 %v1413
    %1917 = vmatprep.subr.bf16.mxu0 %v1408
    %1918 = vmatpush2.bf16.msra.mxu0 %v1407
    %1919 = vmatprep.subr.bf16.mxu0 %v1402
    %1920 = vmatpush2.bf16.msra.mxu0 %v1401
    %1921 = vmatprep.subr.bf16.mxu0 %v1396
    %1922 = vmatpush2.bf16.msra.mxu0 %v1395
    %1923 = vmatprep.subr.bf16.mxu0 %v1390
    %1924 = vmatpush2.bf16.msra.mxu0 %v1389
    %1925 = vmatprep.subr.bf16.mxu0 %v1384
    %1926 = vmatpush2.bf16.msra.mxu0 %v1383
    %1927 = vmatprep.subr.bf16.mxu0 %v1378
    %1928 = vmatpush2.bf16.msra.mxu0 %v1377
    %1929 = vmatprep.subr.bf16.mxu0 %v1372
    %1930 = vmatpush2.bf16.msra.mxu0 %v1371
    %1931 = vmatprep.mubr.bf16.mxu0 %v448
    %1932 = vmatmul.mubr.bf16.gmra.mxu0 %v447
    %v1933 = vpop.f32.mrf.mxu0
    %v1934 = vadd.f32 %v411, %v1933
    %v1935 = vpop.f32.mrf.mxu0
    %v1936 = vadd.f32 %v415, %v1935
    %v1937 = vpop.f32.mrf.mxu0
    %v1938 = vpop.f32.mrf.mxu0
    %1939 = vdwg.mxu0
    %1940 = vmatprep.subr.bf16.mxu0 %v1462
    %1941 = vmatpush1.bf16.msra.mxu0 %v1461
    %1942 = vmatprep.subr.bf16.mxu0 %v1456
    %1943 = vmatpush1.bf16.msra.mxu0 %v1455
    %1944 = vmatprep.subr.bf16.mxu0 %v1450
    %1945 = vmatpush1.bf16.msra.mxu0 %v1449
    %1946 = vmatprep.subr.bf16.mxu0 %v1444
    %1947 = vmatpush1.bf16.msra.mxu0 %v1443
    %1948 = vmatprep.subr.bf16.mxu0 %v1438
    %1949 = vmatpush1.bf16.msra.mxu0 %v1437
    %1950 = vmatprep.subr.bf16.mxu0 %v1432
    %1951 = vmatpush1.bf16.msra.mxu0 %v1431
    %1952 = vmatprep.subr.bf16.mxu0 %v1426
    %1953 = vmatpush1.bf16.msra.mxu0 %v1425
    %1954 = vmatprep.subr.bf16.mxu0 %v1420
    %1955 = vmatpush1.bf16.msra.mxu0 %v1419
    %1956 = vmatprep.subr.bf16.mxu0 %v1510
    %1957 = vmatpush2.bf16.msra.mxu0 %v1509
    %1958 = vmatprep.subr.bf16.mxu0 %v1504
    %1959 = vmatpush2.bf16.msra.mxu0 %v1503
    %1960 = vmatprep.subr.bf16.mxu0 %v1498
    %1961 = vmatpush2.bf16.msra.mxu0 %v1497
    %1962 = vmatprep.subr.bf16.mxu0 %v1492
    %1963 = vmatpush2.bf16.msra.mxu0 %v1491
    %1964 = vmatprep.subr.bf16.mxu0 %v1486
    %1965 = vmatpush2.bf16.msra.mxu0 %v1485
    %1966 = vmatprep.subr.bf16.mxu0 %v1480
    %1967 = vmatpush2.bf16.msra.mxu0 %v1479
    %1968 = vmatprep.subr.bf16.mxu0 %v1474
    %1969 = vmatpush2.bf16.msra.mxu0 %v1473
    %1970 = vmatprep.subr.bf16.mxu0 %v1468
    %1971 = vmatpush2.bf16.msra.mxu0 %v1467
    %1972 = vmatprep.mubr.bf16.mxu0 %v450
    %1973 = vmatmul.mubr.bf16.gmra.mxu0 %v449
    %v1974 = vpop.f32.mrf.mxu0
    %v1975 = vadd.f32 %v1934, %v1974
    %v1976 = vpop.f32.mrf.mxu0
    %v1977 = vadd.f32 %v1936, %v1976
    %v1978 = vpop.f32.mrf.mxu0
    %v1979 = vpop.f32.mrf.mxu0
    %1980 = vdwg.mxu0
    %1981 = vmatprep.subr.bf16.mxu0 %v1558
    %1982 = vmatpush1.bf16.msra.mxu0 %v1557
    %1983 = vmatprep.subr.bf16.mxu0 %v1552
    %1984 = vmatpush1.bf16.msra.mxu0 %v1551
    %1985 = vmatprep.subr.bf16.mxu0 %v1546
    %1986 = vmatpush1.bf16.msra.mxu0 %v1545
    %1987 = vmatprep.subr.bf16.mxu0 %v1540
    %1988 = vmatpush1.bf16.msra.mxu0 %v1539
    %1989 = vmatprep.subr.bf16.mxu0 %v1534
    %1990 = vmatpush1.bf16.msra.mxu0 %v1533
    %1991 = vmatprep.subr.bf16.mxu0 %v1528
    %1992 = vmatpush1.bf16.msra.mxu0 %v1527
    %1993 = vmatprep.subr.bf16.mxu0 %v1522
    %1994 = vmatpush1.bf16.msra.mxu0 %v1521
    %1995 = vmatprep.subr.bf16.mxu0 %v1516
    %1996 = vmatpush1.bf16.msra.mxu0 %v1515
    %1997 = vmatprep.subr.bf16.mxu0 %v1606
    %1998 = vmatpush2.bf16.msra.mxu0 %v1605
    %1999 = vmatprep.subr.bf16.mxu0 %v1600
    %2000 = vmatpush2.bf16.msra.mxu0 %v1599
    %2001 = vmatprep.subr.bf16.mxu0 %v1594
    %2002 = vmatpush2.bf16.msra.mxu0 %v1593
    %2003 = vmatprep.subr.bf16.mxu0 %v1588
    %2004 = vmatpush2.bf16.msra.mxu0 %v1587
    %2005 = vmatprep.subr.bf16.mxu0 %v1582
    %2006 = vmatpush2.bf16.msra.mxu0 %v1581
    %2007 = vmatprep.subr.bf16.mxu0 %v1576
    %2008 = vmatpush2.bf16.msra.mxu0 %v1575
    %2009 = vmatprep.subr.bf16.mxu0 %v1570
    %2010 = vmatpush2.bf16.msra.mxu0 %v1569
    %2011 = vmatprep.subr.bf16.mxu0 %v1564
    %2012 = vmatpush2.bf16.msra.mxu0 %v1563
    %2013 = vmatprep.mubr.bf16.mxu0 %v452
    %2014 = vmatmul.mubr.bf16.gmra.mxu0 %v451
    %v2015 = vpop.f32.mrf.mxu0
    %v2016 = vadd.f32 %v1975, %v2015
    %v2017 = vpop.f32.mrf.mxu0
    %v2018 = vadd.f32 %v1977, %v2017
    %v2019 = vpop.f32.mrf.mxu0
    %v2020 = vpop.f32.mrf.mxu0
    %2021 = vdwg.mxu0
    %2022 = vmatprep.subr.bf16.mxu0 %v1368
    %2023 = vmatpush1.bf16.msra.mxu0 %v1367
    %2024 = vmatprep.subr.bf16.mxu0 %v1362
    %2025 = vmatpush1.bf16.msra.mxu0 %v1361
    %2026 = vmatprep.subr.bf16.mxu0 %v1356
    %2027 = vmatpush1.bf16.msra.mxu0 %v1355
    %2028 = vmatprep.subr.bf16.mxu0 %v1350
    %2029 = vmatpush1.bf16.msra.mxu0 %v1349
    %2030 = vmatprep.subr.bf16.mxu0 %v1344
    %2031 = vmatpush1.bf16.msra.mxu0 %v1343
    %2032 = vmatprep.subr.bf16.mxu0 %v1338
    %2033 = vmatpush1.bf16.msra.mxu0 %v1337
    %2034 = vmatprep.subr.bf16.mxu0 %v1332
    %2035 = vmatpush1.bf16.msra.mxu0 %v1331
    %2036 = vmatprep.subr.bf16.mxu0 %v1326
    %2037 = vmatpush1.bf16.msra.mxu0 %v1325
    %2038 = vmatprep.subr.bf16.mxu0 %v1416
    %2039 = vmatpush2.bf16.msra.mxu0 %v1415
    %2040 = vmatprep.subr.bf16.mxu0 %v1410
    %2041 = vmatpush2.bf16.msra.mxu0 %v1409
    %2042 = vmatprep.subr.bf16.mxu0 %v1404
    %2043 = vmatpush2.bf16.msra.mxu0 %v1403
    %2044 = vmatprep.subr.bf16.mxu0 %v1398
    %2045 = vmatpush2.bf16.msra.mxu0 %v1397
    %2046 = vmatprep.subr.bf16.mxu0 %v1392
    %2047 = vmatpush2.bf16.msra.mxu0 %v1391
    %2048 = vmatprep.subr.bf16.mxu0 %v1386
    %2049 = vmatpush2.bf16.msra.mxu0 %v1385
    %2050 = vmatprep.subr.bf16.mxu0 %v1380
    %2051 = vmatpush2.bf16.msra.mxu0 %v1379
    %2052 = vmatprep.subr.bf16.mxu0 %v1374
    %2053 = vmatpush2.bf16.msra.mxu0 %v1373
    %2054 = vmatprep.mubr.bf16.mxu0 %v448
    %2055 = vmatmul.mubr.bf16.gmra.mxu0 %v447
    %v2056 = vpop.f32.mrf.mxu0
    %v2057 = vadd.f32 %v419, %v2056
    %v2058 = vpop.f32.mrf.mxu0
    %v2059 = vadd.f32 %v423, %v2058
    %v2060 = vpop.f32.mrf.mxu0
    %v2061 = vpop.f32.mrf.mxu0
    %2062 = vdwg.mxu0
    %2063 = vmatprep.subr.bf16.mxu0 %v1464
    %2064 = vmatpush1.bf16.msra.mxu0 %v1463
    %2065 = vmatprep.subr.bf16.mxu0 %v1458
    %2066 = vmatpush1.bf16.msra.mxu0 %v1457
    %2067 = vmatprep.subr.bf16.mxu0 %v1452
    %2068 = vmatpush1.bf16.msra.mxu0 %v1451
    %2069 = vmatprep.subr.bf16.mxu0 %v1446
    %2070 = vmatpush1.bf16.msra.mxu0 %v1445
    %2071 = vmatprep.subr.bf16.mxu0 %v1440
    %2072 = vmatpush1.bf16.msra.mxu0 %v1439
    %2073 = vmatprep.subr.bf16.mxu0 %v1434
    %2074 = vmatpush1.bf16.msra.mxu0 %v1433
    %2075 = vmatprep.subr.bf16.mxu0 %v1428
    %2076 = vmatpush1.bf16.msra.mxu0 %v1427
    %2077 = vmatprep.subr.bf16.mxu0 %v1422
    %2078 = vmatpush1.bf16.msra.mxu0 %v1421
    %2079 = vmatprep.subr.bf16.mxu0 %v1512
    %2080 = vmatpush2.bf16.msra.mxu0 %v1511
    %2081 = vmatprep.subr.bf16.mxu0 %v1506
    %2082 = vmatpush2.bf16.msra.mxu0 %v1505
    %2083 = vmatprep.subr.bf16.mxu0 %v1500
    %2084 = vmatpush2.bf16.msra.mxu0 %v1499
    %2085 = vmatprep.subr.bf16.mxu0 %v1494
    %2086 = vmatpush2.bf16.msra.mxu0 %v1493
    %2087 = vmatprep.subr.bf16.mxu0 %v1488
    %2088 = vmatpush2.bf16.msra.mxu0 %v1487
    %2089 = vmatprep.subr.bf16.mxu0 %v1482
    %2090 = vmatpush2.bf16.msra.mxu0 %v1481
    %2091 = vmatprep.subr.bf16.mxu0 %v1476
    %2092 = vmatpush2.bf16.msra.mxu0 %v1475
    %2093 = vmatprep.subr.bf16.mxu0 %v1470
    %2094 = vmatpush2.bf16.msra.mxu0 %v1469
    %2095 = vmatprep.mubr.bf16.mxu0 %v450
    %2096 = vmatmul.mubr.bf16.gmra.mxu0 %v449
    %v2097 = vpop.f32.mrf.mxu0
    %v2098 = vadd.f32 %v2057, %v2097
    %v2099 = vpop.f32.mrf.mxu0
    %v2100 = vadd.f32 %v2059, %v2099
    %v2101 = vpop.f32.mrf.mxu0
    %v2102 = vpop.f32.mrf.mxu0
    %2103 = vdwg.mxu0
    %2104 = vmatprep.subr.bf16.mxu0 %v1560
    %2105 = vmatpush1.bf16.msra.mxu0 %v1559
    %2106 = vmatprep.subr.bf16.mxu0 %v1554
    %2107 = vmatpush1.bf16.msra.mxu0 %v1553
    %2108 = vmatprep.subr.bf16.mxu0 %v1548
    %2109 = vmatpush1.bf16.msra.mxu0 %v1547
    %2110 = vmatprep.subr.bf16.mxu0 %v1542
    %2111 = vmatpush1.bf16.msra.mxu0 %v1541
    %2112 = vmatprep.subr.bf16.mxu0 %v1536
    %2113 = vmatpush1.bf16.msra.mxu0 %v1535
    %2114 = vmatprep.subr.bf16.mxu0 %v1530
    %2115 = vmatpush1.bf16.msra.mxu0 %v1529
    %2116 = vmatprep.subr.bf16.mxu0 %v1524
    %2117 = vmatpush1.bf16.msra.mxu0 %v1523
    %2118 = vmatprep.subr.bf16.mxu0 %v1518
    %2119 = vmatpush1.bf16.msra.mxu0 %v1517
    %2120 = vmatprep.subr.bf16.mxu0 %v1608
    %2121 = vmatpush2.bf16.msra.mxu0 %v1607
    %2122 = vmatprep.subr.bf16.mxu0 %v1602
    %2123 = vmatpush2.bf16.msra.mxu0 %v1601
    %2124 = vmatprep.subr.bf16.mxu0 %v1596
    %2125 = vmatpush2.bf16.msra.mxu0 %v1595
    %2126 = vmatprep.subr.bf16.mxu0 %v1590
    %2127 = vmatpush2.bf16.msra.mxu0 %v1589
    %2128 = vmatprep.subr.bf16.mxu0 %v1584
    %2129 = vmatpush2.bf16.msra.mxu0 %v1583
    %2130 = vmatprep.subr.bf16.mxu0 %v1578
    %2131 = vmatpush2.bf16.msra.mxu0 %v1577
    %2132 = vmatprep.subr.bf16.mxu0 %v1572
    %2133 = vmatpush2.bf16.msra.mxu0 %v1571
    %2134 = vmatprep.subr.bf16.mxu0 %v1566
    %2135 = vmatpush2.bf16.msra.mxu0 %v1565
    %2136 = vmatprep.mubr.bf16.mxu0 %v452
    %2137 = vmatmul.mubr.bf16.gmra.mxu0 %v451
    %v2138 = vpop.f32.mrf.mxu0
    %v2139 = vadd.f32 %v2098, %v2138
    %v2140 = vpop.f32.mrf.mxu0
    %v2141 = vadd.f32 %v2100, %v2140
    %v2142 = vpop.f32.mrf.mxu0
    %v2143 = vpop.f32.mrf.mxu0
    %2144 = vdwg.mxu0
    %2145 = vmatprep.subr.bf16.mxu0 %v1370
    %2146 = vmatpush1.bf16.msra.mxu0 %v1369
    %2147 = vmatprep.subr.bf16.mxu0 %v1364
    %2148 = vmatpush1.bf16.msra.mxu0 %v1363
    %2149 = vmatprep.subr.bf16.mxu0 %v1358
    %2150 = vmatpush1.bf16.msra.mxu0 %v1357
    %2151 = vmatprep.subr.bf16.mxu0 %v1352
    %2152 = vmatpush1.bf16.msra.mxu0 %v1351
    %2153 = vmatprep.subr.bf16.mxu0 %v1346
    %2154 = vmatpush1.bf16.msra.mxu0 %v1345
    %2155 = vmatprep.subr.bf16.mxu0 %v1340
    %2156 = vmatpush1.bf16.msra.mxu0 %v1339
    %2157 = vmatprep.subr.bf16.mxu0 %v1334
    %2158 = vmatpush1.bf16.msra.mxu0 %v1333
    %2159 = vmatprep.subr.bf16.mxu0 %v1328
    %2160 = vmatpush1.bf16.msra.mxu0 %v1327
    %2161 = vmatprep.subr.bf16.mxu0 %v1418
    %2162 = vmatpush2.bf16.msra.mxu0 %v1417
    %2163 = vmatprep.subr.bf16.mxu0 %v1412
    %2164 = vmatpush2.bf16.msra.mxu0 %v1411
    %2165 = vmatprep.subr.bf16.mxu0 %v1406
    %2166 = vmatpush2.bf16.msra.mxu0 %v1405
    %2167 = vmatprep.subr.bf16.mxu0 %v1400
    %2168 = vmatpush2.bf16.msra.mxu0 %v1399
    %2169 = vmatprep.subr.bf16.mxu0 %v1394
    %2170 = vmatpush2.bf16.msra.mxu0 %v1393
    %2171 = vmatprep.subr.bf16.mxu0 %v1388
    %2172 = vmatpush2.bf16.msra.mxu0 %v1387
    %2173 = vmatprep.subr.bf16.mxu0 %v1382
    %2174 = vmatpush2.bf16.msra.mxu0 %v1381
    %2175 = vmatprep.subr.bf16.mxu0 %v1376
    %2176 = vmatpush2.bf16.msra.mxu0 %v1375
    %2177 = vmatprep.mubr.bf16.mxu0 %v448
    %2178 = vmatmul.mubr.bf16.gmra.mxu0 %v447
    %v2179 = vpop.f32.mrf.mxu0
    %v2180 = vadd.f32 %v427, %v2179
    %v2181 = vpop.f32.mrf.mxu0
    %v2182 = vadd.f32 %v431, %v2181
    %v2183 = vpop.f32.mrf.mxu0
    %v2184 = vpop.f32.mrf.mxu0
    %2185 = vdwg.mxu0
    %2186 = vmatprep.subr.bf16.mxu0 %v1466
    %2187 = vmatpush1.bf16.msra.mxu0 %v1465
    %2188 = vmatprep.subr.bf16.mxu0 %v1460
    %2189 = vmatpush1.bf16.msra.mxu0 %v1459
    %2190 = vmatprep.subr.bf16.mxu0 %v1454
    %2191 = vmatpush1.bf16.msra.mxu0 %v1453
    %2192 = vmatprep.subr.bf16.mxu0 %v1448
    %2193 = vmatpush1.bf16.msra.mxu0 %v1447
    %2194 = vmatprep.subr.bf16.mxu0 %v1442
    %2195 = vmatpush1.bf16.msra.mxu0 %v1441
    %2196 = vmatprep.subr.bf16.mxu0 %v1436
    %2197 = vmatpush1.bf16.msra.mxu0 %v1435
    %2198 = vmatprep.subr.bf16.mxu0 %v1430
    %2199 = vmatpush1.bf16.msra.mxu0 %v1429
    %2200 = vmatprep.subr.bf16.mxu0 %v1424
    %2201 = vmatpush1.bf16.msra.mxu0 %v1423
    %2202 = vmatprep.subr.bf16.mxu0 %v1514
    %2203 = vmatpush2.bf16.msra.mxu0 %v1513
    %2204 = vmatprep.subr.bf16.mxu0 %v1508
    %2205 = vmatpush2.bf16.msra.mxu0 %v1507
    %2206 = vmatprep.subr.bf16.mxu0 %v1502
    %2207 = vmatpush2.bf16.msra.mxu0 %v1501
    %2208 = vmatprep.subr.bf16.mxu0 %v1496
    %2209 = vmatpush2.bf16.msra.mxu0 %v1495
    %2210 = vmatprep.subr.bf16.mxu0 %v1490
    %2211 = vmatpush2.bf16.msra.mxu0 %v1489
    %2212 = vmatprep.subr.bf16.mxu0 %v1484
    %2213 = vmatpush2.bf16.msra.mxu0 %v1483
    %2214 = vmatprep.subr.bf16.mxu0 %v1478
    %2215 = vmatpush2.bf16.msra.mxu0 %v1477
    %2216 = vmatprep.subr.bf16.mxu0 %v1472
    %2217 = vmatpush2.bf16.msra.mxu0 %v1471
    %2218 = vmatprep.mubr.bf16.mxu0 %v450
    %2219 = vmatmul.mubr.bf16.gmra.mxu0 %v449
    %v2220 = vpop.f32.mrf.mxu0
    %v2221 = vadd.f32 %v2180, %v2220
    %v2222 = vpop.f32.mrf.mxu0
    %v2223 = vadd.f32 %v2182, %v2222
    %v2224 = vpop.f32.mrf.mxu0
    %v2225 = vpop.f32.mrf.mxu0
    %2226 = vdwg.mxu0
    %2227 = vmatprep.subr.bf16.mxu0 %v1562
    %2228 = vmatpush1.bf16.msra.mxu0 %v1561
    %2229 = vmatprep.subr.bf16.mxu0 %v1556
    %2230 = vmatpush1.bf16.msra.mxu0 %v1555
    %2231 = vmatprep.subr.bf16.mxu0 %v1550
    %2232 = vmatpush1.bf16.msra.mxu0 %v1549
    %2233 = vmatprep.subr.bf16.mxu0 %v1544
    %2234 = vmatpush1.bf16.msra.mxu0 %v1543
    %2235 = vmatprep.subr.bf16.mxu0 %v1538
    %2236 = vmatpush1.bf16.msra.mxu0 %v1537
    %2237 = vmatprep.subr.bf16.mxu0 %v1532
    %2238 = vmatpush1.bf16.msra.mxu0 %v1531
    %2239 = vmatprep.subr.bf16.mxu0 %v1526
    %2240 = vmatpush1.bf16.msra.mxu0 %v1525
    %2241 = vmatprep.subr.bf16.mxu0 %v1520
    %2242 = vmatpush1.bf16.msra.mxu0 %v1519
    %2243 = vmatprep.subr.bf16.mxu0 %v1610
    %2244 = vmatpush2.bf16.msra.mxu0 %v1609
    %2245 = vmatprep.subr.bf16.mxu0 %v1604
    %2246 = vmatpush2.bf16.msra.mxu0 %v1603
    %2247 = vmatprep.subr.bf16.mxu0 %v1598
    %2248 = vmatpush2.bf16.msra.mxu0 %v1597
    %2249 = vmatprep.subr.bf16.mxu0 %v1592
    %2250 = vmatpush2.bf16.msra.mxu0 %v1591
    %2251 = vmatprep.subr.bf16.mxu0 %v1586
    %2252 = vmatpush2.bf16.msra.mxu0 %v1585
    %2253 = vmatprep.subr.bf16.mxu0 %v1580
    %2254 = vmatpush2.bf16.msra.mxu0 %v1579
    %2255 = vmatprep.subr.bf16.mxu0 %v1574
    %2256 = vmatpush2.bf16.msra.mxu0 %v1573
    %2257 = vmatprep.subr.bf16.mxu0 %v1568
    %2258 = vmatpush2.bf16.msra.mxu0 %v1567
    %2259 = vmatprep.mubr.bf16.mxu0 %v452
    %2260 = vmatmul.mubr.bf16.gmra.mxu0 %v451
    %v2261 = vpop.f32.mrf.mxu0
    %v2262 = vadd.f32 %v2221, %v2261
    %v2263 = vpop.f32.mrf.mxu0
    %v2264 = vadd.f32 %v2223, %v2263
    %v2265 = vpop.f32.mrf.mxu0
    %v2266 = vpop.f32.mrf.mxu0
    %2267 = vdwg.mxu0
    %v2268 = vtanh.pop %v2016
    %v2269 = vtanh.pop %v2018
    %v2270 = vtanh.pop %v2139
    %v2271 = vtanh.pop %v2141
    %v2272 = vtanh.pop %v2262
    %v2273 = vtanh.pop %v2264
    %v2274 = vpack.c.bf16 %v2268, %v2268
    %v2275 = vpack.c.bf16 %v2269, %v2269
    %v2276 = vpack.c.bf16 %v2270, %v2270
    %v2277 = vpack.c.bf16 %v2271, %v2271
    %v2278 = vpack.c.bf16 %v2272, %v2272
    %v2279 = vpack.c.bf16 %v2273, %v2273
    %v2280 = vld [vmem:[#allocation8] sm:$0xff]
    %v2281 = vld [vmem:[#allocation8 + $0x8] sm:$0xff]
    %v2282 = vld [vmem:[#allocation8 + $0x10] sm:$0xff]
    %v2283 = vld [vmem:[#allocation8 + $0x18] sm:$0xff]
    %v2284 = vld [vmem:[#allocation8 + $0x20] sm:$0xff]
    %v2285 = vld [vmem:[#allocation8 + $0x28] sm:$0xff]
    %v2286 = vld [vmem:[#allocation8 + $0x30] sm:$0xff]
    %v2287 = vld [vmem:[#allocation8 + $0x38] sm:$0xff]
    %v2288 = vld [vmem:[#allocation8 + $0x40] sm:$0xff]
    %v2289 = vld [vmem:[#allocation8 + $0x48] sm:$0xff]
    %v2290 = vld [vmem:[#allocation8 + $0x50] sm:$0xff]
    %v2291 = vld [vmem:[#allocation8 + $0x58] sm:$0xff]
    %v2292 = vld [vmem:[#allocation8 + $0x60] sm:$0xff]
    %v2293 = vld [vmem:[#allocation8 + $0x68] sm:$0xff]
    %v2294 = vld [vmem:[#allocation8 + $0x70] sm:$0xff]
    %v2295 = vld [vmem:[#allocation8 + $0x78] sm:$0xff]
    %v2296 = vld [vmem:[#allocation8 + $0x80] sm:$0xff]
    %v2297 = vld [vmem:[#allocation8 + $0x88] sm:$0xff]
    %v2298 = vld [vmem:[#allocation8 + $0x90] sm:$0xff]
    %v2299 = vld [vmem:[#allocation8 + $0x98] sm:$0xff]
    %v2300 = vld [vmem:[#allocation8 + $0xa0] sm:$0xff]
    %v2301 = vld [vmem:[#allocation8 + $0xa8] sm:$0xff]
    %v2302 = vld [vmem:[#allocation8 + $0xb0] sm:$0xff]
    %v2303 = vld [vmem:[#allocation8 + $0xb8] sm:$0xff]
    %v2304 = vld [vmem:[#allocation8 + $0xc0] sm:$0xff]
    %v2305 = vld [vmem:[#allocation8 + $0xc8] sm:$0xff]
    %v2306 = vld [vmem:[#allocation8 + $0xd0] sm:$0xff]
    %v2307 = vld [vmem:[#allocation8 + $0xd8] sm:$0xff]
    %v2308 = vld [vmem:[#allocation8 + $0xe0] sm:$0xff]
    %v2309 = vld [vmem:[#allocation8 + $0xe8] sm:$0xff]
    %v2310 = vld [vmem:[#allocation8 + $0xf0] sm:$0xff]
    %v2311 = vld [vmem:[#allocation8 + $0xf8] sm:$0xff]
    %v2312 = vld [vmem:[#allocation8 + $0x100] sm:$0xff]
    %v2313 = vld [vmem:[#allocation8 + $0x108] sm:$0xff]
    %v2314 = vld [vmem:[#allocation8 + $0x110] sm:$0xff]
    %v2315 = vld [vmem:[#allocation8 + $0x118] sm:$0xff]
    %v2316 = vld [vmem:[#allocation8 + $0x120] sm:$0xff]
    %v2317 = vld [vmem:[#allocation8 + $0x128] sm:$0xff]
    %v2318 = vld [vmem:[#allocation8 + $0x130] sm:$0xff]
    %v2319 = vld [vmem:[#allocation8 + $0x138] sm:$0xff]
    %v2320 = vld [vmem:[#allocation8 + $0x140] sm:$0xff]
    %v2321 = vld [vmem:[#allocation8 + $0x148] sm:$0xff]
    %v2322 = vld [vmem:[#allocation8 + $0x150] sm:$0xff]
    %v2323 = vld [vmem:[#allocation8 + $0x158] sm:$0xff]
    %v2324 = vld [vmem:[#allocation8 + $0x160] sm:$0xff]
    %v2325 = vld [vmem:[#allocation8 + $0x168] sm:$0xff]
    %v2326 = vld [vmem:[#allocation8 + $0x170] sm:$0xff]
    %v2327 = vld [vmem:[#allocation8 + $0x178] sm:$0xff]
    %v2328 = vld [vmem:[#allocation8 + $0x180] sm:$0xff]
    %v2329 = vld [vmem:[#allocation8 + $0x188] sm:$0xff]
    %v2330 = vld [vmem:[#allocation8 + $0x190] sm:$0xff]
    %v2331 = vld [vmem:[#allocation8 + $0x198] sm:$0xff]
    %v2332 = vld [vmem:[#allocation8 + $0x1a0] sm:$0xff]
    %v2333 = vld [vmem:[#allocation8 + $0x1a8] sm:$0xff]
    %v2334 = vld [vmem:[#allocation8 + $0x1b0] sm:$0xff]
    %v2335 = vld [vmem:[#allocation8 + $0x1b8] sm:$0xff]
    %v2336 = vld [vmem:[#allocation8 + $0x1c0] sm:$0xff]
    %v2337 = vld [vmem:[#allocation8 + $0x1c8] sm:$0xff]
    %v2338 = vld [vmem:[#allocation8 + $0x1d0] sm:$0xff]
    %v2339 = vld [vmem:[#allocation8 + $0x1d8] sm:$0xff]
    %v2340 = vld [vmem:[#allocation8 + $0x1e0] sm:$0xff]
    %v2341 = vld [vmem:[#allocation8 + $0x1e8] sm:$0xff]
    %v2342 = vld [vmem:[#allocation8 + $0x1f0] sm:$0xff]
    %v2343 = vld [vmem:[#allocation8 + $0x1f8] sm:$0xff]
    %v2344 = vld [vmem:[#allocation8 + $0x200] sm:$0xff]
    %v2345 = vld [vmem:[#allocation8 + $0x208] sm:$0xff]
    %v2346 = vld [vmem:[#allocation8 + $0x210] sm:$0xff]
    %v2347 = vld [vmem:[#allocation8 + $0x218] sm:$0xff]
    %v2348 = vld [vmem:[#allocation8 + $0x220] sm:$0xff]
    %v2349 = vld [vmem:[#allocation8 + $0x228] sm:$0xff]
    %v2350 = vld [vmem:[#allocation8 + $0x230] sm:$0xff]
    %v2351 = vld [vmem:[#allocation8 + $0x238] sm:$0xff]
    %v2352 = vld [vmem:[#allocation8 + $0x240] sm:$0xff]
    %v2353 = vld [vmem:[#allocation8 + $0x248] sm:$0xff]
    %v2354 = vld [vmem:[#allocation8 + $0x250] sm:$0xff]
    %v2355 = vld [vmem:[#allocation8 + $0x258] sm:$0xff]
    %v2356 = vld [vmem:[#allocation8 + $0x260] sm:$0xff]
    %v2357 = vld [vmem:[#allocation8 + $0x268] sm:$0xff]
    %v2358 = vld [vmem:[#allocation8 + $0x270] sm:$0xff]
    %v2359 = vld [vmem:[#allocation8 + $0x278] sm:$0xff]
    %v2360 = vld [vmem:[#allocation8 + $0x280] sm:$0xff]
    %v2361 = vld [vmem:[#allocation8 + $0x288] sm:$0xff]
    %v2362 = vld [vmem:[#allocation8 + $0x290] sm:$0xff]
    %v2363 = vld [vmem:[#allocation8 + $0x298] sm:$0xff]
    %v2364 = vld [vmem:[#allocation8 + $0x2a0] sm:$0xff]
    %v2365 = vld [vmem:[#allocation8 + $0x2a8] sm:$0xff]
    %v2366 = vld [vmem:[#allocation8 + $0x2b0] sm:$0xff]
    %v2367 = vld [vmem:[#allocation8 + $0x2b8] sm:$0xff]
    %v2368 = vld [vmem:[#allocation8 + $0x2c0] sm:$0xff]
    %v2369 = vld [vmem:[#allocation8 + $0x2c8] sm:$0xff]
    %v2370 = vld [vmem:[#allocation8 + $0x2d0] sm:$0xff]
    %v2371 = vld [vmem:[#allocation8 + $0x2d8] sm:$0xff]
    %v2372 = vld [vmem:[#allocation8 + $0x2e0] sm:$0xff]
    %v2373 = vld [vmem:[#allocation8 + $0x2e8] sm:$0xff]
    %v2374 = vld [vmem:[#allocation8 + $0x2f0] sm:$0xff]
    %v2375 = vld [vmem:[#allocation8 + $0x2f8] sm:$0xff]
    %v2376 = vld [vmem:[#allocation8 + $0x300] sm:$0xff]
    %v2377 = vld [vmem:[#allocation8 + $0x308] sm:$0xff]
    %v2378 = vld [vmem:[#allocation8 + $0x310] sm:$0xff]
    %v2379 = vld [vmem:[#allocation8 + $0x318] sm:$0xff]
    %v2380 = vld [vmem:[#allocation8 + $0x320] sm:$0xff]
    %v2381 = vld [vmem:[#allocation8 + $0x328] sm:$0xff]
    %v2382 = vld [vmem:[#allocation8 + $0x330] sm:$0xff]
    %v2383 = vld [vmem:[#allocation8 + $0x338] sm:$0xff]
    %v2384 = vld [vmem:[#allocation8 + $0x340] sm:$0xff]
    %v2385 = vld [vmem:[#allocation8 + $0x348] sm:$0xff]
    %v2386 = vld [vmem:[#allocation8 + $0x350] sm:$0xff]
    %v2387 = vld [vmem:[#allocation8 + $0x358] sm:$0xff]
    %v2388 = vld [vmem:[#allocation8 + $0x360] sm:$0xff]
    %v2389 = vld [vmem:[#allocation8 + $0x368] sm:$0xff]
    %v2390 = vld [vmem:[#allocation8 + $0x370] sm:$0xff]
    %v2391 = vld [vmem:[#allocation8 + $0x378] sm:$0xff]
    %v2392 = vld [vmem:[#allocation8 + $0x380] sm:$0xff]
    %v2393 = vld [vmem:[#allocation8 + $0x388] sm:$0xff]
    %v2394 = vld [vmem:[#allocation8 + $0x390] sm:$0xff]
    %v2395 = vld [vmem:[#allocation8 + $0x398] sm:$0xff]
    %v2396 = vld [vmem:[#allocation8 + $0x3a0] sm:$0xff]
    %v2397 = vld [vmem:[#allocation8 + $0x3a8] sm:$0xff]
    %v2398 = vld [vmem:[#allocation8 + $0x3b0] sm:$0xff]
    %v2399 = vld [vmem:[#allocation8 + $0x3b8] sm:$0xff]
    %v2400 = vld [vmem:[#allocation8 + $0x3c0] sm:$0xff]
    %v2401 = vld [vmem:[#allocation8 + $0x3c8] sm:$0xff]
    %v2402 = vld [vmem:[#allocation8 + $0x3d0] sm:$0xff]
    %v2403 = vld [vmem:[#allocation8 + $0x3d8] sm:$0xff]
    %v2404 = vld [vmem:[#allocation8 + $0x3e0] sm:$0xff]
    %v2405 = vld [vmem:[#allocation8 + $0x3e8] sm:$0xff]
    %v2406 = vld [vmem:[#allocation8 + $0x3f0] sm:$0xff]
    %v2407 = vld [vmem:[#allocation8 + $0x3f8] sm:$0xff]
    %v2408 = vld [vmem:[#allocation8 + $0x400] sm:$0xff]
    %v2409 = vld [vmem:[#allocation8 + $0x408] sm:$0xff]
    %v2410 = vld [vmem:[#allocation8 + $0x410] sm:$0xff]
    %v2411 = vld [vmem:[#allocation8 + $0x418] sm:$0xff]
    %v2412 = vld [vmem:[#allocation8 + $0x420] sm:$0xff]
    %v2413 = vld [vmem:[#allocation8 + $0x428] sm:$0xff]
    %v2414 = vld [vmem:[#allocation8 + $0x430] sm:$0xff]
    %v2415 = vld [vmem:[#allocation8 + $0x438] sm:$0xff]
    %v2416 = vld [vmem:[#allocation8 + $0x440] sm:$0xff]
    %v2417 = vld [vmem:[#allocation8 + $0x448] sm:$0xff]
    %v2418 = vld [vmem:[#allocation8 + $0x450] sm:$0xff]
    %v2419 = vld [vmem:[#allocation8 + $0x458] sm:$0xff]
    %v2420 = vld [vmem:[#allocation8 + $0x460] sm:$0xff]
    %v2421 = vld [vmem:[#allocation8 + $0x468] sm:$0xff]
    %v2422 = vld [vmem:[#allocation8 + $0x470] sm:$0xff]
    %v2423 = vld [vmem:[#allocation8 + $0x478] sm:$0xff]
    %v2424 = vld [vmem:[#allocation8 + $0x480] sm:$0xff]
    %v2425 = vld [vmem:[#allocation8 + $0x488] sm:$0xff]
    %v2426 = vld [vmem:[#allocation8 + $0x490] sm:$0xff]
    %v2427 = vld [vmem:[#allocation8 + $0x498] sm:$0xff]
    %v2428 = vld [vmem:[#allocation8 + $0x4a0] sm:$0xff]
    %v2429 = vld [vmem:[#allocation8 + $0x4a8] sm:$0xff]
    %v2430 = vld [vmem:[#allocation8 + $0x4b0] sm:$0xff]
    %v2431 = vld [vmem:[#allocation8 + $0x4b8] sm:$0xff]
    %v2432 = vld [vmem:[#allocation8 + $0x4c0] sm:$0xff]
    %v2433 = vld [vmem:[#allocation8 + $0x4c8] sm:$0xff]
    %v2434 = vld [vmem:[#allocation8 + $0x4d0] sm:$0xff]
    %v2435 = vld [vmem:[#allocation8 + $0x4d8] sm:$0xff]
    %v2436 = vld [vmem:[#allocation8 + $0x4e0] sm:$0xff]
    %v2437 = vld [vmem:[#allocation8 + $0x4e8] sm:$0xff]
    %v2438 = vld [vmem:[#allocation8 + $0x4f0] sm:$0xff]
    %v2439 = vld [vmem:[#allocation8 + $0x4f8] sm:$0xff]
    %v2440 = vld [vmem:[#allocation8 + $0x500] sm:$0xff]
    %v2441 = vld [vmem:[#allocation8 + $0x508] sm:$0xff]
    %v2442 = vld [vmem:[#allocation8 + $0x510] sm:$0xff]
    %v2443 = vld [vmem:[#allocation8 + $0x518] sm:$0xff]
    %v2444 = vld [vmem:[#allocation8 + $0x520] sm:$0xff]
    %v2445 = vld [vmem:[#allocation8 + $0x528] sm:$0xff]
    %v2446 = vld [vmem:[#allocation8 + $0x530] sm:$0xff]
    %v2447 = vld [vmem:[#allocation8 + $0x538] sm:$0xff]
    %v2448 = vld [vmem:[#allocation8 + $0x540] sm:$0xff]
    %v2449 = vld [vmem:[#allocation8 + $0x548] sm:$0xff]
    %v2450 = vld [vmem:[#allocation8 + $0x550] sm:$0xff]
    %v2451 = vld [vmem:[#allocation8 + $0x558] sm:$0xff]
    %v2452 = vld [vmem:[#allocation8 + $0x560] sm:$0xff]
    %v2453 = vld [vmem:[#allocation8 + $0x568] sm:$0xff]
    %v2454 = vld [vmem:[#allocation8 + $0x570] sm:$0xff]
    %v2455 = vld [vmem:[#allocation8 + $0x578] sm:$0xff]
    %v2456 = vld [vmem:[#allocation8 + $0x580] sm:$0xff]
    %v2457 = vld [vmem:[#allocation8 + $0x588] sm:$0xff]
    %v2458 = vld [vmem:[#allocation8 + $0x590] sm:$0xff]
    %v2459 = vld [vmem:[#allocation8 + $0x598] sm:$0xff]
    %v2460 = vld [vmem:[#allocation8 + $0x5a0] sm:$0xff]
    %v2461 = vld [vmem:[#allocation8 + $0x5a8] sm:$0xff]
    %v2462 = vld [vmem:[#allocation8 + $0x5b0] sm:$0xff]
    %v2463 = vld [vmem:[#allocation8 + $0x5b8] sm:$0xff]
    %v2464 = vld [vmem:[#allocation8 + $0x5c0] sm:$0xff]
    %v2465 = vld [vmem:[#allocation8 + $0x5c8] sm:$0xff]
    %v2466 = vld [vmem:[#allocation8 + $0x5d0] sm:$0xff]
    %v2467 = vld [vmem:[#allocation8 + $0x5d8] sm:$0xff]
    %v2468 = vld [vmem:[#allocation8 + $0x5e0] sm:$0xff]
    %v2469 = vld [vmem:[#allocation8 + $0x5e8] sm:$0xff]
    %v2470 = vld [vmem:[#allocation8 + $0x5f0] sm:$0xff]
    %v2471 = vld [vmem:[#allocation8 + $0x5f8] sm:$0xff]
    %v2472 = vld [vmem:[#allocation10] sm:$0xf]
    %v2474 = vlaneseq
    %v2475 = vshrl.u32 %v2474, 7
    %v2476 = vsub.s32 0, %v2475
    %v2477 = vrot.slane %v2472, %v2476
    %v2478 = vlaneseq
    %v2479 = vshrl.u32 %v2478, 7
    %v2480 = vsub.s32 1, %v2479
    %v2481 = vrot.slane %v2472, %v2480
    %v2482 = vlaneseq
    %v2483 = vshrl.u32 %v2482, 7
    %v2484 = vsub.s32 2, %v2483
    %v2485 = vrot.slane %v2472, %v2484
    %v2486 = vlaneseq
    %v2487 = vshrl.u32 %v2486, 7
    %v2488 = vsub.s32 3, %v2487
    %v2489 = vrot.slane %v2472, %v2488
    %v2686 = vunpack.c.l.b16 %v2280
    %v2687 = vunpack.c.h.b16 %v2280
    %v2688 = vunpack.c.l.b16 %v2281
    %v2689 = vunpack.c.h.b16 %v2281
    %v2690 = vunpack.c.l.b16 %v2282
    %v2691 = vunpack.c.h.b16 %v2282
    %v2692 = vunpack.c.l.b16 %v2283
    %v2693 = vunpack.c.h.b16 %v2283
    %v2694 = vunpack.c.l.b16 %v2284
    %v2695 = vunpack.c.h.b16 %v2284
    %v2696 = vunpack.c.l.b16 %v2285
    %v2697 = vunpack.c.h.b16 %v2285
    %v2698 = vunpack.c.l.b16 %v2286
    %v2699 = vunpack.c.h.b16 %v2286
    %v2700 = vunpack.c.l.b16 %v2287
    %v2701 = vunpack.c.h.b16 %v2287
    %v2702 = vunpack.c.l.b16 %v2288
    %v2703 = vunpack.c.h.b16 %v2288
    %v2704 = vunpack.c.l.b16 %v2289
    %v2705 = vunpack.c.h.b16 %v2289
    %v2706 = vunpack.c.l.b16 %v2290
    %v2707 = vunpack.c.h.b16 %v2290
    %v2708 = vunpack.c.l.b16 %v2291
    %v2709 = vunpack.c.h.b16 %v2291
    %v2710 = vunpack.c.l.b16 %v2292
    %v2711 = vunpack.c.h.b16 %v2292
    %v2712 = vunpack.c.l.b16 %v2293
    %v2713 = vunpack.c.h.b16 %v2293
    %v2714 = vunpack.c.l.b16 %v2294
    %v2715 = vunpack.c.h.b16 %v2294
    %v2716 = vunpack.c.l.b16 %v2295
    %v2717 = vunpack.c.h.b16 %v2295
    %v2718 = vunpack.c.l.b16 %v2296
    %v2719 = vunpack.c.h.b16 %v2296
    %v2720 = vunpack.c.l.b16 %v2297
    %v2721 = vunpack.c.h.b16 %v2297
    %v2722 = vunpack.c.l.b16 %v2298
    %v2723 = vunpack.c.h.b16 %v2298
    %v2724 = vunpack.c.l.b16 %v2299
    %v2725 = vunpack.c.h.b16 %v2299
    %v2726 = vunpack.c.l.b16 %v2300
    %v2727 = vunpack.c.h.b16 %v2300
    %v2728 = vunpack.c.l.b16 %v2301
    %v2729 = vunpack.c.h.b16 %v2301
    %v2730 = vunpack.c.l.b16 %v2302
    %v2731 = vunpack.c.h.b16 %v2302
    %v2732 = vunpack.c.l.b16 %v2303
    %v2733 = vunpack.c.h.b16 %v2303
    %v2734 = vunpack.c.l.b16 %v2304
    %v2735 = vunpack.c.h.b16 %v2304
    %v2736 = vunpack.c.l.b16 %v2305
    %v2737 = vunpack.c.h.b16 %v2305
    %v2738 = vunpack.c.l.b16 %v2306
    %v2739 = vunpack.c.h.b16 %v2306
    %v2740 = vunpack.c.l.b16 %v2307
    %v2741 = vunpack.c.h.b16 %v2307
    %v2742 = vunpack.c.l.b16 %v2308
    %v2743 = vunpack.c.h.b16 %v2308
    %v2744 = vunpack.c.l.b16 %v2309
    %v2745 = vunpack.c.h.b16 %v2309
    %v2746 = vunpack.c.l.b16 %v2310
    %v2747 = vunpack.c.h.b16 %v2310
    %v2748 = vunpack.c.l.b16 %v2311
    %v2749 = vunpack.c.h.b16 %v2311
    %v2750 = vunpack.c.l.b16 %v2312
    %v2751 = vunpack.c.h.b16 %v2312
    %v2752 = vunpack.c.l.b16 %v2313
    %v2753 = vunpack.c.h.b16 %v2313
    %v2754 = vunpack.c.l.b16 %v2314
    %v2755 = vunpack.c.h.b16 %v2314
    %v2756 = vunpack.c.l.b16 %v2315
    %v2757 = vunpack.c.h.b16 %v2315
    %v2758 = vunpack.c.l.b16 %v2316
    %v2759 = vunpack.c.h.b16 %v2316
    %v2760 = vunpack.c.l.b16 %v2317
    %v2761 = vunpack.c.h.b16 %v2317
    %v2762 = vunpack.c.l.b16 %v2318
    %v2763 = vunpack.c.h.b16 %v2318
    %v2764 = vunpack.c.l.b16 %v2319
    %v2765 = vunpack.c.h.b16 %v2319
    %v2766 = vunpack.c.l.b16 %v2320
    %v2767 = vunpack.c.h.b16 %v2320
    %v2768 = vunpack.c.l.b16 %v2321
    %v2769 = vunpack.c.h.b16 %v2321
    %v2770 = vunpack.c.l.b16 %v2322
    %v2771 = vunpack.c.h.b16 %v2322
    %v2772 = vunpack.c.l.b16 %v2323
    %v2773 = vunpack.c.h.b16 %v2323
    %v2774 = vunpack.c.l.b16 %v2324
    %v2775 = vunpack.c.h.b16 %v2324
    %v2776 = vunpack.c.l.b16 %v2325
    %v2777 = vunpack.c.h.b16 %v2325
    %v2778 = vunpack.c.l.b16 %v2326
    %v2779 = vunpack.c.h.b16 %v2326
    %v2780 = vunpack.c.l.b16 %v2327
    %v2781 = vunpack.c.h.b16 %v2327
    %v2782 = vunpack.c.l.b16 %v2328
    %v2783 = vunpack.c.h.b16 %v2328
    %v2784 = vunpack.c.l.b16 %v2329
    %v2785 = vunpack.c.h.b16 %v2329
    %v2786 = vunpack.c.l.b16 %v2330
    %v2787 = vunpack.c.h.b16 %v2330
    %v2788 = vunpack.c.l.b16 %v2331
    %v2789 = vunpack.c.h.b16 %v2331
    %v2790 = vunpack.c.l.b16 %v2332
    %v2791 = vunpack.c.h.b16 %v2332
    %v2792 = vunpack.c.l.b16 %v2333
    %v2793 = vunpack.c.h.b16 %v2333
    %v2794 = vunpack.c.l.b16 %v2334
    %v2795 = vunpack.c.h.b16 %v2334
    %v2796 = vunpack.c.l.b16 %v2335
    %v2797 = vunpack.c.h.b16 %v2335
    %v2798 = vunpack.c.l.b16 %v2336
    %v2799 = vunpack.c.h.b16 %v2336
    %v2800 = vunpack.c.l.b16 %v2337
    %v2801 = vunpack.c.h.b16 %v2337
    %v2802 = vunpack.c.l.b16 %v2338
    %v2803 = vunpack.c.h.b16 %v2338
    %v2804 = vunpack.c.l.b16 %v2339
    %v2805 = vunpack.c.h.b16 %v2339
    %v2806 = vunpack.c.l.b16 %v2340
    %v2807 = vunpack.c.h.b16 %v2340
    %v2808 = vunpack.c.l.b16 %v2341
    %v2809 = vunpack.c.h.b16 %v2341
    %v2810 = vunpack.c.l.b16 %v2342
    %v2811 = vunpack.c.h.b16 %v2342
    %v2812 = vunpack.c.l.b16 %v2343
    %v2813 = vunpack.c.h.b16 %v2343
    %v2814 = vunpack.c.l.b16 %v2344
    %v2815 = vunpack.c.h.b16 %v2344
    %v2816 = vunpack.c.l.b16 %v2345
    %v2817 = vunpack.c.h.b16 %v2345
    %v2818 = vunpack.c.l.b16 %v2346
    %v2819 = vunpack.c.h.b16 %v2346
    %v2820 = vunpack.c.l.b16 %v2347
    %v2821 = vunpack.c.h.b16 %v2347
    %v2822 = vunpack.c.l.b16 %v2348
    %v2823 = vunpack.c.h.b16 %v2348
    %v2824 = vunpack.c.l.b16 %v2349
    %v2825 = vunpack.c.h.b16 %v2349
    %v2826 = vunpack.c.l.b16 %v2350
    %v2827 = vunpack.c.h.b16 %v2350
    %v2828 = vunpack.c.l.b16 %v2351
    %v2829 = vunpack.c.h.b16 %v2351
    %v2830 = vunpack.c.l.b16 %v2352
    %v2831 = vunpack.c.h.b16 %v2352
    %v2832 = vunpack.c.l.b16 %v2353
    %v2833 = vunpack.c.h.b16 %v2353
    %v2834 = vunpack.c.l.b16 %v2354
    %v2835 = vunpack.c.h.b16 %v2354
    %v2836 = vunpack.c.l.b16 %v2355
    %v2837 = vunpack.c.h.b16 %v2355
    %v2838 = vunpack.c.l.b16 %v2356
    %v2839 = vunpack.c.h.b16 %v2356
    %v2840 = vunpack.c.l.b16 %v2357
    %v2841 = vunpack.c.h.b16 %v2357
    %v2842 = vunpack.c.l.b16 %v2358
    %v2843 = vunpack.c.h.b16 %v2358
    %v2844 = vunpack.c.l.b16 %v2359
    %v2845 = vunpack.c.h.b16 %v2359
    %v2846 = vunpack.c.l.b16 %v2360
    %v2847 = vunpack.c.h.b16 %v2360
    %v2848 = vunpack.c.l.b16 %v2361
    %v2849 = vunpack.c.h.b16 %v2361
    %v2850 = vunpack.c.l.b16 %v2362
    %v2851 = vunpack.c.h.b16 %v2362
    %v2852 = vunpack.c.l.b16 %v2363
    %v2853 = vunpack.c.h.b16 %v2363
    %v2854 = vunpack.c.l.b16 %v2364
    %v2855 = vunpack.c.h.b16 %v2364
    %v2856 = vunpack.c.l.b16 %v2365
    %v2857 = vunpack.c.h.b16 %v2365
    %v2858 = vunpack.c.l.b16 %v2366
    %v2859 = vunpack.c.h.b16 %v2366
    %v2860 = vunpack.c.l.b16 %v2367
    %v2861 = vunpack.c.h.b16 %v2367
    %v2862 = vunpack.c.l.b16 %v2368
    %v2863 = vunpack.c.h.b16 %v2368
    %v2864 = vunpack.c.l.b16 %v2369
    %v2865 = vunpack.c.h.b16 %v2369
    %v2866 = vunpack.c.l.b16 %v2370
    %v2867 = vunpack.c.h.b16 %v2370
    %v2868 = vunpack.c.l.b16 %v2371
    %v2869 = vunpack.c.h.b16 %v2371
    %v2870 = vunpack.c.l.b16 %v2372
    %v2871 = vunpack.c.h.b16 %v2372
    %v2872 = vunpack.c.l.b16 %v2373
    %v2873 = vunpack.c.h.b16 %v2373
    %v2874 = vunpack.c.l.b16 %v2374
    %v2875 = vunpack.c.h.b16 %v2374
    %v2876 = vunpack.c.l.b16 %v2375
    %v2877 = vunpack.c.h.b16 %v2375
    %v2878 = vunpack.c.l.b16 %v2376
    %v2879 = vunpack.c.h.b16 %v2376
    %v2880 = vunpack.c.l.b16 %v2377
    %v2881 = vunpack.c.h.b16 %v2377
    %v2882 = vunpack.c.l.b16 %v2378
    %v2883 = vunpack.c.h.b16 %v2378
    %v2884 = vunpack.c.l.b16 %v2379
    %v2885 = vunpack.c.h.b16 %v2379
    %v2886 = vunpack.c.l.b16 %v2380
    %v2887 = vunpack.c.h.b16 %v2380
    %v2888 = vunpack.c.l.b16 %v2381
    %v2889 = vunpack.c.h.b16 %v2381
    %v2890 = vunpack.c.l.b16 %v2382
    %v2891 = vunpack.c.h.b16 %v2382
    %v2892 = vunpack.c.l.b16 %v2383
    %v2893 = vunpack.c.h.b16 %v2383
    %v2894 = vunpack.c.l.b16 %v2384
    %v2895 = vunpack.c.h.b16 %v2384
    %v2896 = vunpack.c.l.b16 %v2385
    %v2897 = vunpack.c.h.b16 %v2385
    %v2898 = vunpack.c.l.b16 %v2386
    %v2899 = vunpack.c.h.b16 %v2386
    %v2900 = vunpack.c.l.b16 %v2387
    %v2901 = vunpack.c.h.b16 %v2387
    %v2902 = vunpack.c.l.b16 %v2388
    %v2903 = vunpack.c.h.b16 %v2388
    %v2904 = vunpack.c.l.b16 %v2389
    %v2905 = vunpack.c.h.b16 %v2389
    %v2906 = vunpack.c.l.b16 %v2390
    %v2907 = vunpack.c.h.b16 %v2390
    %v2908 = vunpack.c.l.b16 %v2391
    %v2909 = vunpack.c.h.b16 %v2391
    %v2910 = vunpack.c.l.b16 %v2392
    %v2911 = vunpack.c.h.b16 %v2392
    %v2912 = vunpack.c.l.b16 %v2393
    %v2913 = vunpack.c.h.b16 %v2393
    %v2914 = vunpack.c.l.b16 %v2394
    %v2915 = vunpack.c.h.b16 %v2394
    %v2916 = vunpack.c.l.b16 %v2395
    %v2917 = vunpack.c.h.b16 %v2395
    %v2918 = vunpack.c.l.b16 %v2396
    %v2919 = vunpack.c.h.b16 %v2396
    %v2920 = vunpack.c.l.b16 %v2397
    %v2921 = vunpack.c.h.b16 %v2397
    %v2922 = vunpack.c.l.b16 %v2398
    %v2923 = vunpack.c.h.b16 %v2398
    %v2924 = vunpack.c.l.b16 %v2399
    %v2925 = vunpack.c.h.b16 %v2399
    %v2926 = vunpack.c.l.b16 %v2400
    %v2927 = vunpack.c.h.b16 %v2400
    %v2928 = vunpack.c.l.b16 %v2401
    %v2929 = vunpack.c.h.b16 %v2401
    %v2930 = vunpack.c.l.b16 %v2402
    %v2931 = vunpack.c.h.b16 %v2402
    %v2932 = vunpack.c.l.b16 %v2403
    %v2933 = vunpack.c.h.b16 %v2403
    %v2934 = vunpack.c.l.b16 %v2404
    %v2935 = vunpack.c.h.b16 %v2404
    %v2936 = vunpack.c.l.b16 %v2405
    %v2937 = vunpack.c.h.b16 %v2405
    %v2938 = vunpack.c.l.b16 %v2406
    %v2939 = vunpack.c.h.b16 %v2406
    %v2940 = vunpack.c.l.b16 %v2407
    %v2941 = vunpack.c.h.b16 %v2407
    %v2942 = vunpack.c.l.b16 %v2408
    %v2943 = vunpack.c.h.b16 %v2408
    %v2944 = vunpack.c.l.b16 %v2409
    %v2945 = vunpack.c.h.b16 %v2409
    %v2946 = vunpack.c.l.b16 %v2410
    %v2947 = vunpack.c.h.b16 %v2410
    %v2948 = vunpack.c.l.b16 %v2411
    %v2949 = vunpack.c.h.b16 %v2411
    %v2950 = vunpack.c.l.b16 %v2412
    %v2951 = vunpack.c.h.b16 %v2412
    %v2952 = vunpack.c.l.b16 %v2413
    %v2953 = vunpack.c.h.b16 %v2413
    %v2954 = vunpack.c.l.b16 %v2414
    %v2955 = vunpack.c.h.b16 %v2414
    %v2956 = vunpack.c.l.b16 %v2415
    %v2957 = vunpack.c.h.b16 %v2415
    %v2958 = vunpack.c.l.b16 %v2416
    %v2959 = vunpack.c.h.b16 %v2416
    %v2960 = vunpack.c.l.b16 %v2417
    %v2961 = vunpack.c.h.b16 %v2417
    %v2962 = vunpack.c.l.b16 %v2418
    %v2963 = vunpack.c.h.b16 %v2418
    %v2964 = vunpack.c.l.b16 %v2419
    %v2965 = vunpack.c.h.b16 %v2419
    %v2966 = vunpack.c.l.b16 %v2420
    %v2967 = vunpack.c.h.b16 %v2420
    %v2968 = vunpack.c.l.b16 %v2421
    %v2969 = vunpack.c.h.b16 %v2421
    %v2970 = vunpack.c.l.b16 %v2422
    %v2971 = vunpack.c.h.b16 %v2422
    %v2972 = vunpack.c.l.b16 %v2423
    %v2973 = vunpack.c.h.b16 %v2423
    %v2974 = vunpack.c.l.b16 %v2424
    %v2975 = vunpack.c.h.b16 %v2424
    %v2976 = vunpack.c.l.b16 %v2425
    %v2977 = vunpack.c.h.b16 %v2425
    %v2978 = vunpack.c.l.b16 %v2426
    %v2979 = vunpack.c.h.b16 %v2426
    %v2980 = vunpack.c.l.b16 %v2427
    %v2981 = vunpack.c.h.b16 %v2427
    %v2982 = vunpack.c.l.b16 %v2428
    %v2983 = vunpack.c.h.b16 %v2428
    %v2984 = vunpack.c.l.b16 %v2429
    %v2985 = vunpack.c.h.b16 %v2429
    %v2986 = vunpack.c.l.b16 %v2430
    %v2987 = vunpack.c.h.b16 %v2430
    %v2988 = vunpack.c.l.b16 %v2431
    %v2989 = vunpack.c.h.b16 %v2431
    %v2990 = vunpack.c.l.b16 %v2432
    %v2991 = vunpack.c.h.b16 %v2432
    %v2992 = vunpack.c.l.b16 %v2433
    %v2993 = vunpack.c.h.b16 %v2433
    %v2994 = vunpack.c.l.b16 %v2434
    %v2995 = vunpack.c.h.b16 %v2434
    %v2996 = vunpack.c.l.b16 %v2435
    %v2997 = vunpack.c.h.b16 %v2435
    %v2998 = vunpack.c.l.b16 %v2436
    %v2999 = vunpack.c.h.b16 %v2436
    %v3000 = vunpack.c.l.b16 %v2437
    %v3001 = vunpack.c.h.b16 %v2437
    %v3002 = vunpack.c.l.b16 %v2438
    %v3003 = vunpack.c.h.b16 %v2438
    %v3004 = vunpack.c.l.b16 %v2439
    %v3005 = vunpack.c.h.b16 %v2439
    %v3006 = vunpack.c.l.b16 %v2440
    %v3007 = vunpack.c.h.b16 %v2440
    %v3008 = vunpack.c.l.b16 %v2441
    %v3009 = vunpack.c.h.b16 %v2441
    %v3010 = vunpack.c.l.b16 %v2442
    %v3011 = vunpack.c.h.b16 %v2442
    %v3012 = vunpack.c.l.b16 %v2443
    %v3013 = vunpack.c.h.b16 %v2443
    %v3014 = vunpack.c.l.b16 %v2444
    %v3015 = vunpack.c.h.b16 %v2444
    %v3016 = vunpack.c.l.b16 %v2445
    %v3017 = vunpack.c.h.b16 %v2445
    %v3018 = vunpack.c.l.b16 %v2446
    %v3019 = vunpack.c.h.b16 %v2446
    %v3020 = vunpack.c.l.b16 %v2447
    %v3021 = vunpack.c.h.b16 %v2447
    %v3022 = vunpack.c.l.b16 %v2448
    %v3023 = vunpack.c.h.b16 %v2448
    %v3024 = vunpack.c.l.b16 %v2449
    %v3025 = vunpack.c.h.b16 %v2449
    %v3026 = vunpack.c.l.b16 %v2450
    %v3027 = vunpack.c.h.b16 %v2450
    %v3028 = vunpack.c.l.b16 %v2451
    %v3029 = vunpack.c.h.b16 %v2451
    %v3030 = vunpack.c.l.b16 %v2452
    %v3031 = vunpack.c.h.b16 %v2452
    %v3032 = vunpack.c.l.b16 %v2453
    %v3033 = vunpack.c.h.b16 %v2453
    %v3034 = vunpack.c.l.b16 %v2454
    %v3035 = vunpack.c.h.b16 %v2454
    %v3036 = vunpack.c.l.b16 %v2455
    %v3037 = vunpack.c.h.b16 %v2455
    %v3038 = vunpack.c.l.b16 %v2456
    %v3039 = vunpack.c.h.b16 %v2456
    %v3040 = vunpack.c.l.b16 %v2457
    %v3041 = vunpack.c.h.b16 %v2457
    %v3042 = vunpack.c.l.b16 %v2458
    %v3043 = vunpack.c.h.b16 %v2458
    %v3044 = vunpack.c.l.b16 %v2459
    %v3045 = vunpack.c.h.b16 %v2459
    %v3046 = vunpack.c.l.b16 %v2460
    %v3047 = vunpack.c.h.b16 %v2460
    %v3048 = vunpack.c.l.b16 %v2461
    %v3049 = vunpack.c.h.b16 %v2461
    %v3050 = vunpack.c.l.b16 %v2462
    %v3051 = vunpack.c.h.b16 %v2462
    %v3052 = vunpack.c.l.b16 %v2463
    %v3053 = vunpack.c.h.b16 %v2463
    %v3054 = vunpack.c.l.b16 %v2464
    %v3055 = vunpack.c.h.b16 %v2464
    %v3056 = vunpack.c.l.b16 %v2465
    %v3057 = vunpack.c.h.b16 %v2465
    %v3058 = vunpack.c.l.b16 %v2466
    %v3059 = vunpack.c.h.b16 %v2466
    %v3060 = vunpack.c.l.b16 %v2467
    %v3061 = vunpack.c.h.b16 %v2467
    %v3062 = vunpack.c.l.b16 %v2468
    %v3063 = vunpack.c.h.b16 %v2468
    %v3064 = vunpack.c.l.b16 %v2469
    %v3065 = vunpack.c.h.b16 %v2469
    %v3066 = vunpack.c.l.b16 %v2470
    %v3067 = vunpack.c.h.b16 %v2470
    %v3068 = vunpack.c.l.b16 %v2471
    %v3069 = vunpack.c.h.b16 %v2471
    %v3070 = vpack.c.b16 %v2690, %v2686
    %v3071 = vpack.c.b16 %v2691, %v2687
    %v3072 = vpack.c.b16 %v2692, %v2688
    %v3073 = vpack.c.b16 %v2693, %v2689
    %v3074 = vpack.c.b16 %v2698, %v2694
    %v3075 = vpack.c.b16 %v2699, %v2695
    %v3076 = vpack.c.b16 %v2700, %v2696
    %v3077 = vpack.c.b16 %v2701, %v2697
    %v3078 = vpack.c.b16 %v2706, %v2702
    %v3079 = vpack.c.b16 %v2707, %v2703
    %v3080 = vpack.c.b16 %v2708, %v2704
    %v3081 = vpack.c.b16 %v2709, %v2705
    %v3082 = vpack.c.b16 %v2714, %v2710
    %v3083 = vpack.c.b16 %v2715, %v2711
    %v3084 = vpack.c.b16 %v2716, %v2712
    %v3085 = vpack.c.b16 %v2717, %v2713
    %v3086 = vpack.c.b16 %v2722, %v2718
    %v3087 = vpack.c.b16 %v2723, %v2719
    %v3088 = vpack.c.b16 %v2724, %v2720
    %v3089 = vpack.c.b16 %v2725, %v2721
    %v3090 = vpack.c.b16 %v2730, %v2726
    %v3091 = vpack.c.b16 %v2731, %v2727
    %v3092 = vpack.c.b16 %v2732, %v2728
    %v3093 = vpack.c.b16 %v2733, %v2729
    %v3094 = vpack.c.b16 %v2738, %v2734
    %v3095 = vpack.c.b16 %v2739, %v2735
    %v3096 = vpack.c.b16 %v2740, %v2736
    %v3097 = vpack.c.b16 %v2741, %v2737
    %v3098 = vpack.c.b16 %v2746, %v2742
    %v3099 = vpack.c.b16 %v2747, %v2743
    %v3100 = vpack.c.b16 %v2748, %v2744
    %v3101 = vpack.c.b16 %v2749, %v2745
    %v3102 = vpack.c.b16 %v2754, %v2750
    %v3103 = vpack.c.b16 %v2755, %v2751
    %v3104 = vpack.c.b16 %v2756, %v2752
    %v3105 = vpack.c.b16 %v2757, %v2753
    %v3106 = vpack.c.b16 %v2762, %v2758
    %v3107 = vpack.c.b16 %v2763, %v2759
    %v3108 = vpack.c.b16 %v2764, %v2760
    %v3109 = vpack.c.b16 %v2765, %v2761
    %v3110 = vpack.c.b16 %v2770, %v2766
    %v3111 = vpack.c.b16 %v2771, %v2767
    %v3112 = vpack.c.b16 %v2772, %v2768
    %v3113 = vpack.c.b16 %v2773, %v2769
    %v3114 = vpack.c.b16 %v2778, %v2774
    %v3115 = vpack.c.b16 %v2779, %v2775
    %v3116 = vpack.c.b16 %v2780, %v2776
    %v3117 = vpack.c.b16 %v2781, %v2777
    %v3118 = vpack.c.b16 %v2786, %v2782
    %v3119 = vpack.c.b16 %v2787, %v2783
    %v3120 = vpack.c.b16 %v2788, %v2784
    %v3121 = vpack.c.b16 %v2789, %v2785
    %v3122 = vpack.c.b16 %v2794, %v2790
    %v3123 = vpack.c.b16 %v2795, %v2791
    %v3124 = vpack.c.b16 %v2796, %v2792
    %v3125 = vpack.c.b16 %v2797, %v2793
    %v3126 = vpack.c.b16 %v2802, %v2798
    %v3127 = vpack.c.b16 %v2803, %v2799
    %v3128 = vpack.c.b16 %v2804, %v2800
    %v3129 = vpack.c.b16 %v2805, %v2801
    %v3130 = vpack.c.b16 %v2810, %v2806
    %v3131 = vpack.c.b16 %v2811, %v2807
    %v3132 = vpack.c.b16 %v2812, %v2808
    %v3133 = vpack.c.b16 %v2813, %v2809
    %v3134 = vpack.c.b16 %v2818, %v2814
    %v3135 = vpack.c.b16 %v2819, %v2815
    %v3136 = vpack.c.b16 %v2820, %v2816
    %v3137 = vpack.c.b16 %v2821, %v2817
    %v3138 = vpack.c.b16 %v2826, %v2822
    %v3139 = vpack.c.b16 %v2827, %v2823
    %v3140 = vpack.c.b16 %v2828, %v2824
    %v3141 = vpack.c.b16 %v2829, %v2825
    %v3142 = vpack.c.b16 %v2834, %v2830
    %v3143 = vpack.c.b16 %v2835, %v2831
    %v3144 = vpack.c.b16 %v2836, %v2832
    %v3145 = vpack.c.b16 %v2837, %v2833
    %v3146 = vpack.c.b16 %v2842, %v2838
    %v3147 = vpack.c.b16 %v2843, %v2839
    %v3148 = vpack.c.b16 %v2844, %v2840
    %v3149 = vpack.c.b16 %v2845, %v2841
    %v3150 = vpack.c.b16 %v2850, %v2846
    %v3151 = vpack.c.b16 %v2851, %v2847
    %v3152 = vpack.c.b16 %v2852, %v2848
    %v3153 = vpack.c.b16 %v2853, %v2849
    %v3154 = vpack.c.b16 %v2858, %v2854
    %v3155 = vpack.c.b16 %v2859, %v2855
    %v3156 = vpack.c.b16 %v2860, %v2856
    %v3157 = vpack.c.b16 %v2861, %v2857
    %v3158 = vpack.c.b16 %v2866, %v2862
    %v3159 = vpack.c.b16 %v2867, %v2863
    %v3160 = vpack.c.b16 %v2868, %v2864
    %v3161 = vpack.c.b16 %v2869, %v2865
    %v3162 = vpack.c.b16 %v2874, %v2870
    %v3163 = vpack.c.b16 %v2875, %v2871
    %v3164 = vpack.c.b16 %v2876, %v2872
    %v3165 = vpack.c.b16 %v2877, %v2873
    %v3166 = vpack.c.b16 %v2882, %v2878
    %v3167 = vpack.c.b16 %v2883, %v2879
    %v3168 = vpack.c.b16 %v2884, %v2880
    %v3169 = vpack.c.b16 %v2885, %v2881
    %v3170 = vpack.c.b16 %v2890, %v2886
    %v3171 = vpack.c.b16 %v2891, %v2887
    %v3172 = vpack.c.b16 %v2892, %v2888
    %v3173 = vpack.c.b16 %v2893, %v2889
    %v3174 = vpack.c.b16 %v2898, %v2894
    %v3175 = vpack.c.b16 %v2899, %v2895
    %v3176 = vpack.c.b16 %v2900, %v2896
    %v3177 = vpack.c.b16 %v2901, %v2897
    %v3178 = vpack.c.b16 %v2906, %v2902
    %v3179 = vpack.c.b16 %v2907, %v2903
    %v3180 = vpack.c.b16 %v2908, %v2904
    %v3181 = vpack.c.b16 %v2909, %v2905
    %v3182 = vpack.c.b16 %v2914, %v2910
    %v3183 = vpack.c.b16 %v2915, %v2911
    %v3184 = vpack.c.b16 %v2916, %v2912
    %v3185 = vpack.c.b16 %v2917, %v2913
    %v3186 = vpack.c.b16 %v2922, %v2918
    %v3187 = vpack.c.b16 %v2923, %v2919
    %v3188 = vpack.c.b16 %v2924, %v2920
    %v3189 = vpack.c.b16 %v2925, %v2921
    %v3190 = vpack.c.b16 %v2930, %v2926
    %v3191 = vpack.c.b16 %v2931, %v2927
    %v3192 = vpack.c.b16 %v2932, %v2928
    %v3193 = vpack.c.b16 %v2933, %v2929
    %v3194 = vpack.c.b16 %v2938, %v2934
    %v3195 = vpack.c.b16 %v2939, %v2935
    %v3196 = vpack.c.b16 %v2940, %v2936
    %v3197 = vpack.c.b16 %v2941, %v2937
    %v3198 = vpack.c.b16 %v2946, %v2942
    %v3199 = vpack.c.b16 %v2947, %v2943
    %v3200 = vpack.c.b16 %v2948, %v2944
    %v3201 = vpack.c.b16 %v2949, %v2945
    %v3202 = vpack.c.b16 %v2954, %v2950
    %v3203 = vpack.c.b16 %v2955, %v2951
    %v3204 = vpack.c.b16 %v2956, %v2952
    %v3205 = vpack.c.b16 %v2957, %v2953
    %v3206 = vpack.c.b16 %v2962, %v2958
    %v3207 = vpack.c.b16 %v2963, %v2959
    %v3208 = vpack.c.b16 %v2964, %v2960
    %v3209 = vpack.c.b16 %v2965, %v2961
    %v3210 = vpack.c.b16 %v2970, %v2966
    %v3211 = vpack.c.b16 %v2971, %v2967
    %v3212 = vpack.c.b16 %v2972, %v2968
    %v3213 = vpack.c.b16 %v2973, %v2969
    %v3214 = vpack.c.b16 %v2978, %v2974
    %v3215 = vpack.c.b16 %v2979, %v2975
    %v3216 = vpack.c.b16 %v2980, %v2976
    %v3217 = vpack.c.b16 %v2981, %v2977
    %v3218 = vpack.c.b16 %v2986, %v2982
    %v3219 = vpack.c.b16 %v2987, %v2983
    %v3220 = vpack.c.b16 %v2988, %v2984
    %v3221 = vpack.c.b16 %v2989, %v2985
    %v3222 = vpack.c.b16 %v2994, %v2990
    %v3223 = vpack.c.b16 %v2995, %v2991
    %v3224 = vpack.c.b16 %v2996, %v2992
    %v3225 = vpack.c.b16 %v2997, %v2993
    %v3226 = vpack.c.b16 %v3002, %v2998
    %v3227 = vpack.c.b16 %v3003, %v2999
    %v3228 = vpack.c.b16 %v3004, %v3000
    %v3229 = vpack.c.b16 %v3005, %v3001
    %v3230 = vpack.c.b16 %v3010, %v3006
    %v3231 = vpack.c.b16 %v3011, %v3007
    %v3232 = vpack.c.b16 %v3012, %v3008
    %v3233 = vpack.c.b16 %v3013, %v3009
    %v3234 = vpack.c.b16 %v3018, %v3014
    %v3235 = vpack.c.b16 %v3019, %v3015
    %v3236 = vpack.c.b16 %v3020, %v3016
    %v3237 = vpack.c.b16 %v3021, %v3017
    %v3238 = vpack.c.b16 %v3026, %v3022
    %v3239 = vpack.c.b16 %v3027, %v3023
    %v3240 = vpack.c.b16 %v3028, %v3024
    %v3241 = vpack.c.b16 %v3029, %v3025
    %v3242 = vpack.c.b16 %v3034, %v3030
    %v3243 = vpack.c.b16 %v3035, %v3031
    %v3244 = vpack.c.b16 %v3036, %v3032
    %v3245 = vpack.c.b16 %v3037, %v3033
    %v3246 = vpack.c.b16 %v3042, %v3038
    %v3247 = vpack.c.b16 %v3043, %v3039
    %v3248 = vpack.c.b16 %v3044, %v3040
    %v3249 = vpack.c.b16 %v3045, %v3041
    %v3250 = vpack.c.b16 %v3050, %v3046
    %v3251 = vpack.c.b16 %v3051, %v3047
    %v3252 = vpack.c.b16 %v3052, %v3048
    %v3253 = vpack.c.b16 %v3053, %v3049
    %v3254 = vpack.c.b16 %v3058, %v3054
    %v3255 = vpack.c.b16 %v3059, %v3055
    %v3256 = vpack.c.b16 %v3060, %v3056
    %v3257 = vpack.c.b16 %v3061, %v3057
    %v3258 = vpack.c.b16 %v3066, %v3062
    %v3259 = vpack.c.b16 %v3067, %v3063
    %v3260 = vpack.c.b16 %v3068, %v3064
    %v3261 = vpack.c.b16 %v3069, %v3065
    %3454 = vmatprep.subr.bf16.mxu0 %v3099
    %3455 = vmatpush1.bf16.msra.mxu0 %v3098
    %3456 = vmatprep.subr.bf16.mxu0 %v3095
    %3457 = vmatpush1.bf16.msra.mxu0 %v3094
    %3458 = vmatprep.subr.bf16.mxu0 %v3091
    %3459 = vmatpush1.bf16.msra.mxu0 %v3090
    %3460 = vmatprep.subr.bf16.mxu0 %v3087
    %3461 = vmatpush1.bf16.msra.mxu0 %v3086
    %3462 = vmatprep.subr.bf16.mxu0 %v3083
    %3463 = vmatpush1.bf16.msra.mxu0 %v3082
    %3464 = vmatprep.subr.bf16.mxu0 %v3079
    %3465 = vmatpush1.bf16.msra.mxu0 %v3078
    %3466 = vmatprep.subr.bf16.mxu0 %v3075
    %3467 = vmatpush1.bf16.msra.mxu0 %v3074
    %3468 = vmatprep.subr.bf16.mxu0 %v3071
    %3469 = vmatpush1.bf16.msra.mxu0 %v3070
    %3470 = vmatprep.subr.bf16.mxu0 %v3131
    %3471 = vmatpush2.bf16.msra.mxu0 %v3130
    %3472 = vmatprep.subr.bf16.mxu0 %v3127
    %3473 = vmatpush2.bf16.msra.mxu0 %v3126
    %3474 = vmatprep.subr.bf16.mxu0 %v3123
    %3475 = vmatpush2.bf16.msra.mxu0 %v3122
    %3476 = vmatprep.subr.bf16.mxu0 %v3119
    %3477 = vmatpush2.bf16.msra.mxu0 %v3118
    %3478 = vmatprep.subr.bf16.mxu0 %v3115
    %3479 = vmatpush2.bf16.msra.mxu0 %v3114
    %3480 = vmatprep.subr.bf16.mxu0 %v3111
    %3481 = vmatpush2.bf16.msra.mxu0 %v3110
    %3482 = vmatprep.subr.bf16.mxu0 %v3107
    %3483 = vmatpush2.bf16.msra.mxu0 %v3106
    %3484 = vmatprep.subr.bf16.mxu0 %v3103
    %3485 = vmatpush2.bf16.msra.mxu0 %v3102
    %3486 = vmatprep.mubr.bf16.mxu0 %v2275
    %3487 = vmatmul.mubr.bf16.gmra.mxu0 %v2274
    %v3488 = vpop.f32.mrf.mxu0
    %v3489 = vadd.f32 %v2477, %v3488
    %v3490 = vpop.f32.mrf.mxu0
    %v3491 = vadd.f32 %v2481, %v3490
    %v3492 = vpop.f32.mrf.mxu0
    %v3493 = vpop.f32.mrf.mxu0
    %3494 = vdwg.mxu0
    %3495 = vmatprep.subr.bf16.mxu0 %v3163
    %3496 = vmatpush1.bf16.msra.mxu0 %v3162
    %3497 = vmatprep.subr.bf16.mxu0 %v3159
    %3498 = vmatpush1.bf16.msra.mxu0 %v3158
    %3499 = vmatprep.subr.bf16.mxu0 %v3155
    %3500 = vmatpush1.bf16.msra.mxu0 %v3154
    %3501 = vmatprep.subr.bf16.mxu0 %v3151
    %3502 = vmatpush1.bf16.msra.mxu0 %v3150
    %3503 = vmatprep.subr.bf16.mxu0 %v3147
    %3504 = vmatpush1.bf16.msra.mxu0 %v3146
    %3505 = vmatprep.subr.bf16.mxu0 %v3143
    %3506 = vmatpush1.bf16.msra.mxu0 %v3142
    %3507 = vmatprep.subr.bf16.mxu0 %v3139
    %3508 = vmatpush1.bf16.msra.mxu0 %v3138
    %3509 = vmatprep.subr.bf16.mxu0 %v3135
    %3510 = vmatpush1.bf16.msra.mxu0 %v3134
    %3511 = vmatprep.subr.bf16.mxu0 %v3195
    %3512 = vmatpush2.bf16.msra.mxu0 %v3194
    %3513 = vmatprep.subr.bf16.mxu0 %v3191
    %3514 = vmatpush2.bf16.msra.mxu0 %v3190
    %3515 = vmatprep.subr.bf16.mxu0 %v3187
    %3516 = vmatpush2.bf16.msra.mxu0 %v3186
    %3517 = vmatprep.subr.bf16.mxu0 %v3183
    %3518 = vmatpush2.bf16.msra.mxu0 %v3182
    %3519 = vmatprep.subr.bf16.mxu0 %v3179
    %3520 = vmatpush2.bf16.msra.mxu0 %v3178
    %3521 = vmatprep.subr.bf16.mxu0 %v3175
    %3522 = vmatpush2.bf16.msra.mxu0 %v3174
    %3523 = vmatprep.subr.bf16.mxu0 %v3171
    %3524 = vmatpush2.bf16.msra.mxu0 %v3170
    %3525 = vmatprep.subr.bf16.mxu0 %v3167
    %3526 = vmatpush2.bf16.msra.mxu0 %v3166
    %3527 = vmatprep.mubr.bf16.mxu0 %v2277
    %3528 = vmatmul.mubr.bf16.gmra.mxu0 %v2276
    %v3529 = vpop.f32.mrf.mxu0
    %v3530 = vadd.f32 %v3489, %v3529
    %v3531 = vpop.f32.mrf.mxu0
    %v3532 = vadd.f32 %v3491, %v3531
    %v3533 = vpop.f32.mrf.mxu0
    %v3534 = vpop.f32.mrf.mxu0
    %3535 = vdwg.mxu0
    %3536 = vmatprep.subr.bf16.mxu0 %v3227
    %3537 = vmatpush1.bf16.msra.mxu0 %v3226
    %3538 = vmatprep.subr.bf16.mxu0 %v3223
    %3539 = vmatpush1.bf16.msra.mxu0 %v3222
    %3540 = vmatprep.subr.bf16.mxu0 %v3219
    %3541 = vmatpush1.bf16.msra.mxu0 %v3218
    %3542 = vmatprep.subr.bf16.mxu0 %v3215
    %3543 = vmatpush1.bf16.msra.mxu0 %v3214
    %3544 = vmatprep.subr.bf16.mxu0 %v3211
    %3545 = vmatpush1.bf16.msra.mxu0 %v3210
    %3546 = vmatprep.subr.bf16.mxu0 %v3207
    %3547 = vmatpush1.bf16.msra.mxu0 %v3206
    %3548 = vmatprep.subr.bf16.mxu0 %v3203
    %3549 = vmatpush1.bf16.msra.mxu0 %v3202
    %3550 = vmatprep.subr.bf16.mxu0 %v3199
    %3551 = vmatpush1.bf16.msra.mxu0 %v3198
    %3552 = vmatprep.subr.bf16.mxu0 %v3259
    %3553 = vmatpush2.bf16.msra.mxu0 %v3258
    %3554 = vmatprep.subr.bf16.mxu0 %v3255
    %3555 = vmatpush2.bf16.msra.mxu0 %v3254
    %3556 = vmatprep.subr.bf16.mxu0 %v3251
    %3557 = vmatpush2.bf16.msra.mxu0 %v3250
    %3558 = vmatprep.subr.bf16.mxu0 %v3247
    %3559 = vmatpush2.bf16.msra.mxu0 %v3246
    %3560 = vmatprep.subr.bf16.mxu0 %v3243
    %3561 = vmatpush2.bf16.msra.mxu0 %v3242
    %3562 = vmatprep.subr.bf16.mxu0 %v3239
    %3563 = vmatpush2.bf16.msra.mxu0 %v3238
    %3564 = vmatprep.subr.bf16.mxu0 %v3235
    %3565 = vmatpush2.bf16.msra.mxu0 %v3234
    %3566 = vmatprep.subr.bf16.mxu0 %v3231
    %3567 = vmatpush2.bf16.msra.mxu0 %v3230
    %3568 = vmatprep.mubr.bf16.mxu0 %v2279
    %3569 = vmatmul.mubr.bf16.gmra.mxu0 %v2278
    %v3570 = vpop.f32.mrf.mxu0
    %v3571 = vadd.f32 %v3530, %v3570
    %v3572 = vpop.f32.mrf.mxu0
    %v3573 = vadd.f32 %v3532, %v3572
    %v3574 = vpop.f32.mrf.mxu0
    %v3575 = vpop.f32.mrf.mxu0
    %3576 = vdwg.mxu0
    %3577 = vmatprep.subr.bf16.mxu0 %v3101
    %3578 = vmatpush1.bf16.msra.mxu0 %v3100
    %3579 = vmatprep.subr.bf16.mxu0 %v3097
    %3580 = vmatpush1.bf16.msra.mxu0 %v3096
    %3581 = vmatprep.subr.bf16.mxu0 %v3093
    %3582 = vmatpush1.bf16.msra.mxu0 %v3092
    %3583 = vmatprep.subr.bf16.mxu0 %v3089
    %3584 = vmatpush1.bf16.msra.mxu0 %v3088
    %3585 = vmatprep.subr.bf16.mxu0 %v3085
    %3586 = vmatpush1.bf16.msra.mxu0 %v3084
    %3587 = vmatprep.subr.bf16.mxu0 %v3081
    %3588 = vmatpush1.bf16.msra.mxu0 %v3080
    %3589 = vmatprep.subr.bf16.mxu0 %v3077
    %3590 = vmatpush1.bf16.msra.mxu0 %v3076
    %3591 = vmatprep.subr.bf16.mxu0 %v3073
    %3592 = vmatpush1.bf16.msra.mxu0 %v3072
    %3593 = vmatprep.subr.bf16.mxu0 %v3133
    %3594 = vmatpush2.bf16.msra.mxu0 %v3132
    %3595 = vmatprep.subr.bf16.mxu0 %v3129
    %3596 = vmatpush2.bf16.msra.mxu0 %v3128
    %3597 = vmatprep.subr.bf16.mxu0 %v3125
    %3598 = vmatpush2.bf16.msra.mxu0 %v3124
    %3599 = vmatprep.subr.bf16.mxu0 %v3121
    %3600 = vmatpush2.bf16.msra.mxu0 %v3120
    %3601 = vmatprep.subr.bf16.mxu0 %v3117
    %3602 = vmatpush2.bf16.msra.mxu0 %v3116
    %3603 = vmatprep.subr.bf16.mxu0 %v3113
    %3604 = vmatpush2.bf16.msra.mxu0 %v3112
    %3605 = vmatprep.subr.bf16.mxu0 %v3109
    %3606 = vmatpush2.bf16.msra.mxu0 %v3108
    %3607 = vmatprep.subr.bf16.mxu0 %v3105
    %3608 = vmatpush2.bf16.msra.mxu0 %v3104
    %3609 = vmatprep.mubr.bf16.mxu0 %v2275
    %3610 = vmatmul.mubr.bf16.gmra.mxu0 %v2274
    %v3611 = vpop.f32.mrf.mxu0
    %v3612 = vadd.f32 %v2485, %v3611
    %v3613 = vpop.f32.mrf.mxu0
    %v3614 = vadd.f32 %v2489, %v3613
    %v3615 = vpop.f32.mrf.mxu0
    %v3616 = vpop.f32.mrf.mxu0
    %3617 = vdwg.mxu0
    %3618 = vmatprep.subr.bf16.mxu0 %v3165
    %3619 = vmatpush1.bf16.msra.mxu0 %v3164
    %3620 = vmatprep.subr.bf16.mxu0 %v3161
    %3621 = vmatpush1.bf16.msra.mxu0 %v3160
    %3622 = vmatprep.subr.bf16.mxu0 %v3157
    %3623 = vmatpush1.bf16.msra.mxu0 %v3156
    %3624 = vmatprep.subr.bf16.mxu0 %v3153
    %3625 = vmatpush1.bf16.msra.mxu0 %v3152
    %3626 = vmatprep.subr.bf16.mxu0 %v3149
    %3627 = vmatpush1.bf16.msra.mxu0 %v3148
    %3628 = vmatprep.subr.bf16.mxu0 %v3145
    %3629 = vmatpush1.bf16.msra.mxu0 %v3144
    %3630 = vmatprep.subr.bf16.mxu0 %v3141
    %3631 = vmatpush1.bf16.msra.mxu0 %v3140
    %3632 = vmatprep.subr.bf16.mxu0 %v3137
    %3633 = vmatpush1.bf16.msra.mxu0 %v3136
    %3634 = vmatprep.subr.bf16.mxu0 %v3197
    %3635 = vmatpush2.bf16.msra.mxu0 %v3196
    %3636 = vmatprep.subr.bf16.mxu0 %v3193
    %3637 = vmatpush2.bf16.msra.mxu0 %v3192
    %3638 = vmatprep.subr.bf16.mxu0 %v3189
    %3639 = vmatpush2.bf16.msra.mxu0 %v3188
    %3640 = vmatprep.subr.bf16.mxu0 %v3185
    %3641 = vmatpush2.bf16.msra.mxu0 %v3184
    %3642 = vmatprep.subr.bf16.mxu0 %v3181
    %3643 = vmatpush2.bf16.msra.mxu0 %v3180
    %3644 = vmatprep.subr.bf16.mxu0 %v3177
    %3645 = vmatpush2.bf16.msra.mxu0 %v3176
    %3646 = vmatprep.subr.bf16.mxu0 %v3173
    %3647 = vmatpush2.bf16.msra.mxu0 %v3172
    %3648 = vmatprep.subr.bf16.mxu0 %v3169
    %3649 = vmatpush2.bf16.msra.mxu0 %v3168
    %3650 = vmatprep.mubr.bf16.mxu0 %v2277
    %3651 = vmatmul.mubr.bf16.gmra.mxu0 %v2276
    %v3652 = vpop.f32.mrf.mxu0
    %v3653 = vadd.f32 %v3612, %v3652
    %v3654 = vpop.f32.mrf.mxu0
    %v3655 = vadd.f32 %v3614, %v3654
    %v3656 = vpop.f32.mrf.mxu0
    %v3657 = vpop.f32.mrf.mxu0
    %3658 = vdwg.mxu0
    %3659 = vmatprep.subr.bf16.mxu0 %v3229
    %3660 = vmatpush1.bf16.msra.mxu0 %v3228
    %3661 = vmatprep.subr.bf16.mxu0 %v3225
    %3662 = vmatpush1.bf16.msra.mxu0 %v3224
    %3663 = vmatprep.subr.bf16.mxu0 %v3221
    %3664 = vmatpush1.bf16.msra.mxu0 %v3220
    %3665 = vmatprep.subr.bf16.mxu0 %v3217
    %3666 = vmatpush1.bf16.msra.mxu0 %v3216
    %3667 = vmatprep.subr.bf16.mxu0 %v3213
    %3668 = vmatpush1.bf16.msra.mxu0 %v3212
    %3669 = vmatprep.subr.bf16.mxu0 %v3209
    %3670 = vmatpush1.bf16.msra.mxu0 %v3208
    %3671 = vmatprep.subr.bf16.mxu0 %v3205
    %3672 = vmatpush1.bf16.msra.mxu0 %v3204
    %3673 = vmatprep.subr.bf16.mxu0 %v3201
    %3674 = vmatpush1.bf16.msra.mxu0 %v3200
    %3675 = vmatprep.subr.bf16.mxu0 %v3261
    %3676 = vmatpush2.bf16.msra.mxu0 %v3260
    %3677 = vmatprep.subr.bf16.mxu0 %v3257
    %3678 = vmatpush2.bf16.msra.mxu0 %v3256
    %3679 = vmatprep.subr.bf16.mxu0 %v3253
    %3680 = vmatpush2.bf16.msra.mxu0 %v3252
    %3681 = vmatprep.subr.bf16.mxu0 %v3249
    %3682 = vmatpush2.bf16.msra.mxu0 %v3248
    %3683 = vmatprep.subr.bf16.mxu0 %v3245
    %3684 = vmatpush2.bf16.msra.mxu0 %v3244
    %3685 = vmatprep.subr.bf16.mxu0 %v3241
    %3686 = vmatpush2.bf16.msra.mxu0 %v3240
    %3687 = vmatprep.subr.bf16.mxu0 %v3237
    %3688 = vmatpush2.bf16.msra.mxu0 %v3236
    %3689 = vmatprep.subr.bf16.mxu0 %v3233
    %3690 = vmatpush2.bf16.msra.mxu0 %v3232
    %3691 = vmatprep.mubr.bf16.mxu0 %v2279
    %3692 = vmatmul.mubr.bf16.gmra.mxu0 %v2278
    %v3693 = vpop.f32.mrf.mxu0
    %v3694 = vadd.f32 %v3653, %v3693
    %v3695 = vpop.f32.mrf.mxu0
    %v3696 = vadd.f32 %v3655, %v3695
    %v3697 = vpop.f32.mrf.mxu0
    %v3698 = vpop.f32.mrf.mxu0
    %3699 = vdwg.mxu0
    %v3700 = vmax.f32 %v3571, 0.0
    %v3701 = vmax.f32 %v3573, 0.0
    %v3702 = vmax.f32 %v3694, 0.0
    %v3703 = vmax.f32 %v3696, 0.0
    %v3704 = vpack.c.bf16 %v3700, %v3700
    %v3705 = vpack.c.bf16 %v3701, %v3701
    %v3706 = vpack.c.bf16 %v3702, %v3702
    %v3707 = vpack.c.bf16 %v3703, %v3703
    %v3708 = vld [vmem:[#allocation11] sm:$0xf]
    %v3709 = vld [vmem:[#allocation11 + $0x4] sm:$0xf]
    %v3710 = vld [vmem:[#allocation11 + $0x8] sm:$0xf]
    %v3711 = vld [vmem:[#allocation11 + $0xc] sm:$0xf]
    %v3712 = vld [vmem:[#allocation11 + $0x10] sm:$0xf]
    %v3713 = vld [vmem:[#allocation11 + $0x14] sm:$0xf]
    %v3714 = vld [vmem:[#allocation11 + $0x18] sm:$0xf]
    %v3715 = vld [vmem:[#allocation11 + $0x1c] sm:$0xf]
    %v3716 = vld [vmem:[#allocation11 + $0x20] sm:$0xf]
    %v3717 = vld [vmem:[#allocation11 + $0x24] sm:$0xf]
    %v3718 = vld [vmem:[#allocation11 + $0x28] sm:$0xf]
    %v3719 = vld [vmem:[#allocation11 + $0x2c] sm:$0xf]
    %v3720 = vld [vmem:[#allocation11 + $0x30] sm:$0xf]
    %v3721 = vld [vmem:[#allocation11 + $0x34] sm:$0xf]
    %v3722 = vld [vmem:[#allocation11 + $0x38] sm:$0xf]
    %v3723 = vld [vmem:[#allocation11 + $0x3c] sm:$0xf]
    %v3724 = vld [vmem:[#allocation11 + $0x40] sm:$0xf]
    %v3725 = vld [vmem:[#allocation11 + $0x44] sm:$0xf]
    %v3726 = vld [vmem:[#allocation11 + $0x48] sm:$0xf]
    %v3727 = vld [vmem:[#allocation11 + $0x4c] sm:$0xf]
    %v3728 = vld [vmem:[#allocation11 + $0x50] sm:$0xf]
    %v3729 = vld [vmem:[#allocation11 + $0x54] sm:$0xf]
    %v3730 = vld [vmem:[#allocation11 + $0x58] sm:$0xf]
    %v3731 = vld [vmem:[#allocation11 + $0x5c] sm:$0xf]
    %v3732 = vld [vmem:[#allocation11 + $0x60] sm:$0xf]
    %v3733 = vld [vmem:[#allocation11 + $0x64] sm:$0xf]
    %v3734 = vld [vmem:[#allocation11 + $0x68] sm:$0xf]
    %v3735 = vld [vmem:[#allocation11 + $0x6c] sm:$0xf]
    %v3736 = vld [vmem:[#allocation11 + $0x70] sm:$0xf]
    %v3737 = vld [vmem:[#allocation11 + $0x74] sm:$0xf]
    %v3738 = vld [vmem:[#allocation11 + $0x78] sm:$0xf]
    %v3739 = vld [vmem:[#allocation11 + $0x7c] sm:$0xf]
    %v3740 = vld [vmem:[#allocation11 + $0x80] sm:$0xf]
    %v3741 = vld [vmem:[#allocation11 + $0x84] sm:$0xf]
    %v3742 = vld [vmem:[#allocation11 + $0x88] sm:$0xf]
    %v3743 = vld [vmem:[#allocation11 + $0x8c] sm:$0xf]
    %v3744 = vld [vmem:[#allocation11 + $0x90] sm:$0xf]
    %v3745 = vld [vmem:[#allocation11 + $0x94] sm:$0xf]
    %v3746 = vld [vmem:[#allocation11 + $0x98] sm:$0xf]
    %v3747 = vld [vmem:[#allocation11 + $0x9c] sm:$0xf]
    %v3748 = vld [vmem:[#allocation11 + $0xa0] sm:$0xf]
    %v3749 = vld [vmem:[#allocation11 + $0xa4] sm:$0xf]
    %v3750 = vld [vmem:[#allocation11 + $0xa8] sm:$0xf]
    %v3751 = vld [vmem:[#allocation11 + $0xac] sm:$0xf]
    %v3752 = vld [vmem:[#allocation11 + $0xb0] sm:$0xf]
    %v3753 = vld [vmem:[#allocation11 + $0xb4] sm:$0xf]
    %v3754 = vld [vmem:[#allocation11 + $0xb8] sm:$0xf]
    %v3755 = vld [vmem:[#allocation11 + $0xbc] sm:$0xf]
    %v3756 = vld [vmem:[#allocation11 + $0xc0] sm:$0xf]
    %v3757 = vld [vmem:[#allocation11 + $0xc4] sm:$0xf]
    %v3758 = vld [vmem:[#allocation11 + $0xc8] sm:$0xf]
    %v3759 = vld [vmem:[#allocation11 + $0xcc] sm:$0xf]
    %v3760 = vld [vmem:[#allocation11 + $0xd0] sm:$0xf]
    %v3761 = vld [vmem:[#allocation11 + $0xd4] sm:$0xf]
    %v3762 = vld [vmem:[#allocation11 + $0xd8] sm:$0xf]
    %v3763 = vld [vmem:[#allocation11 + $0xdc] sm:$0xf]
    %v3764 = vld [vmem:[#allocation11 + $0xe0] sm:$0xf]
    %v3765 = vld [vmem:[#allocation11 + $0xe4] sm:$0xf]
    %v3766 = vld [vmem:[#allocation11 + $0xe8] sm:$0xf]
    %v3767 = vld [vmem:[#allocation11 + $0xec] sm:$0xf]
    %v3768 = vld [vmem:[#allocation11 + $0xf0] sm:$0xf]
    %v3769 = vld [vmem:[#allocation11 + $0xf4] sm:$0xf]
    %v3770 = vld [vmem:[#allocation11 + $0xf8] sm:$0xf]
    %v3771 = vld [vmem:[#allocation11 + $0xfc] sm:$0xf]
    %v3772 = vld [vmem:[#allocation13] sm:$0x1]
    %v3774 = vlaneseq
    %v3775 = vshrl.u32 %v3774, 7
    %v3776 = vsub.s32 0, %v3775
    %v3777 = vrot.slane %v3772, %v3776
    %v3843 = vunpack.c.l.b16 %v3708
    %v3844 = vunpack.c.l.b16 %v3709
    %v3845 = vunpack.c.l.b16 %v3710
    %v3846 = vunpack.c.l.b16 %v3711
    %v3847 = vunpack.c.l.b16 %v3712
    %v3848 = vunpack.c.l.b16 %v3713
    %v3849 = vunpack.c.l.b16 %v3714
    %v3850 = vunpack.c.l.b16 %v3715
    %v3851 = vunpack.c.l.b16 %v3716
    %v3852 = vunpack.c.l.b16 %v3717
    %v3853 = vunpack.c.l.b16 %v3718
    %v3854 = vunpack.c.l.b16 %v3719
    %v3855 = vunpack.c.l.b16 %v3720
    %v3856 = vunpack.c.l.b16 %v3721
    %v3857 = vunpack.c.l.b16 %v3722
    %v3858 = vunpack.c.l.b16 %v3723
    %v3859 = vunpack.c.l.b16 %v3724
    %v3860 = vunpack.c.l.b16 %v3725
    %v3861 = vunpack.c.l.b16 %v3726
    %v3862 = vunpack.c.l.b16 %v3727
    %v3863 = vunpack.c.l.b16 %v3728
    %v3864 = vunpack.c.l.b16 %v3729
    %v3865 = vunpack.c.l.b16 %v3730
    %v3866 = vunpack.c.l.b16 %v3731
    %v3867 = vunpack.c.l.b16 %v3732
    %v3868 = vunpack.c.l.b16 %v3733
    %v3869 = vunpack.c.l.b16 %v3734
    %v3870 = vunpack.c.l.b16 %v3735
    %v3871 = vunpack.c.l.b16 %v3736
    %v3872 = vunpack.c.l.b16 %v3737
    %v3873 = vunpack.c.l.b16 %v3738
    %v3874 = vunpack.c.l.b16 %v3739
    %v3875 = vunpack.c.l.b16 %v3740
    %v3876 = vunpack.c.l.b16 %v3741
    %v3877 = vunpack.c.l.b16 %v3742
    %v3878 = vunpack.c.l.b16 %v3743
    %v3879 = vunpack.c.l.b16 %v3744
    %v3880 = vunpack.c.l.b16 %v3745
    %v3881 = vunpack.c.l.b16 %v3746
    %v3882 = vunpack.c.l.b16 %v3747
    %v3883 = vunpack.c.l.b16 %v3748
    %v3884 = vunpack.c.l.b16 %v3749
    %v3885 = vunpack.c.l.b16 %v3750
    %v3886 = vunpack.c.l.b16 %v3751
    %v3887 = vunpack.c.l.b16 %v3752
    %v3888 = vunpack.c.l.b16 %v3753
    %v3889 = vunpack.c.l.b16 %v3754
    %v3890 = vunpack.c.l.b16 %v3755
    %v3891 = vunpack.c.l.b16 %v3756
    %v3892 = vunpack.c.l.b16 %v3757
    %v3893 = vunpack.c.l.b16 %v3758
    %v3894 = vunpack.c.l.b16 %v3759
    %v3895 = vunpack.c.l.b16 %v3760
    %v3896 = vunpack.c.l.b16 %v3761
    %v3897 = vunpack.c.l.b16 %v3762
    %v3898 = vunpack.c.l.b16 %v3763
    %v3899 = vunpack.c.l.b16 %v3764
    %v3900 = vunpack.c.l.b16 %v3765
    %v3901 = vunpack.c.l.b16 %v3766
    %v3902 = vunpack.c.l.b16 %v3767
    %v3903 = vunpack.c.l.b16 %v3768
    %v3904 = vunpack.c.l.b16 %v3769
    %v3905 = vunpack.c.l.b16 %v3770
    %v3906 = vunpack.c.l.b16 %v3771
    %v3907 = vpack.c.b16 %v3844, %v3843
    %v3908 = vpack.c.b16 %v3846, %v3845
    %v3909 = vpack.c.b16 %v3848, %v3847
    %v3910 = vpack.c.b16 %v3850, %v3849
    %v3911 = vpack.c.b16 %v3852, %v3851
    %v3912 = vpack.c.b16 %v3854, %v3853
    %v3913 = vpack.c.b16 %v3856, %v3855
    %v3914 = vpack.c.b16 %v3858, %v3857
    %v3915 = vpack.c.b16 %v3860, %v3859
    %v3916 = vpack.c.b16 %v3862, %v3861
    %v3917 = vpack.c.b16 %v3864, %v3863
    %v3918 = vpack.c.b16 %v3866, %v3865
    %v3919 = vpack.c.b16 %v3868, %v3867
    %v3920 = vpack.c.b16 %v3870, %v3869
    %v3921 = vpack.c.b16 %v3872, %v3871
    %v3922 = vpack.c.b16 %v3874, %v3873
    %v3923 = vpack.c.b16 %v3876, %v3875
    %v3924 = vpack.c.b16 %v3878, %v3877
    %v3925 = vpack.c.b16 %v3880, %v3879
    %v3926 = vpack.c.b16 %v3882, %v3881
    %v3927 = vpack.c.b16 %v3884, %v3883
    %v3928 = vpack.c.b16 %v3886, %v3885
    %v3929 = vpack.c.b16 %v3888, %v3887
    %v3930 = vpack.c.b16 %v3890, %v3889
    %v3931 = vpack.c.b16 %v3892, %v3891
    %v3932 = vpack.c.b16 %v3894, %v3893
    %v3933 = vpack.c.b16 %v3896, %v3895
    %v3934 = vpack.c.b16 %v3898, %v3897
    %v3935 = vpack.c.b16 %v3900, %v3899
    %v3936 = vpack.c.b16 %v3902, %v3901
    %v3937 = vpack.c.b16 %v3904, %v3903
    %v3938 = vpack.c.b16 %v3906, %v3905
    %3971 = vmatprep.subr.bf16.mxu0 0
    %3972 = vmatpush1.bf16.msra.mxu0 %v3914
    %3973 = vmatprep.subr.bf16.mxu0 0
    %3974 = vmatpush1.bf16.msra.mxu0 %v3913
    %3975 = vmatprep.subr.bf16.mxu0 0
    %3976 = vmatpush1.bf16.msra.mxu0 %v3912
    %3977 = vmatprep.subr.bf16.mxu0 0
    %3978 = vmatpush1.bf16.msra.mxu0 %v3911
    %3979 = vmatprep.subr.bf16.mxu0 0
    %3980 = vmatpush1.bf16.msra.mxu0 %v3910
    %3981 = vmatprep.subr.bf16.mxu0 0
    %3982 = vmatpush1.bf16.msra.mxu0 %v3909
    %3983 = vmatprep.subr.bf16.mxu0 0
    %3984 = vmatpush1.bf16.msra.mxu0 %v3908
    %3985 = vmatprep.subr.bf16.mxu0 0
    %3986 = vmatpush1.bf16.msra.mxu0 %v3907
    %3987 = vmatprep.subr.bf16.mxu0 0
    %3988 = vmatpush2.bf16.msra.mxu0 %v3922
    %3989 = vmatprep.subr.bf16.mxu0 0
    %3990 = vmatpush2.bf16.msra.mxu0 %v3921
    %3991 = vmatprep.subr.bf16.mxu0 0
    %3992 = vmatpush2.bf16.msra.mxu0 %v3920
    %3993 = vmatprep.subr.bf16.mxu0 0
    %3994 = vmatpush2.bf16.msra.mxu0 %v3919
    %3995 = vmatprep.subr.bf16.mxu0 0
    %3996 = vmatpush2.bf16.msra.mxu0 %v3918
    %3997 = vmatprep.subr.bf16.mxu0 0
    %3998 = vmatpush2.bf16.msra.mxu0 %v3917
    %3999 = vmatprep.subr.bf16.mxu0 0
    %4000 = vmatpush2.bf16.msra.mxu0 %v3916
    %4001 = vmatprep.subr.bf16.mxu0 0
    %4002 = vmatpush2.bf16.msra.mxu0 %v3915
    %4003 = vmatprep.mubr.bf16.mxu0 %v3705
    %4004 = vmatmul.mubr.bf16.gmra.mxu0 %v3704
    %v4005 = vpop.f32.mrf.mxu0
    %v4006 = vadd.f32 %v3777, %v4005
    %v4007 = vpop.f32.mrf.mxu0
    %v4008 = vpop.f32.mrf.mxu0
    %v4009 = vpop.f32.mrf.mxu0
    %4010 = vdwg.mxu0
    %4011 = vmatprep.subr.bf16.mxu0 0
    %4012 = vmatpush1.bf16.msra.mxu0 %v3930
    %4013 = vmatprep.subr.bf16.mxu0 0
    %4014 = vmatpush1.bf16.msra.mxu0 %v3929
    %4015 = vmatprep.subr.bf16.mxu0 0
    %4016 = vmatpush1.bf16.msra.mxu0 %v3928
    %4017 = vmatprep.subr.bf16.mxu0 0
    %4018 = vmatpush1.bf16.msra.mxu0 %v3927
    %4019 = vmatprep.subr.bf16.mxu0 0
    %4020 = vmatpush1.bf16.msra.mxu0 %v3926
    %4021 = vmatprep.subr.bf16.mxu0 0
    %4022 = vmatpush1.bf16.msra.mxu0 %v3925
    %4023 = vmatprep.subr.bf16.mxu0 0
    %4024 = vmatpush1.bf16.msra.mxu0 %v3924
    %4025 = vmatprep.subr.bf16.mxu0 0
    %4026 = vmatpush1.bf16.msra.mxu0 %v3923
    %4027 = vmatprep.subr.bf16.mxu0 0
    %4028 = vmatpush2.bf16.msra.mxu0 %v3938
    %4029 = vmatprep.subr.bf16.mxu0 0
    %4030 = vmatpush2.bf16.msra.mxu0 %v3937
    %4031 = vmatprep.subr.bf16.mxu0 0
    %4032 = vmatpush2.bf16.msra.mxu0 %v3936
    %4033 = vmatprep.subr.bf16.mxu0 0
    %4034 = vmatpush2.bf16.msra.mxu0 %v3935
    %4035 = vmatprep.subr.bf16.mxu0 0
    %4036 = vmatpush2.bf16.msra.mxu0 %v3934
    %4037 = vmatprep.subr.bf16.mxu0 0
    %4038 = vmatpush2.bf16.msra.mxu0 %v3933
    %4039 = vmatprep.subr.bf16.mxu0 0
    %4040 = vmatpush2.bf16.msra.mxu0 %v3932
    %4041 = vmatprep.subr.bf16.mxu0 0
    %4042 = vmatpush2.bf16.msra.mxu0 %v3931
    %4043 = vmatprep.mubr.bf16.mxu0 %v3707
    %4044 = vmatmul.mubr.bf16.gmra.mxu0 %v3706
    %v4045 = vpop.f32.mrf.mxu0
    %v4046 = vadd.f32 %v4006, %v4045
    %v4047 = vpop.f32.mrf.mxu0
    %v4048 = vpop.f32.mrf.mxu0
    %v4049 = vpop.f32.mrf.mxu0
    %4050 = vdwg.mxu0
    %v4051 = vlaneseq
    %v4052 = vand.u32 %v4051, 127
    %vm4053 = vcmp.lt.s32.totalorder %v4052, 2
    %v4054 = vsel %vm4053, %v4046, -1e+30
    %4055 = vmax.xlane.f32.xlu0 %v4054
    %v4056 = vpop.xlane.xlu0 %4055
    %v4057 = vsub.f32 %v4054, %v4056
    %v4058 = vmul.f32 %v4057, 1.442695
    %v4059 = vpow.pop %v4058
    %4060 = vadd.xlane.f32.xlu0 %v4059
    %v4061 = vpop.xlane.xlu0 %4060
    %v4062 = vlog2.pop %v4061
    %v4063 = vmul.f32 %v4062, 0.6931472
    %v4064 = vsub.f32 %v4057, %v4063
    %4065 = vst [vmem:[#allocation14] sm:$0xff] %v4064
    // Predicated region
    $region58: #{tpu_custom_call.1} parent=1 // pred_check
      _
    $region59: #{tpu_custom_call.1} parent=1 // pred_check_branch
      %4067 = sbr.rel (0) target = $region61
    $region60: #{tpu_custom_call.1} parent=1 // pred_region
      %s4069 = ssub.s32 128, 128
      %4070 = vsyncadd [#allocation4], %s4069
      %s4072 = sshll.u32 [#allocation14], 4
      %s4073 = int_to_ptr.vmem [resolvable:$true] %s4072
      %4075 = dma.vmem_to_hbm [thread:$0]  %s4073, 128, %s7, [#allocation4]
    $region61: #{tpu_custom_call.1} parent=1 // pred_fallthru
      _
    // Predicated region
    $region62: #{tpu_custom_call.1} parent=1 // pred_check
      _
    $region63: #{tpu_custom_call.1} parent=1 // pred_check_branch
      %4077 = sbr.rel (0) target = $region65
    $region64: #{tpu_custom_call.1} parent=1 // pred_region
      %4078 = dma.done [#allocation4], 128
    $region65: #{tpu_custom_call.1} parent=1 // pred_fallthru
      _
    %4079 = vsyncpa [#allocation3], 1
    %4080 = vsyncpa [#allocation6], 1
    %4081 = vsyncpa [#allocation9], 1
    %4082 = vsyncpa [#allocation12], 1
    %4083 = vsyncpa [#allocation4], 1

</llo_original>
